<compile_context>
chip_gen: v7x
topology: tpu7x:2x2x1
jax: 0.10.0
libtpu: 0.0.40
codegen_flags: <defaults>
</compile_context>

<pallas_src>
import functools
import numpy as np
import jax
import jax.numpy as jnp
from jax.experimental import pallas as pl
from jax.experimental.pallas import tpu as pltpu

# ---- hyper-parameters (DeepVARTrainingNetwork.__init__ equivalents) ----
TARGET_DIM = 4
RANK = 2                       # LowRankMultivariateNormalOutput(dim=4, rank=2)
LAGS_SEQ = [1, 2, 3]
CONTEXT_LENGTH = 8
PREDICTION_LENGTH = 4
HISTORY_LENGTH = 12
NUM_CELLS = 32
NUM_LAYERS = 2
NUM_TIME_FEAT = 2
CARDINALITY = [5]
EMBEDDING_DIM = [3]
NUM_FEAT_STATIC_REAL = 1
DROPOUT_RATE = 0.0             # training-mode dropout disabled for determinism
SIGMA_INIT = 1.0
SIGMA_MINIMUM = 1e-3
MINIMUM_SCALE = 1e-10          # MeanScaler default

SEQ_LEN = CONTEXT_LENGTH + PREDICTION_LENGTH
INPUT_SIZE = (len(LAGS_SEQ) * TARGET_DIM
              + sum(EMBEDDING_DIM) + NUM_FEAT_STATIC_REAL + TARGET_DIM
              + NUM_TIME_FEAT)

DIAG_BIAS = float(np.log(np.exp(SIGMA_INIT ** 2) - 1.0))  # inv_softplus(sigma^2)
SLAB_WIDTH = 128                 # lane-dense output width
LIK_COL = 4 * TARGET_DIM         # slab lane carrying -log_prob per row


# ----------------------------- Pallas kernel -------------------------------
def _deepvar_kernel(
    inputs_ref,    # (R, I)    flat time-major RNN inputs (row = t*Bt + b)
    target_ref,    # (R, d)
    scale_ref,     # (R, d)    per-row broadcast of the MeanScaler scale
    weights_ref,   # (R, 1)    loss weights (min over target dim)
    sel_ref,       # (Bt, R)   time-sum selection matrix sel[b, t*Bt+b] = 1
    w_ih0_ref,     # (I, 4H)   g-gate columns pre-scaled x2
    b0_ref,        # (1, 4H)   b_ih0 + b_hh0 (g-gate pre-scaled x2)
    w_hh0_ref,     # (H, 4H)
    w_ih1_ref,     # (H, 4H)
    w_hh1_ref,     # (H, 4H)
    b1_ref,        # (1, 4H)
    w_proj_ref,    # (H, 128)  [w_loc | w_cf0 | w_cf1 | w_cd | zero pad]
    b_proj_ref,    # (1, 128)
    slab_ref,      # (R, 128)  out: raw distr args in lanes 0..15, lik in 16
    loss_ref,      # (Bt, 1)   out: per-batch-element weighted-average loss
    gates0_scr,    # (R, 4H)   scratch: hoisted layer-0 input projection
    hs_scr,        # (R, H)    scratch: top-layer hidden states, flat layout
):
    R, H4 = gates0_scr.shape
    H = H4 // 4
    Bt = loss_ref.shape[0]
    S = R // Bt
    d = target_ref.shape[1]

    # ---- layer-0 input projection for ALL timesteps in one MXU call,
    #      staged through VMEM scratch (bounds vreg pressure over the unroll).
    gates0_scr[...] = (jnp.dot(inputs_ref[...], w_ih0_ref[...],
                               preferred_element_type=jnp.float32)
                       + b0_ref[...])                               # (R, 4H)

    whh0 = w_hh0_ref[...]
    wih1 = w_ih1_ref[...]
    whh1 = w_hh1_ref[...]
    b1b = jnp.broadcast_to(b1_ref[...], (Bt, H4))                   # hoisted

    zero = jnp.zeros((Bt, H), jnp.float32)
    h0, c0, h1, c1 = zero, zero, zero, zero                         # regs

    # Single-sigmoid gate recovery: g-gate pre-activation already doubled in
    # glue, so tanh(a) = 2*sigmoid(2a) - 1 costs one fma on the VALU.
    def lstm_step(gates, c):
        s = jax.nn.sigmoid(gates)                                   # one EUP pass
        i_g = s[:, 0:H]
        f_g = s[:, H:2 * H]
        g_g = 2.0 * s[:, 2 * H:3 * H] - 1.0
        o_g = s[:, 3 * H:4 * H]
        c_new = f_g * c + i_g * g_g
        h_new = o_g * (2.0 * jax.nn.sigmoid(2.0 * c_new) - 1.0)     # tanh(c)
        return h_new, c_new

    # fully-unrolled time loop (S static); only one (Bt,H)x(H,4H) matmul per
    # layer remains on the latency-critical per-step chain.
    for t in range(S):
        # layer 0
        g0 = gates0_scr[t * Bt:(t + 1) * Bt, :] + jnp.dot(
            h0, whh0, preferred_element_type=jnp.float32)           # (Bt, 4H)
        h0, c0 = lstm_step(g0, c0)

        # layer 1: two dots (no per-step concat / relayout)
        g1 = (jnp.dot(h0, wih1, preferred_element_type=jnp.float32)
              + jnp.dot(h1, whh1, preferred_element_type=jnp.float32)
              + b1b)
        h1, c1 = lstm_step(g1, c1)

        hs_scr[t * Bt:(t + 1) * Bt, :] = h1                         # static slice

    # ---- fused projection heads: one matmul, one lane-dense 128-wide slab ----
    raw = (jnp.dot(hs_scr[...], w_proj_ref[...],
                   preferred_element_type=jnp.float32)
           + b_proj_ref[...])                                       # (R, 128)

    loc = raw[:, 0:d]
    w0 = raw[:, d:2 * d]
    w1 = raw[:, 2 * d:3 * d]
    cov_diag = jax.nn.softplus(raw[:, 3 * d:4 * d] + DIAG_BIAS) + SIGMA_MINIMUM ** 2

    # --- TransformedDistribution(LowRankMVN, AffineTransform(scale)).log_prob ---
    scale = scale_ref[...]                                          # (R, d)
    x = target_ref[...] / scale
    diff = x - loc
    dinv = 1.0 / cov_diag

    q = jnp.sum(diff * diff * dinv, axis=-1, keepdims=True)         # (R, 1)
    bv0 = jnp.sum(w0 * diff * dinv, axis=-1, keepdims=True)
    bv1 = jnp.sum(w1 * diff * dinv, axis=-1, keepdims=True)
    c00 = 1.0 + jnp.sum(w0 * w0 * dinv, axis=-1, keepdims=True)
    c01 = jnp.sum(w0 * w1 * dinv, axis=-1, keepdims=True)
    c11 = 1.0 + jnp.sum(w1 * w1 * dinv, axis=-1, keepdims=True)
    det_c = c00 * c11 - c01 * c01
    maha = q - (c11 * bv0 * bv0 - 2.0 * c01 * bv0 * bv1 + c00 * bv1 * bv1) / det_c
    log_det = jnp.sum(jnp.log(cov_diag), axis=-1, keepdims=True) + jnp.log(det_c)
    base_lp = -0.5 * (d * jnp.log(2.0 * jnp.pi) + log_det + maha)   # (R, 1)
    scale_logdet = jnp.sum(jnp.log(scale), axis=-1, keepdims=True)  # (R, 1)
    lik = scale_logdet - base_lp                                    # -log_prob

    # fold the likelihood into lane LIK_COL of the lane-dense slab (one store)
    lane = jax.lax.broadcasted_iota(jnp.int32, raw.shape, 1)
    slab_ref[...] = jnp.where(lane == LIK_COL, lik, raw)

    # --- weighted_average(likelihoods, loss_weights, dim=time) per batch el. ---
    w = weights_ref[...]                                            # (R, 1)
    weighted = jnp.where(w != 0.0, lik * w, 0.0)
    sum_w = jnp.dot(sel_ref[...], w, preferred_element_type=jnp.float32)        # (Bt,1)
    wsum = jnp.dot(sel_ref[...], weighted, preferred_element_type=jnp.float32)  # (Bt,1)
    loss_ref[...] = wsum / jnp.maximum(sum_w, 1.0)


# ------------------------------- JAX glue -----------------------------------
def init_params(key):
    keys = jax.random.split(key, 15)
    H = NUM_CELLS
    k = 1.0 / np.sqrt(H)

    def u(kk, shape, s):
        return jax.random.uniform(kk, shape, jnp.float32, -s, s)

    return dict(
        w_ih0=u(keys[0], (4 * H, INPUT_SIZE), k),
        w_hh0=u(keys[1], (4 * H, H), k),
        b_ih0=u(keys[2], (4 * H,), k),
        b_hh0=u(keys[3], (4 * H,), k),
        w_ih1=u(keys[4], (4 * H, H), k),
        w_hh1=u(keys[5], (4 * H, H), k),
        b_ih1=u(keys[6], (4 * H,), k),
        b_hh1=u(keys[7], (4 * H,), k),
        w_loc=u(keys[8], (TARGET_DIM, H), k),
        b_loc=u(keys[9], (TARGET_DIM,), k),
        w_cf=u(keys[10], (TARGET_DIM * RANK, H), k),
        b_cf=u(keys[11], (TARGET_DIM * RANK,), k),
        w_cd=u(keys[12], (TARGET_DIM, H), k),
        b_cd=u(keys[13], (TARGET_DIM,), k),
        emb=jax.random.normal(keys[14], (CARDINALITY[0], EMBEDDING_DIM[0]), jnp.float32),
    )


def get_lagged_subsequences(sequence, sequence_length, indices, subsequences_length):
    lagged = []
    for lag in indices:
        begin = sequence_length - lag - subsequences_length
        end = sequence_length - lag
        lagged.append(sequence[:, begin:end, :])
    # stack on axis=1 -> (B, I, S, C), permute(0,2,3,1) -> (B, S, C, I)
    return jnp.transpose(jnp.stack(lagged, axis=1), (0, 2, 3, 1))


def mean_scaler(data, observed):
    num_observed = jnp.sum(observed, axis=1)                       # (B, C)
    sum_observed = jnp.sum(jnp.abs(data) * observed, axis=1)       # (B, C)
    total_observed = jnp.sum(num_observed, axis=0)                 # (C,)
    default_scale = jnp.sum(sum_observed, axis=0) / jnp.maximum(total_observed, 1.0)
    scale = sum_observed / jnp.maximum(num_observed, 1.0)
    scale = jnp.maximum(MINIMUM_SCALE,
                        jnp.where(sum_observed > 0.0, scale, default_scale[None, :]))
    return scale[:, None, :]                                       # keepdim (B, 1, C)


def deepvar_forward(params, feat_static_cat, feat_static_real,
                    past_time_feat, past_target_cdf, past_observed_values,
                    past_is_pad, future_time_feat, future_target_cdf,
                    future_observed_values):
    B = past_target_cdf.shape[0]
    S, H, d = SEQ_LEN, NUM_CELLS, TARGET_DIM
    I = INPUT_SIZE
    H4 = 4 * H

    # batch tiling (grid over batch; "parallel" -> megacore sharding on v7x)
    B_TILE = B if B <= 64 else 64
    assert B % B_TILE == 0, "batch must divide the batch tile"
    NT = B // B_TILE
    R = S * B_TILE

    past_observed_values = jnp.minimum(past_observed_values,
                                       1.0 - past_is_pad[..., None])

    time_feat = jnp.concatenate(
        [past_time_feat[:, -CONTEXT_LENGTH:, :], future_time_feat], axis=1)
    sequence = jnp.concatenate([past_target_cdf, future_target_cdf], axis=1)
    sequence_length = HISTORY_LENGTH + PREDICTION_LENGTH
    lags = get_lagged_subsequences(sequence, sequence_length, LAGS_SEQ, S)   # (B,S,d,L)

    scale = mean_scaler(past_target_cdf[:, -CONTEXT_LENGTH:, :],
                        past_observed_values[:, -CONTEXT_LENGTH:, :])        # (B,1,d)

    lags_scaled = lags / scale[..., None]
    input_lags = lags_scaled.reshape(B, S, len(LAGS_SEQ) * d)

    embedded_cat = params["emb"][feat_static_cat[:, 0]]                      # (B, E)
    static_feat = jnp.concatenate(
        [embedded_cat, feat_static_real, jnp.log(scale[:, 0, :])], axis=1)
    repeated_static = jnp.broadcast_to(
        static_feat[:, None, :], (B, S, static_feat.shape[-1]))

    inputs = jnp.concatenate([input_lags, repeated_static, time_feat], axis=-1)

    target = jnp.concatenate(
        [past_target_cdf[:, -CONTEXT_LENGTH:, :], future_target_cdf], axis=1)
    observed_values = jnp.concatenate(
        [past_observed_values[:, -CONTEXT_LENGTH:, :], future_observed_values], axis=1)
    loss_weights = jnp.min(observed_values, axis=-1)                         # (B, S)

    # --- re-layout for the kernel: batch tiles, flat time-major rows ---------
    def tile_flat(x_bsc):
        # (B, S, C) -> (NT, S*B_TILE, C), row = t*B_TILE + b_local
        C = x_bsc.shape[-1]
        return (x_bsc.reshape(NT, B_TILE, S, C)
                .transpose(0, 2, 1, 3)
                .reshape(NT, S * B_TILE, C))

    inputs_t = tile_flat(inputs)                                   # (NT, R, I)
    target_t = tile_flat(target)                                   # (NT, R, d)
    weights_t = tile_flat(loss_weights[..., None])                 # (NT, R, 1)
    scale_bd = scale[:, 0, :]                                      # (B, d)
    scale_t = jnp.broadcast_to(
        scale_bd.reshape(NT, 1, B_TILE, d),
        (NT, S, B_TILE, d)).reshape(NT, R, d)                      # (NT, R, d)

    # time-sum selection matrix: sel[b, t*B_TILE + b] = 1
    sel = jnp.asarray(np.tile(np.eye(B_TILE, dtype=np.float32), (1, S)))     # (Bt, R)

    # --- pre-transposed / gate-pre-scaled / fused parameters ----------------
    def prescale(w_t):
        # tanh(a) = 2*sigmoid(2a) - 1: double the g-gate columns so one
        # sigmoid pass in the kernel recovers all four gates.
        return w_t.at[:, 2 * H:3 * H].multiply(2.0)

    w_ih0_t = prescale(params["w_ih0"].T)                           # (I, 4H)
    w_hh0_t = prescale(params["w_hh0"].T)                           # (H, 4H)
    b0 = prescale((params["b_ih0"] + params["b_hh0"])[None, :])     # (1, 4H)
    w_ih1_t = prescale(params["w_ih1"].T)                           # (H, 4H)
    w_hh1_t = prescale(params["w_hh1"].T)                           # (H, 4H)
    b1 = prescale((params["b_ih1"] + params["b_hh1"])[None, :])     # (1, 4H)

    w_proj16 = jnp.concatenate(
        [params["w_loc"].T, params["w_cf"][0::RANK].T,
         params["w_cf"][1::RANK].T, params["w_cd"].T], axis=1)      # (H, 16)
    b_proj16 = jnp.concatenate(
        [params["b_loc"], params["b_cf"][0::RANK],
         params["b_cf"][1::RANK], params["b_cd"]], axis=0)[None, :]  # (1, 16)
    # zero-pad to a lane-dense 128-wide projection / output slab
    w_proj = jnp.zeros((H, SLAB_WIDTH), jnp.float32).at[:, :4 * d].set(w_proj16)
    b_proj = jnp.zeros((1, SLAB_WIDTH), jnp.float32).at[:, :4 * d].set(b_proj16)

    # --- pallas call ---------------------------------------------------------
    flops = int(NT * (2 * R * I * H4                 # hoisted input projection
                      + S * 3 * 2 * B_TILE * H * H4  # hh0 + ih1 + hh1 per step
                      + 2 * R * H * SLAB_WIDTH       # fused projection head
                      + 2 * 2 * B_TILE * R))         # loss reductions
    transcendentals = int(NT * R * (2 * (H4 + H) + 8 * d))
    bytes_accessed = int(4 * (NT * R * (I + 2 * d + 1 + SLAB_WIDTH)
                              + NT * B_TILE + B_TILE * R
                              + I * H4 + 3 * H * H4 + 2 * H4
                              + (H + 1) * SLAB_WIDTH))

    def full(shape):
        return pl.BlockSpec(shape, lambda n: (0,) * len(shape))

    def tiled(shape):
        return pl.BlockSpec((None,) + shape, lambda n: (n,) + (0,) * len(shape))

    grid_spec = pltpu.PrefetchScalarGridSpec(
        num_scalar_prefetch=0,
        grid=(NT,),
        in_specs=[
            tiled((R, I)),            # inputs
            tiled((R, d)),            # target
            tiled((R, d)),            # scale (per-row)
            tiled((R, 1)),            # loss weights
            full((B_TILE, R)),        # selection matrix (shared)
            full((I, H4)),            # w_ih0
            full((1, H4)),            # b0
            full((H, H4)),            # w_hh0
            full((H, H4)),            # w_ih1
            full((H, H4)),            # w_hh1
            full((1, H4)),            # b1
            full((H, SLAB_WIDTH)),    # w_proj (padded)
            full((1, SLAB_WIDTH)),    # b_proj (padded)
        ],
        out_specs=(
            tiled((R, SLAB_WIDTH)),   # raw args + likelihood slab
            tiled((B_TILE, 1)),       # per-batch-element weighted loss
        ),
        scratch_shapes=[
            pltpu.VMEM((R, H4), jnp.float32),   # hoisted layer-0 gates
            pltpu.VMEM((R, H), jnp.float32),    # top-layer hidden states
        ],
    )

    slab, loss_bt = pl.pallas_call(
        _deepvar_kernel,
        out_shape=(jax.ShapeDtypeStruct((NT, R, SLAB_WIDTH), jnp.float32),
                   jax.ShapeDtypeStruct((NT, B_TILE, 1), jnp.float32)),
        grid_spec=grid_spec,
        compiler_params=pltpu.CompilerParams(
            dimension_semantics=("parallel",)),
        cost_estimate=pl.CostEstimate(
            flops=flops, transcendentals=transcendentals,
            bytes_accessed=bytes_accessed),
    )(inputs_t, target_t, scale_t, weights_t, sel,
      w_ih0_t, b0, w_hh0_t, w_ih1_t, w_hh1_t, b1, w_proj, b_proj)

    # --- unpack the lane-dense slab back to module-native layouts ------------
    slab_b = (slab.reshape(NT, S, B_TILE, SLAB_WIDTH)
              .transpose(0, 2, 1, 3)
              .reshape(B, S, SLAB_WIDTH))
    likelihoods = slab_b[..., LIK_COL:LIK_COL + 1]                  # (B, S, 1)
    loc = slab_b[..., 0:d]                                          # (B, S, d)
    w0 = slab_b[..., d:2 * d]
    w1 = slab_b[..., 2 * d:3 * d]
    cov_diag = jax.nn.softplus(slab_b[..., 3 * d:4 * d] + DIAG_BIAS) + SIGMA_MINIMUM ** 2
    cov_factor = jnp.stack([w0, w1], axis=-1)                       # (B, S, d, r)

    loss = jnp.mean(loss_bt.reshape(B))                             # loss.mean()

    # matches torch forward: (loss.mean(), likelihoods) + distr_args + (target,)
    return (loss, likelihoods, loc, cov_factor, cov_diag, target)


if __name__ == "__main__":
    key = jax.random.PRNGKey(0)
    pkey, dkey = jax.random.split(key)
    params = init_params(pkey)
    ks = jax.random.split(dkey, 6)
    B = 2

    feat_static_cat = jax.random.randint(ks[0], (B, 1), 0, CARDINALITY[0]).astype(jnp.int32)
    feat_static_real = jax.random.normal(ks[1], (B, NUM_FEAT_STATIC_REAL), jnp.float32)
    past_time_feat = jax.random.normal(ks[2], (B, HISTORY_LENGTH, NUM_TIME_FEAT), jnp.float32)
    past_target_cdf = jax.random.uniform(ks[3], (B, HISTORY_LENGTH, TARGET_DIM), jnp.float32,
                                         minval=0.05, maxval=0.95)
    past_observed_values = jnp.ones((B, HISTORY_LENGTH, TARGET_DIM), jnp.float32)
    past_is_pad = jnp.zeros((B, HISTORY_LENGTH), jnp.float32)
    future_time_feat = jax.random.normal(ks[4], (B, PREDICTION_LENGTH, NUM_TIME_FEAT), jnp.float32)
    future_target_cdf = jax.random.uniform(ks[5], (B, PREDICTION_LENGTH, TARGET_DIM), jnp.float32,
                                           minval=0.05, maxval=0.95)
    future_observed_values = jnp.ones((B, PREDICTION_LENGTH, TARGET_DIM), jnp.float32)

    fwd = jax.jit(functools.partial(deepvar_forward, params))
    outs = fwd(feat_static_cat, feat_static_real, past_time_feat, past_target_cdf,
               past_observed_values, past_is_pad, future_time_feat, future_target_cdf,
               future_observed_values)
    jax.block_until_ready(outs)
    assert np.isfinite(float(outs[0])), "loss is not finite"
    print("KERNEL_OK")
</pallas_src>

<mosaic_0001>
module attributes {stable_mosaic.version = 11 : i64} {
  func.func @_deepvar_kernel(%arg0: i32, %arg1: memref<1x24x22xf32, #tpu.memory_space<vmem>>, %arg2: memref<1x24x4xf32, #tpu.memory_space<vmem>>, %arg3: memref<1x24x4xf32, #tpu.memory_space<vmem>>, %arg4: memref<1x24x1xf32, #tpu.memory_space<vmem>>, %arg5: memref<2x24xf32, #tpu.memory_space<vmem>>, %arg6: memref<22x128xf32, #tpu.memory_space<vmem>>, %arg7: memref<1x128xf32, #tpu.memory_space<vmem>>, %arg8: memref<32x128xf32, #tpu.memory_space<vmem>>, %arg9: memref<32x128xf32, #tpu.memory_space<vmem>>, %arg10: memref<32x128xf32, #tpu.memory_space<vmem>>, %arg11: memref<1x128xf32, #tpu.memory_space<vmem>>, %arg12: memref<32x128xf32, #tpu.memory_space<vmem>>, %arg13: memref<1x128xf32, #tpu.memory_space<vmem>>, %arg14: memref<1x24x128xf32, #tpu.memory_space<vmem>>, %arg15: memref<1x2x1xf32, #tpu.memory_space<vmem>>, %arg16: memref<24x128xf32, #tpu.memory_space<vmem>>, %arg17: memref<24x32xf32, #tpu.memory_space<vmem>>) attributes {dimension_semantics = [#tpu.dimension_semantics<parallel>], iteration_bounds = array<i64: 1>, scalar_prefetch = 0 : i64, scratch_operands = 2 : i64, tpu.core_type = #tpu.core_type<tc>, window_params = [{transform_indices = @transform_0, window_bounds = array<i64: 1, 24, 22>}, {transform_indices = @transform_1, window_bounds = array<i64: 1, 24, 4>}, {transform_indices = @transform_2, window_bounds = array<i64: 1, 24, 4>}, {transform_indices = @transform_3, window_bounds = array<i64: 1, 24, 1>}, {pipeline_mode = #tpu.pipeline_mode<synchronous>, transform_indices = @transform_4, window_bounds = array<i64: 2, 24>}, {pipeline_mode = #tpu.pipeline_mode<synchronous>, transform_indices = @transform_5, window_bounds = array<i64: 22, 128>}, {pipeline_mode = #tpu.pipeline_mode<synchronous>, transform_indices = @transform_6, window_bounds = array<i64: 1, 128>}, {pipeline_mode = #tpu.pipeline_mode<synchronous>, transform_indices = @transform_7, window_bounds = array<i64: 32, 128>}, {pipeline_mode = #tpu.pipeline_mode<synchronous>, transform_indices = @transform_8, window_bounds = array<i64: 32, 128>}, {pipeline_mode = #tpu.pipeline_mode<synchronous>, transform_indices = @transform_9, window_bounds = array<i64: 32, 128>}, {pipeline_mode = #tpu.pipeline_mode<synchronous>, transform_indices = @transform_10, window_bounds = array<i64: 1, 128>}, {pipeline_mode = #tpu.pipeline_mode<synchronous>, transform_indices = @transform_11, window_bounds = array<i64: 32, 128>}, {pipeline_mode = #tpu.pipeline_mode<synchronous>, transform_indices = @transform_12, window_bounds = array<i64: 1, 128>}, {transform_indices = @transform_13, window_bounds = array<i64: 1, 24, 128>}, {transform_indices = @transform_14, window_bounds = array<i64: 1, 2, 1>}]} {
    %c0 = arith.constant 0 : index
    %c0_0 = arith.constant 0 : index
    %c0_1 = arith.constant 0 : index
    %0 = vector.load %arg1[%c0, %c0_0, %c0_1] : memref<1x24x22xf32, #tpu.memory_space<vmem>>, vector<1x24x22xf32>
    %1 = vector.shape_cast %0 : vector<1x24x22xf32> to vector<24x22xf32>
    %c0_2 = arith.constant 0 : index
    %c0_3 = arith.constant 0 : index
    %2 = vector.load %arg6[%c0_2, %c0_3] : memref<22x128xf32, #tpu.memory_space<vmem>>, vector<22x128xf32>
    %cst = arith.constant dense<0.000000e+00> : vector<24x128xf32>
    %3 = tpu.matmul %1, %2, %cst {dimension_numbers = #tpu.dot_dimension_numbers<[1], [0], [0], [1], [0, 0, 1, 1], [], []>} : vector<24x22xf32>, vector<22x128xf32>, vector<24x128xf32> -> vector<24x128xf32>
    %c0_4 = arith.constant 0 : index
    %c0_5 = arith.constant 0 : index
    %4 = vector.load %arg7[%c0_4, %c0_5] : memref<1x128xf32, #tpu.memory_space<vmem>>, vector<1x128xf32>
    %5 = vector.broadcast %4 : vector<1x128xf32> to vector<24x128xf32>
    %6 = arith.addf %3, %5 : vector<24x128xf32>
    %c0_6 = arith.constant 0 : index
    %c0_7 = arith.constant 0 : index
    %7 = vector.load %arg16[%c0_6, %c0_7] : memref<24x128xf32, #tpu.memory_space<vmem>>, vector<24x128xf32>
    tpu.vector_store %arg16[%c0_6, %c0_7], %6 {strides = array<i32>} : memref<24x128xf32, #tpu.memory_space<vmem>>, vector<24x128xf32>,
    %c0_8 = arith.constant 0 : index
    %c0_9 = arith.constant 0 : index
    %8 = vector.load %arg8[%c0_8, %c0_9] : memref<32x128xf32, #tpu.memory_space<vmem>>, vector<32x128xf32>
    %c0_10 = arith.constant 0 : index
    %c0_11 = arith.constant 0 : index
    %9 = vector.load %arg9[%c0_10, %c0_11] : memref<32x128xf32, #tpu.memory_space<vmem>>, vector<32x128xf32>
    %c0_12 = arith.constant 0 : index
    %c0_13 = arith.constant 0 : index
    %10 = vector.load %arg10[%c0_12, %c0_13] : memref<32x128xf32, #tpu.memory_space<vmem>>, vector<32x128xf32>
    %c0_14 = arith.constant 0 : index
    %c0_15 = arith.constant 0 : index
    %11 = vector.load %arg11[%c0_14, %c0_15] : memref<1x128xf32, #tpu.memory_space<vmem>>, vector<1x128xf32>
    %12 = vector.shape_cast %11 : vector<1x128xf32> to vector<1x128xf32>
    %13 = vector.broadcast %12 : vector<1x128xf32> to vector<2x128xf32>
    %cst_16 = arith.constant 0.000000e+00 : f32
    %14 = vector.broadcast %cst_16 : f32 to vector<2x32xf32>
    %c0_17 = arith.constant 0 : index
    %c0_18 = arith.constant 0 : index
    %15 = vector.load %arg16[%c0_17, %c0_18] : memref<24x128xf32, #tpu.memory_space<vmem>>, vector<2x128xf32>
    %cst_19 = arith.constant dense<0.000000e+00> : vector<2x128xf32>
    %16 = tpu.matmul %14, %8, %cst_19 {dimension_numbers = #tpu.dot_dimension_numbers<[1], [0], [0], [1], [0, 0, 1, 1], [], []>} : vector<2x32xf32>, vector<32x128xf32>, vector<2x128xf32> -> vector<2x128xf32>
    %17 = arith.addf %15, %16 : vector<2x128xf32>
    %18 = arith.negf %17 : vector<2x128xf32>
    %19 = math.exp %18 : vector<2x128xf32>
    %cst_20 = arith.constant 1.000000e+00 : f32
    %20 = vector.broadcast %cst_20 : f32 to vector<2x128xf32>
    %21 = arith.addf %20, %19 : vector<2x128xf32>
    %22 = arith.divf %20, %21 : vector<2x128xf32>
    %23 = vector.extract_strided_slice %22 {offsets = [0, 0], sizes = [2, 32], strides = [1, 1]} : vector<2x128xf32> to vector<2x32xf32>
    %24 = vector.extract_strided_slice %22 {offsets = [0, 32], sizes = [2, 32], strides = [1, 1]} : vector<2x128xf32> to vector<2x32xf32>
    %25 = vector.extract_strided_slice %22 {offsets = [0, 64], sizes = [2, 32], strides = [1, 1]} : vector<2x128xf32> to vector<2x32xf32>
    %cst_21 = arith.constant 2.000000e+00 : f32
    %26 = vector.broadcast %cst_21 : f32 to vector<2x32xf32>
    %27 = arith.mulf %26, %25 : vector<2x32xf32>
    %cst_22 = arith.constant 1.000000e+00 : f32
    %28 = vector.broadcast %cst_22 : f32 to vector<2x32xf32>
    %29 = arith.subf %27, %28 : vector<2x32xf32>
    %30 = vector.extract_strided_slice %22 {offsets = [0, 96], sizes = [2, 32], strides = [1, 1]} : vector<2x128xf32> to vector<2x32xf32>
    %31 = arith.mulf %24, %14 : vector<2x32xf32>
    %32 = arith.mulf %23, %29 : vector<2x32xf32>
    %33 = arith.addf %31, %32 : vector<2x32xf32>
    %cst_23 = arith.constant 2.000000e+00 : f32
    %34 = vector.broadcast %cst_23 : f32 to vector<2x32xf32>
    %35 = arith.mulf %34, %33 : vector<2x32xf32>
    %36 = arith.negf %35 : vector<2x32xf32>
    %37 = math.exp %36 : vector<2x32xf32>
    %cst_24 = arith.constant 1.000000e+00 : f32
    %38 = vector.broadcast %cst_24 : f32 to vector<2x32xf32>
    %39 = arith.addf %38, %37 : vector<2x32xf32>
    %40 = arith.divf %38, %39 : vector<2x32xf32>
    %cst_25 = arith.constant 2.000000e+00 : f32
    %41 = vector.broadcast %cst_25 : f32 to vector<2x32xf32>
    %42 = arith.mulf %41, %40 : vector<2x32xf32>
    %cst_26 = arith.constant 1.000000e+00 : f32
    %43 = vector.broadcast %cst_26 : f32 to vector<2x32xf32>
    %44 = arith.subf %42, %43 : vector<2x32xf32>
    %45 = arith.mulf %30, %44 : vector<2x32xf32>
    %cst_27 = arith.constant dense<0.000000e+00> : vector<2x128xf32>
    %46 = tpu.matmul %45, %9, %cst_27 {dimension_numbers = #tpu.dot_dimension_numbers<[1], [0], [0], [1], [0, 0, 1, 1], [], []>} : vector<2x32xf32>, vector<32x128xf32>, vector<2x128xf32> -> vector<2x128xf32>
    %cst_28 = arith.constant dense<0.000000e+00> : vector<2x128xf32>
    %47 = tpu.matmul %14, %10, %cst_28 {dimension_numbers = #tpu.dot_dimension_numbers<[1], [0], [0], [1], [0, 0, 1, 1], [], []>} : vector<2x32xf32>, vector<32x128xf32>, vector<2x128xf32> -> vector<2x128xf32>
    %48 = arith.addf %46, %47 : vector<2x128xf32>
    %49 = arith.addf %48, %13 : vector<2x128xf32>
    %50 = arith.negf %49 : vector<2x128xf32>
    %51 = math.exp %50 : vector<2x128xf32>
    %cst_29 = arith.constant 1.000000e+00 : f32
    %52 = vector.broadcast %cst_29 : f32 to vector<2x128xf32>
    %53 = arith.addf %52, %51 : vector<2x128xf32>
    %54 = arith.divf %52, %53 : vector<2x128xf32>
    %55 = vector.extract_strided_slice %54 {offsets = [0, 0], sizes = [2, 32], strides = [1, 1]} : vector<2x128xf32> to vector<2x32xf32>
    %56 = vector.extract_strided_slice %54 {offsets = [0, 32], sizes = [2, 32], strides = [1, 1]} : vector<2x128xf32> to vector<2x32xf32>
    %57 = vector.extract_strided_slice %54 {offsets = [0, 64], sizes = [2, 32], strides = [1, 1]} : vector<2x128xf32> to vector<2x32xf32>
    %cst_30 = arith.constant 2.000000e+00 : f32
    %58 = vector.broadcast %cst_30 : f32 to vector<2x32xf32>
    %59 = arith.mulf %58, %57 : vector<2x32xf32>
    %cst_31 = arith.constant 1.000000e+00 : f32
    %60 = vector.broadcast %cst_31 : f32 to vector<2x32xf32>
    %61 = arith.subf %59, %60 : vector<2x32xf32>
    %62 = vector.extract_strided_slice %54 {offsets = [0, 96], sizes = [2, 32], strides = [1, 1]} : vector<2x128xf32> to vector<2x32xf32>
    %63 = arith.mulf %56, %14 : vector<2x32xf32>
    %64 = arith.mulf %55, %61 : vector<2x32xf32>
    %65 = arith.addf %63, %64 : vector<2x32xf32>
    %cst_32 = arith.constant 2.000000e+00 : f32
    %66 = vector.broadcast %cst_32 : f32 to vector<2x32xf32>
    %67 = arith.mulf %66, %65 : vector<2x32xf32>
    %68 = arith.negf %67 : vector<2x32xf32>
    %69 = math.exp %68 : vector<2x32xf32>
    %cst_33 = arith.constant 1.000000e+00 : f32
    %70 = vector.broadcast %cst_33 : f32 to vector<2x32xf32>
    %71 = arith.addf %70, %69 : vector<2x32xf32>
    %72 = arith.divf %70, %71 : vector<2x32xf32>
    %cst_34 = arith.constant 2.000000e+00 : f32
    %73 = vector.broadcast %cst_34 : f32 to vector<2x32xf32>
    %74 = arith.mulf %73, %72 : vector<2x32xf32>
    %cst_35 = arith.constant 1.000000e+00 : f32
    %75 = vector.broadcast %cst_35 : f32 to vector<2x32xf32>
    %76 = arith.subf %74, %75 : vector<2x32xf32>
    %77 = arith.mulf %62, %76 : vector<2x32xf32>
    %c0_36 = arith.constant 0 : index
    %c0_37 = arith.constant 0 : index
    %78 = vector.load %arg17[%c0_36, %c0_37] : memref<24x32xf32, #tpu.memory_space<vmem>>, vector<2x32xf32>
    tpu.vector_store %arg17[%c0_36, %c0_37], %77 {strides = array<i32>} : memref<24x32xf32, #tpu.memory_space<vmem>>, vector<2x32xf32>,
    %c2 = arith.constant 2 : index
    %c0_38 = arith.constant 0 : index
    %79 = vector.load %arg16[%c2, %c0_38] : memref<24x128xf32, #tpu.memory_space<vmem>>, vector<2x128xf32>
    %cst_39 = arith.constant dense<0.000000e+00> : vector<2x128xf32>
    %80 = tpu.matmul %45, %8, %cst_39 {dimension_numbers = #tpu.dot_dimension_numbers<[1], [0], [0], [1], [0, 0, 1, 1], [], []>} : vector<2x32xf32>, vector<32x128xf32>, vector<2x128xf32> -> vector<2x128xf32>
    %81 = arith.addf %79, %80 : vector<2x128xf32>
    %82 = arith.negf %81 : vector<2x128xf32>
    %83 = math.exp %82 : vector<2x128xf32>
    %cst_40 = arith.constant 1.000000e+00 : f32
    %84 = vector.broadcast %cst_40 : f32 to vector<2x128xf32>
    %85 = arith.addf %84, %83 : vector<2x128xf32>
    %86 = arith.divf %84, %85 : vector<2x128xf32>
    %87 = vector.extract_strided_slice %86 {offsets = [0, 0], sizes = [2, 32], strides = [1, 1]} : vector<2x128xf32> to vector<2x32xf32>
    %88 = vector.extract_strided_slice %86 {offsets = [0, 32], sizes = [2, 32], strides = [1, 1]} : vector<2x128xf32> to vector<2x32xf32>
    %89 = vector.extract_strided_slice %86 {offsets = [0, 64], sizes = [2, 32], strides = [1, 1]} : vector<2x128xf32> to vector<2x32xf32>
    %cst_41 = arith.constant 2.000000e+00 : f32
    %90 = vector.broadcast %cst_41 : f32 to vector<2x32xf32>
    %91 = arith.mulf %90, %89 : vector<2x32xf32>
    %cst_42 = arith.constant 1.000000e+00 : f32
    %92 = vector.broadcast %cst_42 : f32 to vector<2x32xf32>
    %93 = arith.subf %91, %92 : vector<2x32xf32>
    %94 = vector.extract_strided_slice %86 {offsets = [0, 96], sizes = [2, 32], strides = [1, 1]} : vector<2x128xf32> to vector<2x32xf32>
    %95 = arith.mulf %88, %33 : vector<2x32xf32>
    %96 = arith.mulf %87, %93 : vector<2x32xf32>
    %97 = arith.addf %95, %96 : vector<2x32xf32>
    %cst_43 = arith.constant 2.000000e+00 : f32
    %98 = vector.broadcast %cst_43 : f32 to vector<2x32xf32>
    %99 = arith.mulf %98, %97 : vector<2x32xf32>
    %100 = arith.negf %99 : vector<2x32xf32>
    %101 = math.exp %100 : vector<2x32xf32>
    %cst_44 = arith.constant 1.000000e+00 : f32
    %102 = vector.broadcast %cst_44 : f32 to vector<2x32xf32>
    %103 = arith.addf %102, %101 : vector<2x32xf32>
    %104 = arith.divf %102, %103 : vector<2x32xf32>
    %cst_45 = arith.constant 2.000000e+00 : f32
    %105 = vector.broadcast %cst_45 : f32 to vector<2x32xf32>
    %106 = arith.mulf %105, %104 : vector<2x32xf32>
    %cst_46 = arith.constant 1.000000e+00 : f32
    %107 = vector.broadcast %cst_46 : f32 to vector<2x32xf32>
    %108 = arith.subf %106, %107 : vector<2x32xf32>
    %109 = arith.mulf %94, %108 : vector<2x32xf32>
    %cst_47 = arith.constant dense<0.000000e+00> : vector<2x128xf32>
    %110 = tpu.matmul %109, %9, %cst_47 {dimension_numbers = #tpu.dot_dimension_numbers<[1], [0], [0], [1], [0, 0, 1, 1], [], []>} : vector<2x32xf32>, vector<32x128xf32>, vector<2x128xf32> -> vector<2x128xf32>
    %cst_48 = arith.constant dense<0.000000e+00> : vector<2x128xf32>
    %111 = tpu.matmul %77, %10, %cst_48 {dimension_numbers = #tpu.dot_dimension_numbers<[1], [0], [0], [1], [0, 0, 1, 1], [], []>} : vector<2x32xf32>, vector<32x128xf32>, vector<2x128xf32> -> vector<2x128xf32>
    %112 = arith.addf %110, %111 : vector<2x128xf32>
    %113 = arith.addf %112, %13 : vector<2x128xf32>
    %114 = arith.negf %113 : vector<2x128xf32>
    %115 = math.exp %114 : vector<2x128xf32>
    %cst_49 = arith.constant 1.000000e+00 : f32
    %116 = vector.broadcast %cst_49 : f32 to vector<2x128xf32>
    %117 = arith.addf %116, %115 : vector<2x128xf32>
    %118 = arith.divf %116, %117 : vector<2x128xf32>
    %119 = vector.extract_strided_slice %118 {offsets = [0, 0], sizes = [2, 32], strides = [1, 1]} : vector<2x128xf32> to vector<2x32xf32>
    %120 = vector.extract_strided_slice %118 {offsets = [0, 32], sizes = [2, 32], strides = [1, 1]} : vector<2x128xf32> to vector<2x32xf32>
    %121 = vector.extract_strided_slice %118 {offsets = [0, 64], sizes = [2, 32], strides = [1, 1]} : vector<2x128xf32> to vector<2x32xf32>
    %cst_50 = arith.constant 2.000000e+00 : f32
    %122 = vector.broadcast %cst_50 : f32 to vector<2x32xf32>
    %123 = arith.mulf %122, %121 : vector<2x32xf32>
    %cst_51 = arith.constant 1.000000e+00 : f32
    %124 = vector.broadcast %cst_51 : f32 to vector<2x32xf32>
    %125 = arith.subf %123, %124 : vector<2x32xf32>
    %126 = vector.extract_strided_slice %118 {offsets = [0, 96], sizes = [2, 32], strides = [1, 1]} : vector<2x128xf32> to vector<2x32xf32>
    %127 = arith.mulf %120, %65 : vector<2x32xf32>
    %128 = arith.mulf %119, %125 : vector<2x32xf32>
    %129 = arith.addf %127, %128 : vector<2x32xf32>
    %cst_52 = arith.constant 2.000000e+00 : f32
    %130 = vector.broadcast %cst_52 : f32 to vector<2x32xf32>
    %131 = arith.mulf %130, %129 : vector<2x32xf32>
    %132 = arith.negf %131 : vector<2x32xf32>
    %133 = math.exp %132 : vector<2x32xf32>
    %cst_53 = arith.constant 1.000000e+00 : f32
    %134 = vector.broadcast %cst_53 : f32 to vector<2x32xf32>
    %135 = arith.addf %134, %133 : vector<2x32xf32>
    %136 = arith.divf %134, %135 : vector<2x32xf32>
    %cst_54 = arith.constant 2.000000e+00 : f32
    %137 = vector.broadcast %cst_54 : f32 to vector<2x32xf32>
    %138 = arith.mulf %137, %136 : vector<2x32xf32>
    %cst_55 = arith.constant 1.000000e+00 : f32
    %139 = vector.broadcast %cst_55 : f32 to vector<2x32xf32>
    %140 = arith.subf %138, %139 : vector<2x32xf32>
    %141 = arith.mulf %126, %140 : vector<2x32xf32>
    %c2_56 = arith.constant 2 : index
    %c0_57 = arith.constant 0 : index
    %142 = vector.load %arg17[%c2_56, %c0_57] : memref<24x32xf32, #tpu.memory_space<vmem>>, vector<2x32xf32>
    tpu.vector_store %arg17[%c2_56, %c0_57], %141 {strides = array<i32>} : memref<24x32xf32, #tpu.memory_space<vmem>>, vector<2x32xf32>,
    %c4 = arith.constant 4 : index
    %c0_58 = arith.constant 0 : index
    %143 = vector.load %arg16[%c4, %c0_58] : memref<24x128xf32, #tpu.memory_space<vmem>>, vector<2x128xf32>
    %cst_59 = arith.constant dense<0.000000e+00> : vector<2x128xf32>
    %144 = tpu.matmul %109, %8, %cst_59 {dimension_numbers = #tpu.dot_dimension_numbers<[1], [0], [0], [1], [0, 0, 1, 1], [], []>} : vector<2x32xf32>, vector<32x128xf32>, vector<2x128xf32> -> vector<2x128xf32>
    %145 = arith.addf %143, %144 : vector<2x128xf32>
    %146 = arith.negf %145 : vector<2x128xf32>
    %147 = math.exp %146 : vector<2x128xf32>
    %cst_60 = arith.constant 1.000000e+00 : f32
    %148 = vector.broadcast %cst_60 : f32 to vector<2x128xf32>
    %149 = arith.addf %148, %147 : vector<2x128xf32>
    %150 = arith.divf %148, %149 : vector<2x128xf32>
    %151 = vector.extract_strided_slice %150 {offsets = [0, 0], sizes = [2, 32], strides = [1, 1]} : vector<2x128xf32> to vector<2x32xf32>
    %152 = vector.extract_strided_slice %150 {offsets = [0, 32], sizes = [2, 32], strides = [1, 1]} : vector<2x128xf32> to vector<2x32xf32>
    %153 = vector.extract_strided_slice %150 {offsets = [0, 64], sizes = [2, 32], strides = [1, 1]} : vector<2x128xf32> to vector<2x32xf32>
    %cst_61 = arith.constant 2.000000e+00 : f32
    %154 = vector.broadcast %cst_61 : f32 to vector<2x32xf32>
    %155 = arith.mulf %154, %153 : vector<2x32xf32>
    %cst_62 = arith.constant 1.000000e+00 : f32
    %156 = vector.broadcast %cst_62 : f32 to vector<2x32xf32>
    %157 = arith.subf %155, %156 : vector<2x32xf32>
    %158 = vector.extract_strided_slice %150 {offsets = [0, 96], sizes = [2, 32], strides = [1, 1]} : vector<2x128xf32> to vector<2x32xf32>
    %159 = arith.mulf %152, %97 : vector<2x32xf32>
    %160 = arith.mulf %151, %157 : vector<2x32xf32>
    %161 = arith.addf %159, %160 : vector<2x32xf32>
    %cst_63 = arith.constant 2.000000e+00 : f32
    %162 = vector.broadcast %cst_63 : f32 to vector<2x32xf32>
    %163 = arith.mulf %162, %161 : vector<2x32xf32>
    %164 = arith.negf %163 : vector<2x32xf32>
    %165 = math.exp %164 : vector<2x32xf32>
    %cst_64 = arith.constant 1.000000e+00 : f32
    %166 = vector.broadcast %cst_64 : f32 to vector<2x32xf32>
    %167 = arith.addf %166, %165 : vector<2x32xf32>
    %168 = arith.divf %166, %167 : vector<2x32xf32>
    %cst_65 = arith.constant 2.000000e+00 : f32
    %169 = vector.broadcast %cst_65 : f32 to vector<2x32xf32>
    %170 = arith.mulf %169, %168 : vector<2x32xf32>
    %cst_66 = arith.constant 1.000000e+00 : f32
    %171 = vector.broadcast %cst_66 : f32 to vector<2x32xf32>
    %172 = arith.subf %170, %171 : vector<2x32xf32>
    %173 = arith.mulf %158, %172 : vector<2x32xf32>
    %cst_67 = arith.constant dense<0.000000e+00> : vector<2x128xf32>
    %174 = tpu.matmul %173, %9, %cst_67 {dimension_numbers = #tpu.dot_dimension_numbers<[1], [0], [0], [1], [0, 0, 1, 1], [], []>} : vector<2x32xf32>, vector<32x128xf32>, vector<2x128xf32> -> vector<2x128xf32>
    %cst_68 = arith.constant dense<0.000000e+00> : vector<2x128xf32>
    %175 = tpu.matmul %141, %10, %cst_68 {dimension_numbers = #tpu.dot_dimension_numbers<[1], [0], [0], [1], [0, 0, 1, 1], [], []>} : vector<2x32xf32>, vector<32x128xf32>, vector<2x128xf32> -> vector<2x128xf32>
    %176 = arith.addf %174, %175 : vector<2x128xf32>
    %177 = arith.addf %176, %13 : vector<2x128xf32>
    %178 = arith.negf %177 : vector<2x128xf32>
    %179 = math.exp %178 : vector<2x128xf32>
    %cst_69 = arith.constant 1.000000e+00 : f32
    %180 = vector.broadcast %cst_69 : f32 to vector<2x128xf32>
    %181 = arith.addf %180, %179 : vector<2x128xf32>
    %182 = arith.divf %180, %181 : vector<2x128xf32>
    %183 = vector.extract_strided_slice %182 {offsets = [0, 0], sizes = [2, 32], strides = [1, 1]} : vector<2x128xf32> to vector<2x32xf32>
    %184 = vector.extract_strided_slice %182 {offsets = [0, 32], sizes = [2, 32], strides = [1, 1]} : vector<2x128xf32> to vector<2x32xf32>
    %185 = vector.extract_strided_slice %182 {offsets = [0, 64], sizes = [2, 32], strides = [1, 1]} : vector<2x128xf32> to vector<2x32xf32>
    %cst_70 = arith.constant 2.000000e+00 : f32
    %186 = vector.broadcast %cst_70 : f32 to vector<2x32xf32>
    %187 = arith.mulf %186, %185 : vector<2x32xf32>
    %cst_71 = arith.constant 1.000000e+00 : f32
    %188 = vector.broadcast %cst_71 : f32 to vector<2x32xf32>
    %189 = arith.subf %187, %188 : vector<2x32xf32>
    %190 = vector.extract_strided_slice %182 {offsets = [0, 96], sizes = [2, 32], strides = [1, 1]} : vector<2x128xf32> to vector<2x32xf32>
    %191 = arith.mulf %184, %129 : vector<2x32xf32>
    %192 = arith.mulf %183, %189 : vector<2x32xf32>
    %193 = arith.addf %191, %192 : vector<2x32xf32>
    %cst_72 = arith.constant 2.000000e+00 : f32
    %194 = vector.broadcast %cst_72 : f32 to vector<2x32xf32>
    %195 = arith.mulf %194, %193 : vector<2x32xf32>
    %196 = arith.negf %195 : vector<2x32xf32>
    %197 = math.exp %196 : vector<2x32xf32>
    %cst_73 = arith.constant 1.000000e+00 : f32
    %198 = vector.broadcast %cst_73 : f32 to vector<2x32xf32>
    %199 = arith.addf %198, %197 : vector<2x32xf32>
    %200 = arith.divf %198, %199 : vector<2x32xf32>
    %cst_74 = arith.constant 2.000000e+00 : f32
    %201 = vector.broadcast %cst_74 : f32 to vector<2x32xf32>
    %202 = arith.mulf %201, %200 : vector<2x32xf32>
    %cst_75 = arith.constant 1.000000e+00 : f32
    %203 = vector.broadcast %cst_75 : f32 to vector<2x32xf32>
    %204 = arith.subf %202, %203 : vector<2x32xf32>
    %205 = arith.mulf %190, %204 : vector<2x32xf32>
    %c4_76 = arith.constant 4 : index
    %c0_77 = arith.constant 0 : index
    %206 = vector.load %arg17[%c4_76, %c0_77] : memref<24x32xf32, #tpu.memory_space<vmem>>, vector<2x32xf32>
    tpu.vector_store %arg17[%c4_76, %c0_77], %205 {strides = array<i32>} : memref<24x32xf32, #tpu.memory_space<vmem>>, vector<2x32xf32>,
    %c6 = arith.constant 6 : index
    %c0_78 = arith.constant 0 : index
    %207 = vector.load %arg16[%c6, %c0_78] : memref<24x128xf32, #tpu.memory_space<vmem>>, vector<2x128xf32>
    %cst_79 = arith.constant dense<0.000000e+00> : vector<2x128xf32>
    %208 = tpu.matmul %173, %8, %cst_79 {dimension_numbers = #tpu.dot_dimension_numbers<[1], [0], [0], [1], [0, 0, 1, 1], [], []>} : vector<2x32xf32>, vector<32x128xf32>, vector<2x128xf32> -> vector<2x128xf32>
    %209 = arith.addf %207, %208 : vector<2x128xf32>
    %210 = arith.negf %209 : vector<2x128xf32>
    %211 = math.exp %210 : vector<2x128xf32>
    %cst_80 = arith.constant 1.000000e+00 : f32
    %212 = vector.broadcast %cst_80 : f32 to vector<2x128xf32>
    %213 = arith.addf %212, %211 : vector<2x128xf32>
    %214 = arith.divf %212, %213 : vector<2x128xf32>
    %215 = vector.extract_strided_slice %214 {offsets = [0, 0], sizes = [2, 32], strides = [1, 1]} : vector<2x128xf32> to vector<2x32xf32>
    %216 = vector.extract_strided_slice %214 {offsets = [0, 32], sizes = [2, 32], strides = [1, 1]} : vector<2x128xf32> to vector<2x32xf32>
    %217 = vector.extract_strided_slice %214 {offsets = [0, 64], sizes = [2, 32], strides = [1, 1]} : vector<2x128xf32> to vector<2x32xf32>
    %cst_81 = arith.constant 2.000000e+00 : f32
    %218 = vector.broadcast %cst_81 : f32 to vector<2x32xf32>
    %219 = arith.mulf %218, %217 : vector<2x32xf32>
    %cst_82 = arith.constant 1.000000e+00 : f32
    %220 = vector.broadcast %cst_82 : f32 to vector<2x32xf32>
    %221 = arith.subf %219, %220 : vector<2x32xf32>
    %222 = vector.extract_strided_slice %214 {offsets = [0, 96], sizes = [2, 32], strides = [1, 1]} : vector<2x128xf32> to vector<2x32xf32>
    %223 = arith.mulf %216, %161 : vector<2x32xf32>
    %224 = arith.mulf %215, %221 : vector<2x32xf32>
    %225 = arith.addf %223, %224 : vector<2x32xf32>
    %cst_83 = arith.constant 2.000000e+00 : f32
    %226 = vector.broadcast %cst_83 : f32 to vector<2x32xf32>
    %227 = arith.mulf %226, %225 : vector<2x32xf32>
    %228 = arith.negf %227 : vector<2x32xf32>
    %229 = math.exp %228 : vector<2x32xf32>
    %cst_84 = arith.constant 1.000000e+00 : f32
    %230 = vector.broadcast %cst_84 : f32 to vector<2x32xf32>
    %231 = arith.addf %230, %229 : vector<2x32xf32>
    %232 = arith.divf %230, %231 : vector<2x32xf32>
    %cst_85 = arith.constant 2.000000e+00 : f32
    %233 = vector.broadcast %cst_85 : f32 to vector<2x32xf32>
    %234 = arith.mulf %233, %232 : vector<2x32xf32>
    %cst_86 = arith.constant 1.000000e+00 : f32
    %235 = vector.broadcast %cst_86 : f32 to vector<2x32xf32>
    %236 = arith.subf %234, %235 : vector<2x32xf32>
    %237 = arith.mulf %222, %236 : vector<2x32xf32>
    %cst_87 = arith.constant dense<0.000000e+00> : vector<2x128xf32>
    %238 = tpu.matmul %237, %9, %cst_87 {dimension_numbers = #tpu.dot_dimension_numbers<[1], [0], [0], [1], [0, 0, 1, 1], [], []>} : vector<2x32xf32>, vector<32x128xf32>, vector<2x128xf32> -> vector<2x128xf32>
    %cst_88 = arith.constant dense<0.000000e+00> : vector<2x128xf32>
    %239 = tpu.matmul %205, %10, %cst_88 {dimension_numbers = #tpu.dot_dimension_numbers<[1], [0], [0], [1], [0, 0, 1, 1], [], []>} : vector<2x32xf32>, vector<32x128xf32>, vector<2x128xf32> -> vector<2x128xf32>
    %240 = arith.addf %238, %239 : vector<2x128xf32>
    %241 = arith.addf %240, %13 : vector<2x128xf32>
    %242 = arith.negf %241 : vector<2x128xf32>
    %243 = math.exp %242 : vector<2x128xf32>
    %cst_89 = arith.constant 1.000000e+00 : f32
    %244 = vector.broadcast %cst_89 : f32 to vector<2x128xf32>
    %245 = arith.addf %244, %243 : vector<2x128xf32>
    %246 = arith.divf %244, %245 : vector<2x128xf32>
    %247 = vector.extract_strided_slice %246 {offsets = [0, 0], sizes = [2, 32], strides = [1, 1]} : vector<2x128xf32> to vector<2x32xf32>
    %248 = vector.extract_strided_slice %246 {offsets = [0, 32], sizes = [2, 32], strides = [1, 1]} : vector<2x128xf32> to vector<2x32xf32>
    %249 = vector.extract_strided_slice %246 {offsets = [0, 64], sizes = [2, 32], strides = [1, 1]} : vector<2x128xf32> to vector<2x32xf32>
    %cst_90 = arith.constant 2.000000e+00 : f32
    %250 = vector.broadcast %cst_90 : f32 to vector<2x32xf32>
    %251 = arith.mulf %250, %249 : vector<2x32xf32>
    %cst_91 = arith.constant 1.000000e+00 : f32
    %252 = vector.broadcast %cst_91 : f32 to vector<2x32xf32>
    %253 = arith.subf %251, %252 : vector<2x32xf32>
    %254 = vector.extract_strided_slice %246 {offsets = [0, 96], sizes = [2, 32], strides = [1, 1]} : vector<2x128xf32> to vector<2x32xf32>
    %255 = arith.mulf %248, %193 : vector<2x32xf32>
    %256 = arith.mulf %247, %253 : vector<2x32xf32>
    %257 = arith.addf %255, %256 : vector<2x32xf32>
    %cst_92 = arith.constant 2.000000e+00 : f32
    %258 = vector.broadcast %cst_92 : f32 to vector<2x32xf32>
    %259 = arith.mulf %258, %257 : vector<2x32xf32>
    %260 = arith.negf %259 : vector<2x32xf32>
    %261 = math.exp %260 : vector<2x32xf32>
    %cst_93 = arith.constant 1.000000e+00 : f32
    %262 = vector.broadcast %cst_93 : f32 to vector<2x32xf32>
    %263 = arith.addf %262, %261 : vector<2x32xf32>
    %264 = arith.divf %262, %263 : vector<2x32xf32>
    %cst_94 = arith.constant 2.000000e+00 : f32
    %265 = vector.broadcast %cst_94 : f32 to vector<2x32xf32>
    %266 = arith.mulf %265, %264 : vector<2x32xf32>
    %cst_95 = arith.constant 1.000000e+00 : f32
    %267 = vector.broadcast %cst_95 : f32 to vector<2x32xf32>
    %268 = arith.subf %266, %267 : vector<2x32xf32>
    %269 = arith.mulf %254, %268 : vector<2x32xf32>
    %c6_96 = arith.constant 6 : index
    %c0_97 = arith.constant 0 : index
    %270 = vector.load %arg17[%c6_96, %c0_97] : memref<24x32xf32, #tpu.memory_space<vmem>>, vector<2x32xf32>
    tpu.vector_store %arg17[%c6_96, %c0_97], %269 {strides = array<i32>} : memref<24x32xf32, #tpu.memory_space<vmem>>, vector<2x32xf32>,
    %c8 = arith.constant 8 : index
    %c0_98 = arith.constant 0 : index
    %271 = vector.load %arg16[%c8, %c0_98] : memref<24x128xf32, #tpu.memory_space<vmem>>, vector<2x128xf32>
    %cst_99 = arith.constant dense<0.000000e+00> : vector<2x128xf32>
    %272 = tpu.matmul %237, %8, %cst_99 {dimension_numbers = #tpu.dot_dimension_numbers<[1], [0], [0], [1], [0, 0, 1, 1], [], []>} : vector<2x32xf32>, vector<32x128xf32>, vector<2x128xf32> -> vector<2x128xf32>
    %273 = arith.addf %271, %272 : vector<2x128xf32>
    %274 = arith.negf %273 : vector<2x128xf32>
    %275 = math.exp %274 : vector<2x128xf32>
    %cst_100 = arith.constant 1.000000e+00 : f32
    %276 = vector.broadcast %cst_100 : f32 to vector<2x128xf32>
    %277 = arith.addf %276, %275 : vector<2x128xf32>
    %278 = arith.divf %276, %277 : vector<2x128xf32>
    %279 = vector.extract_strided_slice %278 {offsets = [0, 0], sizes = [2, 32], strides = [1, 1]} : vector<2x128xf32> to vector<2x32xf32>
    %280 = vector.extract_strided_slice %278 {offsets = [0, 32], sizes = [2, 32], strides = [1, 1]} : vector<2x128xf32> to vector<2x32xf32>
    %281 = vector.extract_strided_slice %278 {offsets = [0, 64], sizes = [2, 32], strides = [1, 1]} : vector<2x128xf32> to vector<2x32xf32>
    %cst_101 = arith.constant 2.000000e+00 : f32
    %282 = vector.broadcast %cst_101 : f32 to vector<2x32xf32>
    %283 = arith.mulf %282, %281 : vector<2x32xf32>
    %cst_102 = arith.constant 1.000000e+00 : f32
    %284 = vector.broadcast %cst_102 : f32 to vector<2x32xf32>
    %285 = arith.subf %283, %284 : vector<2x32xf32>
    %286 = vector.extract_strided_slice %278 {offsets = [0, 96], sizes = [2, 32], strides = [1, 1]} : vector<2x128xf32> to vector<2x32xf32>
    %287 = arith.mulf %280, %225 : vector<2x32xf32>
    %288 = arith.mulf %279, %285 : vector<2x32xf32>
    %289 = arith.addf %287, %288 : vector<2x32xf32>
    %cst_103 = arith.constant 2.000000e+00 : f32
    %290 = vector.broadcast %cst_103 : f32 to vector<2x32xf32>
    %291 = arith.mulf %290, %289 : vector<2x32xf32>
    %292 = arith.negf %291 : vector<2x32xf32>
    %293 = math.exp %292 : vector<2x32xf32>
    %cst_104 = arith.constant 1.000000e+00 : f32
    %294 = vector.broadcast %cst_104 : f32 to vector<2x32xf32>
    %295 = arith.addf %294, %293 : vector<2x32xf32>
    %296 = arith.divf %294, %295 : vector<2x32xf32>
    %cst_105 = arith.constant 2.000000e+00 : f32
    %297 = vector.broadcast %cst_105 : f32 to vector<2x32xf32>
    %298 = arith.mulf %297, %296 : vector<2x32xf32>
    %cst_106 = arith.constant 1.000000e+00 : f32
    %299 = vector.broadcast %cst_106 : f32 to vector<2x32xf32>
    %300 = arith.subf %298, %299 : vector<2x32xf32>
    %301 = arith.mulf %286, %300 : vector<2x32xf32>
    %cst_107 = arith.constant dense<0.000000e+00> : vector<2x128xf32>
    %302 = tpu.matmul %301, %9, %cst_107 {dimension_numbers = #tpu.dot_dimension_numbers<[1], [0], [0], [1], [0, 0, 1, 1], [], []>} : vector<2x32xf32>, vector<32x128xf32>, vector<2x128xf32> -> vector<2x128xf32>
    %cst_108 = arith.constant dense<0.000000e+00> : vector<2x128xf32>
    %303 = tpu.matmul %269, %10, %cst_108 {dimension_numbers = #tpu.dot_dimension_numbers<[1], [0], [0], [1], [0, 0, 1, 1], [], []>} : vector<2x32xf32>, vector<32x128xf32>, vector<2x128xf32> -> vector<2x128xf32>
    %304 = arith.addf %302, %303 : vector<2x128xf32>
    %305 = arith.addf %304, %13 : vector<2x128xf32>
    %306 = arith.negf %305 : vector<2x128xf32>
    %307 = math.exp %306 : vector<2x128xf32>
    %cst_109 = arith.constant 1.000000e+00 : f32
    %308 = vector.broadcast %cst_109 : f32 to vector<2x128xf32>
    %309 = arith.addf %308, %307 : vector<2x128xf32>
    %310 = arith.divf %308, %309 : vector<2x128xf32>
    %311 = vector.extract_strided_slice %310 {offsets = [0, 0], sizes = [2, 32], strides = [1, 1]} : vector<2x128xf32> to vector<2x32xf32>
    %312 = vector.extract_strided_slice %310 {offsets = [0, 32], sizes = [2, 32], strides = [1, 1]} : vector<2x128xf32> to vector<2x32xf32>
    %313 = vector.extract_strided_slice %310 {offsets = [0, 64], sizes = [2, 32], strides = [1, 1]} : vector<2x128xf32> to vector<2x32xf32>
    %cst_110 = arith.constant 2.000000e+00 : f32
    %314 = vector.broadcast %cst_110 : f32 to vector<2x32xf32>
    %315 = arith.mulf %314, %313 : vector<2x32xf32>
    %cst_111 = arith.constant 1.000000e+00 : f32
    %316 = vector.broadcast %cst_111 : f32 to vector<2x32xf32>
    %317 = arith.subf %315, %316 : vector<2x32xf32>
    %318 = vector.extract_strided_slice %310 {offsets = [0, 96], sizes = [2, 32], strides = [1, 1]} : vector<2x128xf32> to vector<2x32xf32>
    %319 = arith.mulf %312, %257 : vector<2x32xf32>
    %320 = arith.mulf %311, %317 : vector<2x32xf32>
    %321 = arith.addf %319, %320 : vector<2x32xf32>
    %cst_112 = arith.constant 2.000000e+00 : f32
    %322 = vector.broadcast %cst_112 : f32 to vector<2x32xf32>
    %323 = arith.mulf %322, %321 : vector<2x32xf32>
    %324 = arith.negf %323 : vector<2x32xf32>
    %325 = math.exp %324 : vector<2x32xf32>
    %cst_113 = arith.constant 1.000000e+00 : f32
    %326 = vector.broadcast %cst_113 : f32 to vector<2x32xf32>
    %327 = arith.addf %326, %325 : vector<2x32xf32>
    %328 = arith.divf %326, %327 : vector<2x32xf32>
    %cst_114 = arith.constant 2.000000e+00 : f32
    %329 = vector.broadcast %cst_114 : f32 to vector<2x32xf32>
    %330 = arith.mulf %329, %328 : vector<2x32xf32>
    %cst_115 = arith.constant 1.000000e+00 : f32
    %331 = vector.broadcast %cst_115 : f32 to vector<2x32xf32>
    %332 = arith.subf %330, %331 : vector<2x32xf32>
    %333 = arith.mulf %318, %332 : vector<2x32xf32>
    %c8_116 = arith.constant 8 : index
    %c0_117 = arith.constant 0 : index
    %334 = vector.load %arg17[%c8_116, %c0_117] : memref<24x32xf32, #tpu.memory_space<vmem>>, vector<2x32xf32>
    tpu.vector_store %arg17[%c8_116, %c0_117], %333 {strides = array<i32>} : memref<24x32xf32, #tpu.memory_space<vmem>>, vector<2x32xf32>,
    %c10 = arith.constant 10 : index
    %c0_118 = arith.constant 0 : index
    %335 = vector.load %arg16[%c10, %c0_118] : memref<24x128xf32, #tpu.memory_space<vmem>>, vector<2x128xf32>
    %cst_119 = arith.constant dense<0.000000e+00> : vector<2x128xf32>
    %336 = tpu.matmul %301, %8, %cst_119 {dimension_numbers = #tpu.dot_dimension_numbers<[1], [0], [0], [1], [0, 0, 1, 1], [], []>} : vector<2x32xf32>, vector<32x128xf32>, vector<2x128xf32> -> vector<2x128xf32>
    %337 = arith.addf %335, %336 : vector<2x128xf32>
    %338 = arith.negf %337 : vector<2x128xf32>
    %339 = math.exp %338 : vector<2x128xf32>
    %cst_120 = arith.constant 1.000000e+00 : f32
    %340 = vector.broadcast %cst_120 : f32 to vector<2x128xf32>
    %341 = arith.addf %340, %339 : vector<2x128xf32>
    %342 = arith.divf %340, %341 : vector<2x128xf32>
    %343 = vector.extract_strided_slice %342 {offsets = [0, 0], sizes = [2, 32], strides = [1, 1]} : vector<2x128xf32> to vector<2x32xf32>
    %344 = vector.extract_strided_slice %342 {offsets = [0, 32], sizes = [2, 32], strides = [1, 1]} : vector<2x128xf32> to vector<2x32xf32>
    %345 = vector.extract_strided_slice %342 {offsets = [0, 64], sizes = [2, 32], strides = [1, 1]} : vector<2x128xf32> to vector<2x32xf32>
    %cst_121 = arith.constant 2.000000e+00 : f32
    %346 = vector.broadcast %cst_121 : f32 to vector<2x32xf32>
    %347 = arith.mulf %346, %345 : vector<2x32xf32>
    %cst_122 = arith.constant 1.000000e+00 : f32
    %348 = vector.broadcast %cst_122 : f32 to vector<2x32xf32>
    %349 = arith.subf %347, %348 : vector<2x32xf32>
    %350 = vector.extract_strided_slice %342 {offsets = [0, 96], sizes = [2, 32], strides = [1, 1]} : vector<2x128xf32> to vector<2x32xf32>
    %351 = arith.mulf %344, %289 : vector<2x32xf32>
    %352 = arith.mulf %343, %349 : vector<2x32xf32>
    %353 = arith.addf %351, %352 : vector<2x32xf32>
    %cst_123 = arith.constant 2.000000e+00 : f32
    %354 = vector.broadcast %cst_123 : f32 to vector<2x32xf32>
    %355 = arith.mulf %354, %353 : vector<2x32xf32>
    %356 = arith.negf %355 : vector<2x32xf32>
    %357 = math.exp %356 : vector<2x32xf32>
    %cst_124 = arith.constant 1.000000e+00 : f32
    %358 = vector.broadcast %cst_124 : f32 to vector<2x32xf32>
    %359 = arith.addf %358, %357 : vector<2x32xf32>
    %360 = arith.divf %358, %359 : vector<2x32xf32>
    %cst_125 = arith.constant 2.000000e+00 : f32
    %361 = vector.broadcast %cst_125 : f32 to vector<2x32xf32>
    %362 = arith.mulf %361, %360 : vector<2x32xf32>
    %cst_126 = arith.constant 1.000000e+00 : f32
    %363 = vector.broadcast %cst_126 : f32 to vector<2x32xf32>
    %364 = arith.subf %362, %363 : vector<2x32xf32>
    %365 = arith.mulf %350, %364 : vector<2x32xf32>
    %cst_127 = arith.constant dense<0.000000e+00> : vector<2x128xf32>
    %366 = tpu.matmul %365, %9, %cst_127 {dimension_numbers = #tpu.dot_dimension_numbers<[1], [0], [0], [1], [0, 0, 1, 1], [], []>} : vector<2x32xf32>, vector<32x128xf32>, vector<2x128xf32> -> vector<2x128xf32>
    %cst_128 = arith.constant dense<0.000000e+00> : vector<2x128xf32>
    %367 = tpu.matmul %333, %10, %cst_128 {dimension_numbers = #tpu.dot_dimension_numbers<[1], [0], [0], [1], [0, 0, 1, 1], [], []>} : vector<2x32xf32>, vector<32x128xf32>, vector<2x128xf32> -> vector<2x128xf32>
    %368 = arith.addf %366, %367 : vector<2x128xf32>
    %369 = arith.addf %368, %13 : vector<2x128xf32>
    %370 = arith.negf %369 : vector<2x128xf32>
    %371 = math.exp %370 : vector<2x128xf32>
    %cst_129 = arith.constant 1.000000e+00 : f32
    %372 = vector.broadcast %cst_129 : f32 to vector<2x128xf32>
    %373 = arith.addf %372, %371 : vector<2x128xf32>
    %374 = arith.divf %372, %373 : vector<2x128xf32>
    %375 = vector.extract_strided_slice %374 {offsets = [0, 0], sizes = [2, 32], strides = [1, 1]} : vector<2x128xf32> to vector<2x32xf32>
    %376 = vector.extract_strided_slice %374 {offsets = [0, 32], sizes = [2, 32], strides = [1, 1]} : vector<2x128xf32> to vector<2x32xf32>
    %377 = vector.extract_strided_slice %374 {offsets = [0, 64], sizes = [2, 32], strides = [1, 1]} : vector<2x128xf32> to vector<2x32xf32>
    %cst_130 = arith.constant 2.000000e+00 : f32
    %378 = vector.broadcast %cst_130 : f32 to vector<2x32xf32>
    %379 = arith.mulf %378, %377 : vector<2x32xf32>
    %cst_131 = arith.constant 1.000000e+00 : f32
    %380 = vector.broadcast %cst_131 : f32 to vector<2x32xf32>
    %381 = arith.subf %379, %380 : vector<2x32xf32>
    %382 = vector.extract_strided_slice %374 {offsets = [0, 96], sizes = [2, 32], strides = [1, 1]} : vector<2x128xf32> to vector<2x32xf32>
    %383 = arith.mulf %376, %321 : vector<2x32xf32>
    %384 = arith.mulf %375, %381 : vector<2x32xf32>
    %385 = arith.addf %383, %384 : vector<2x32xf32>
    %cst_132 = arith.constant 2.000000e+00 : f32
    %386 = vector.broadcast %cst_132 : f32 to vector<2x32xf32>
    %387 = arith.mulf %386, %385 : vector<2x32xf32>
    %388 = arith.negf %387 : vector<2x32xf32>
    %389 = math.exp %388 : vector<2x32xf32>
    %cst_133 = arith.constant 1.000000e+00 : f32
    %390 = vector.broadcast %cst_133 : f32 to vector<2x32xf32>
    %391 = arith.addf %390, %389 : vector<2x32xf32>
    %392 = arith.divf %390, %391 : vector<2x32xf32>
    %cst_134 = arith.constant 2.000000e+00 : f32
    %393 = vector.broadcast %cst_134 : f32 to vector<2x32xf32>
    %394 = arith.mulf %393, %392 : vector<2x32xf32>
    %cst_135 = arith.constant 1.000000e+00 : f32
    %395 = vector.broadcast %cst_135 : f32 to vector<2x32xf32>
    %396 = arith.subf %394, %395 : vector<2x32xf32>
    %397 = arith.mulf %382, %396 : vector<2x32xf32>
    %c10_136 = arith.constant 10 : index
    %c0_137 = arith.constant 0 : index
    %398 = vector.load %arg17[%c10_136, %c0_137] : memref<24x32xf32, #tpu.memory_space<vmem>>, vector<2x32xf32>
    tpu.vector_store %arg17[%c10_136, %c0_137], %397 {strides = array<i32>} : memref<24x32xf32, #tpu.memory_space<vmem>>, vector<2x32xf32>,
    %c12 = arith.constant 12 : index
    %c0_138 = arith.constant 0 : index
    %399 = vector.load %arg16[%c12, %c0_138] : memref<24x128xf32, #tpu.memory_space<vmem>>, vector<2x128xf32>
    %cst_139 = arith.constant dense<0.000000e+00> : vector<2x128xf32>
    %400 = tpu.matmul %365, %8, %cst_139 {dimension_numbers = #tpu.dot_dimension_numbers<[1], [0], [0], [1], [0, 0, 1, 1], [], []>} : vector<2x32xf32>, vector<32x128xf32>, vector<2x128xf32> -> vector<2x128xf32>
    %401 = arith.addf %399, %400 : vector<2x128xf32>
    %402 = arith.negf %401 : vector<2x128xf32>
    %403 = math.exp %402 : vector<2x128xf32>
    %cst_140 = arith.constant 1.000000e+00 : f32
    %404 = vector.broadcast %cst_140 : f32 to vector<2x128xf32>
    %405 = arith.addf %404, %403 : vector<2x128xf32>
    %406 = arith.divf %404, %405 : vector<2x128xf32>
    %407 = vector.extract_strided_slice %406 {offsets = [0, 0], sizes = [2, 32], strides = [1, 1]} : vector<2x128xf32> to vector<2x32xf32>
    %408 = vector.extract_strided_slice %406 {offsets = [0, 32], sizes = [2, 32], strides = [1, 1]} : vector<2x128xf32> to vector<2x32xf32>
    %409 = vector.extract_strided_slice %406 {offsets = [0, 64], sizes = [2, 32], strides = [1, 1]} : vector<2x128xf32> to vector<2x32xf32>
    %cst_141 = arith.constant 2.000000e+00 : f32
    %410 = vector.broadcast %cst_141 : f32 to vector<2x32xf32>
    %411 = arith.mulf %410, %409 : vector<2x32xf32>
    %cst_142 = arith.constant 1.000000e+00 : f32
    %412 = vector.broadcast %cst_142 : f32 to vector<2x32xf32>
    %413 = arith.subf %411, %412 : vector<2x32xf32>
    %414 = vector.extract_strided_slice %406 {offsets = [0, 96], sizes = [2, 32], strides = [1, 1]} : vector<2x128xf32> to vector<2x32xf32>
    %415 = arith.mulf %408, %353 : vector<2x32xf32>
    %416 = arith.mulf %407, %413 : vector<2x32xf32>
    %417 = arith.addf %415, %416 : vector<2x32xf32>
    %cst_143 = arith.constant 2.000000e+00 : f32
    %418 = vector.broadcast %cst_143 : f32 to vector<2x32xf32>
    %419 = arith.mulf %418, %417 : vector<2x32xf32>
    %420 = arith.negf %419 : vector<2x32xf32>
    %421 = math.exp %420 : vector<2x32xf32>
    %cst_144 = arith.constant 1.000000e+00 : f32
    %422 = vector.broadcast %cst_144 : f32 to vector<2x32xf32>
    %423 = arith.addf %422, %421 : vector<2x32xf32>
    %424 = arith.divf %422, %423 : vector<2x32xf32>
    %cst_145 = arith.constant 2.000000e+00 : f32
    %425 = vector.broadcast %cst_145 : f32 to vector<2x32xf32>
    %426 = arith.mulf %425, %424 : vector<2x32xf32>
    %cst_146 = arith.constant 1.000000e+00 : f32
    %427 = vector.broadcast %cst_146 : f32 to vector<2x32xf32>
    %428 = arith.subf %426, %427 : vector<2x32xf32>
    %429 = arith.mulf %414, %428 : vector<2x32xf32>
    %cst_147 = arith.constant dense<0.000000e+00> : vector<2x128xf32>
    %430 = tpu.matmul %429, %9, %cst_147 {dimension_numbers = #tpu.dot_dimension_numbers<[1], [0], [0], [1], [0, 0, 1, 1], [], []>} : vector<2x32xf32>, vector<32x128xf32>, vector<2x128xf32> -> vector<2x128xf32>
    %cst_148 = arith.constant dense<0.000000e+00> : vector<2x128xf32>
    %431 = tpu.matmul %397, %10, %cst_148 {dimension_numbers = #tpu.dot_dimension_numbers<[1], [0], [0], [1], [0, 0, 1, 1], [], []>} : vector<2x32xf32>, vector<32x128xf32>, vector<2x128xf32> -> vector<2x128xf32>
    %432 = arith.addf %430, %431 : vector<2x128xf32>
    %433 = arith.addf %432, %13 : vector<2x128xf32>
    %434 = arith.negf %433 : vector<2x128xf32>
    %435 = math.exp %434 : vector<2x128xf32>
    %cst_149 = arith.constant 1.000000e+00 : f32
    %436 = vector.broadcast %cst_149 : f32 to vector<2x128xf32>
    %437 = arith.addf %436, %435 : vector<2x128xf32>
    %438 = arith.divf %436, %437 : vector<2x128xf32>
    %439 = vector.extract_strided_slice %438 {offsets = [0, 0], sizes = [2, 32], strides = [1, 1]} : vector<2x128xf32> to vector<2x32xf32>
    %440 = vector.extract_strided_slice %438 {offsets = [0, 32], sizes = [2, 32], strides = [1, 1]} : vector<2x128xf32> to vector<2x32xf32>
    %441 = vector.extract_strided_slice %438 {offsets = [0, 64], sizes = [2, 32], strides = [1, 1]} : vector<2x128xf32> to vector<2x32xf32>
    %cst_150 = arith.constant 2.000000e+00 : f32
    %442 = vector.broadcast %cst_150 : f32 to vector<2x32xf32>
    %443 = arith.mulf %442, %441 : vector<2x32xf32>
    %cst_151 = arith.constant 1.000000e+00 : f32
    %444 = vector.broadcast %cst_151 : f32 to vector<2x32xf32>
    %445 = arith.subf %443, %444 : vector<2x32xf32>
    %446 = vector.extract_strided_slice %438 {offsets = [0, 96], sizes = [2, 32], strides = [1, 1]} : vector<2x128xf32> to vector<2x32xf32>
    %447 = arith.mulf %440, %385 : vector<2x32xf32>
    %448 = arith.mulf %439, %445 : vector<2x32xf32>
    %449 = arith.addf %447, %448 : vector<2x32xf32>
    %cst_152 = arith.constant 2.000000e+00 : f32
    %450 = vector.broadcast %cst_152 : f32 to vector<2x32xf32>
    %451 = arith.mulf %450, %449 : vector<2x32xf32>
    %452 = arith.negf %451 : vector<2x32xf32>
    %453 = math.exp %452 : vector<2x32xf32>
    %cst_153 = arith.constant 1.000000e+00 : f32
    %454 = vector.broadcast %cst_153 : f32 to vector<2x32xf32>
    %455 = arith.addf %454, %453 : vector<2x32xf32>
    %456 = arith.divf %454, %455 : vector<2x32xf32>
    %cst_154 = arith.constant 2.000000e+00 : f32
    %457 = vector.broadcast %cst_154 : f32 to vector<2x32xf32>
    %458 = arith.mulf %457, %456 : vector<2x32xf32>
    %cst_155 = arith.constant 1.000000e+00 : f32
    %459 = vector.broadcast %cst_155 : f32 to vector<2x32xf32>
    %460 = arith.subf %458, %459 : vector<2x32xf32>
    %461 = arith.mulf %446, %460 : vector<2x32xf32>
    %c12_156 = arith.constant 12 : index
    %c0_157 = arith.constant 0 : index
    %462 = vector.load %arg17[%c12_156, %c0_157] : memref<24x32xf32, #tpu.memory_space<vmem>>, vector<2x32xf32>
    tpu.vector_store %arg17[%c12_156, %c0_157], %461 {strides = array<i32>} : memref<24x32xf32, #tpu.memory_space<vmem>>, vector<2x32xf32>,
    %c14 = arith.constant 14 : index
    %c0_158 = arith.constant 0 : index
    %463 = vector.load %arg16[%c14, %c0_158] : memref<24x128xf32, #tpu.memory_space<vmem>>, vector<2x128xf32>
    %cst_159 = arith.constant dense<0.000000e+00> : vector<2x128xf32>
    %464 = tpu.matmul %429, %8, %cst_159 {dimension_numbers = #tpu.dot_dimension_numbers<[1], [0], [0], [1], [0, 0, 1, 1], [], []>} : vector<2x32xf32>, vector<32x128xf32>, vector<2x128xf32> -> vector<2x128xf32>
    %465 = arith.addf %463, %464 : vector<2x128xf32>
    %466 = arith.negf %465 : vector<2x128xf32>
    %467 = math.exp %466 : vector<2x128xf32>
    %cst_160 = arith.constant 1.000000e+00 : f32
    %468 = vector.broadcast %cst_160 : f32 to vector<2x128xf32>
    %469 = arith.addf %468, %467 : vector<2x128xf32>
    %470 = arith.divf %468, %469 : vector<2x128xf32>
    %471 = vector.extract_strided_slice %470 {offsets = [0, 0], sizes = [2, 32], strides = [1, 1]} : vector<2x128xf32> to vector<2x32xf32>
    %472 = vector.extract_strided_slice %470 {offsets = [0, 32], sizes = [2, 32], strides = [1, 1]} : vector<2x128xf32> to vector<2x32xf32>
    %473 = vector.extract_strided_slice %470 {offsets = [0, 64], sizes = [2, 32], strides = [1, 1]} : vector<2x128xf32> to vector<2x32xf32>
    %cst_161 = arith.constant 2.000000e+00 : f32
    %474 = vector.broadcast %cst_161 : f32 to vector<2x32xf32>
    %475 = arith.mulf %474, %473 : vector<2x32xf32>
    %cst_162 = arith.constant 1.000000e+00 : f32
    %476 = vector.broadcast %cst_162 : f32 to vector<2x32xf32>
    %477 = arith.subf %475, %476 : vector<2x32xf32>
    %478 = vector.extract_strided_slice %470 {offsets = [0, 96], sizes = [2, 32], strides = [1, 1]} : vector<2x128xf32> to vector<2x32xf32>
    %479 = arith.mulf %472, %417 : vector<2x32xf32>
    %480 = arith.mulf %471, %477 : vector<2x32xf32>
    %481 = arith.addf %479, %480 : vector<2x32xf32>
    %cst_163 = arith.constant 2.000000e+00 : f32
    %482 = vector.broadcast %cst_163 : f32 to vector<2x32xf32>
    %483 = arith.mulf %482, %481 : vector<2x32xf32>
    %484 = arith.negf %483 : vector<2x32xf32>
    %485 = math.exp %484 : vector<2x32xf32>
    %cst_164 = arith.constant 1.000000e+00 : f32
    %486 = vector.broadcast %cst_164 : f32 to vector<2x32xf32>
    %487 = arith.addf %486, %485 : vector<2x32xf32>
    %488 = arith.divf %486, %487 : vector<2x32xf32>
    %cst_165 = arith.constant 2.000000e+00 : f32
    %489 = vector.broadcast %cst_165 : f32 to vector<2x32xf32>
    %490 = arith.mulf %489, %488 : vector<2x32xf32>
    %cst_166 = arith.constant 1.000000e+00 : f32
    %491 = vector.broadcast %cst_166 : f32 to vector<2x32xf32>
    %492 = arith.subf %490, %491 : vector<2x32xf32>
    %493 = arith.mulf %478, %492 : vector<2x32xf32>
    %cst_167 = arith.constant dense<0.000000e+00> : vector<2x128xf32>
    %494 = tpu.matmul %493, %9, %cst_167 {dimension_numbers = #tpu.dot_dimension_numbers<[1], [0], [0], [1], [0, 0, 1, 1], [], []>} : vector<2x32xf32>, vector<32x128xf32>, vector<2x128xf32> -> vector<2x128xf32>
    %cst_168 = arith.constant dense<0.000000e+00> : vector<2x128xf32>
    %495 = tpu.matmul %461, %10, %cst_168 {dimension_numbers = #tpu.dot_dimension_numbers<[1], [0], [0], [1], [0, 0, 1, 1], [], []>} : vector<2x32xf32>, vector<32x128xf32>, vector<2x128xf32> -> vector<2x128xf32>
    %496 = arith.addf %494, %495 : vector<2x128xf32>
    %497 = arith.addf %496, %13 : vector<2x128xf32>
    %498 = arith.negf %497 : vector<2x128xf32>
    %499 = math.exp %498 : vector<2x128xf32>
    %cst_169 = arith.constant 1.000000e+00 : f32
    %500 = vector.broadcast %cst_169 : f32 to vector<2x128xf32>
    %501 = arith.addf %500, %499 : vector<2x128xf32>
    %502 = arith.divf %500, %501 : vector<2x128xf32>
    %503 = vector.extract_strided_slice %502 {offsets = [0, 0], sizes = [2, 32], strides = [1, 1]} : vector<2x128xf32> to vector<2x32xf32>
    %504 = vector.extract_strided_slice %502 {offsets = [0, 32], sizes = [2, 32], strides = [1, 1]} : vector<2x128xf32> to vector<2x32xf32>
    %505 = vector.extract_strided_slice %502 {offsets = [0, 64], sizes = [2, 32], strides = [1, 1]} : vector<2x128xf32> to vector<2x32xf32>
    %cst_170 = arith.constant 2.000000e+00 : f32
    %506 = vector.broadcast %cst_170 : f32 to vector<2x32xf32>
    %507 = arith.mulf %506, %505 : vector<2x32xf32>
    %cst_171 = arith.constant 1.000000e+00 : f32
    %508 = vector.broadcast %cst_171 : f32 to vector<2x32xf32>
    %509 = arith.subf %507, %508 : vector<2x32xf32>
    %510 = vector.extract_strided_slice %502 {offsets = [0, 96], sizes = [2, 32], strides = [1, 1]} : vector<2x128xf32> to vector<2x32xf32>
    %511 = arith.mulf %504, %449 : vector<2x32xf32>
    %512 = arith.mulf %503, %509 : vector<2x32xf32>
    %513 = arith.addf %511, %512 : vector<2x32xf32>
    %cst_172 = arith.constant 2.000000e+00 : f32
    %514 = vector.broadcast %cst_172 : f32 to vector<2x32xf32>
    %515 = arith.mulf %514, %513 : vector<2x32xf32>
    %516 = arith.negf %515 : vector<2x32xf32>
    %517 = math.exp %516 : vector<2x32xf32>
    %cst_173 = arith.constant 1.000000e+00 : f32
    %518 = vector.broadcast %cst_173 : f32 to vector<2x32xf32>
    %519 = arith.addf %518, %517 : vector<2x32xf32>
    %520 = arith.divf %518, %519 : vector<2x32xf32>
    %cst_174 = arith.constant 2.000000e+00 : f32
    %521 = vector.broadcast %cst_174 : f32 to vector<2x32xf32>
    %522 = arith.mulf %521, %520 : vector<2x32xf32>
    %cst_175 = arith.constant 1.000000e+00 : f32
    %523 = vector.broadcast %cst_175 : f32 to vector<2x32xf32>
    %524 = arith.subf %522, %523 : vector<2x32xf32>
    %525 = arith.mulf %510, %524 : vector<2x32xf32>
    %c14_176 = arith.constant 14 : index
    %c0_177 = arith.constant 0 : index
    %526 = vector.load %arg17[%c14_176, %c0_177] : memref<24x32xf32, #tpu.memory_space<vmem>>, vector<2x32xf32>
    tpu.vector_store %arg17[%c14_176, %c0_177], %525 {strides = array<i32>} : memref<24x32xf32, #tpu.memory_space<vmem>>, vector<2x32xf32>,
    %c16 = arith.constant 16 : index
    %c0_178 = arith.constant 0 : index
    %527 = vector.load %arg16[%c16, %c0_178] : memref<24x128xf32, #tpu.memory_space<vmem>>, vector<2x128xf32>
    %cst_179 = arith.constant dense<0.000000e+00> : vector<2x128xf32>
    %528 = tpu.matmul %493, %8, %cst_179 {dimension_numbers = #tpu.dot_dimension_numbers<[1], [0], [0], [1], [0, 0, 1, 1], [], []>} : vector<2x32xf32>, vector<32x128xf32>, vector<2x128xf32> -> vector<2x128xf32>
    %529 = arith.addf %527, %528 : vector<2x128xf32>
    %530 = arith.negf %529 : vector<2x128xf32>
    %531 = math.exp %530 : vector<2x128xf32>
    %cst_180 = arith.constant 1.000000e+00 : f32
    %532 = vector.broadcast %cst_180 : f32 to vector<2x128xf32>
    %533 = arith.addf %532, %531 : vector<2x128xf32>
    %534 = arith.divf %532, %533 : vector<2x128xf32>
    %535 = vector.extract_strided_slice %534 {offsets = [0, 0], sizes = [2, 32], strides = [1, 1]} : vector<2x128xf32> to vector<2x32xf32>
    %536 = vector.extract_strided_slice %534 {offsets = [0, 32], sizes = [2, 32], strides = [1, 1]} : vector<2x128xf32> to vector<2x32xf32>
    %537 = vector.extract_strided_slice %534 {offsets = [0, 64], sizes = [2, 32], strides = [1, 1]} : vector<2x128xf32> to vector<2x32xf32>
    %cst_181 = arith.constant 2.000000e+00 : f32
    %538 = vector.broadcast %cst_181 : f32 to vector<2x32xf32>
    %539 = arith.mulf %538, %537 : vector<2x32xf32>
    %cst_182 = arith.constant 1.000000e+00 : f32
    %540 = vector.broadcast %cst_182 : f32 to vector<2x32xf32>
    %541 = arith.subf %539, %540 : vector<2x32xf32>
    %542 = vector.extract_strided_slice %534 {offsets = [0, 96], sizes = [2, 32], strides = [1, 1]} : vector<2x128xf32> to vector<2x32xf32>
    %543 = arith.mulf %536, %481 : vector<2x32xf32>
    %544 = arith.mulf %535, %541 : vector<2x32xf32>
    %545 = arith.addf %543, %544 : vector<2x32xf32>
    %cst_183 = arith.constant 2.000000e+00 : f32
    %546 = vector.broadcast %cst_183 : f32 to vector<2x32xf32>
    %547 = arith.mulf %546, %545 : vector<2x32xf32>
    %548 = arith.negf %547 : vector<2x32xf32>
    %549 = math.exp %548 : vector<2x32xf32>
    %cst_184 = arith.constant 1.000000e+00 : f32
    %550 = vector.broadcast %cst_184 : f32 to vector<2x32xf32>
    %551 = arith.addf %550, %549 : vector<2x32xf32>
    %552 = arith.divf %550, %551 : vector<2x32xf32>
    %cst_185 = arith.constant 2.000000e+00 : f32
    %553 = vector.broadcast %cst_185 : f32 to vector<2x32xf32>
    %554 = arith.mulf %553, %552 : vector<2x32xf32>
    %cst_186 = arith.constant 1.000000e+00 : f32
    %555 = vector.broadcast %cst_186 : f32 to vector<2x32xf32>
    %556 = arith.subf %554, %555 : vector<2x32xf32>
    %557 = arith.mulf %542, %556 : vector<2x32xf32>
    %cst_187 = arith.constant dense<0.000000e+00> : vector<2x128xf32>
    %558 = tpu.matmul %557, %9, %cst_187 {dimension_numbers = #tpu.dot_dimension_numbers<[1], [0], [0], [1], [0, 0, 1, 1], [], []>} : vector<2x32xf32>, vector<32x128xf32>, vector<2x128xf32> -> vector<2x128xf32>
    %cst_188 = arith.constant dense<0.000000e+00> : vector<2x128xf32>
    %559 = tpu.matmul %525, %10, %cst_188 {dimension_numbers = #tpu.dot_dimension_numbers<[1], [0], [0], [1], [0, 0, 1, 1], [], []>} : vector<2x32xf32>, vector<32x128xf32>, vector<2x128xf32> -> vector<2x128xf32>
    %560 = arith.addf %558, %559 : vector<2x128xf32>
    %561 = arith.addf %560, %13 : vector<2x128xf32>
    %562 = arith.negf %561 : vector<2x128xf32>
    %563 = math.exp %562 : vector<2x128xf32>
    %cst_189 = arith.constant 1.000000e+00 : f32
    %564 = vector.broadcast %cst_189 : f32 to vector<2x128xf32>
    %565 = arith.addf %564, %563 : vector<2x128xf32>
    %566 = arith.divf %564, %565 : vector<2x128xf32>
    %567 = vector.extract_strided_slice %566 {offsets = [0, 0], sizes = [2, 32], strides = [1, 1]} : vector<2x128xf32> to vector<2x32xf32>
    %568 = vector.extract_strided_slice %566 {offsets = [0, 32], sizes = [2, 32], strides = [1, 1]} : vector<2x128xf32> to vector<2x32xf32>
    %569 = vector.extract_strided_slice %566 {offsets = [0, 64], sizes = [2, 32], strides = [1, 1]} : vector<2x128xf32> to vector<2x32xf32>
    %cst_190 = arith.constant 2.000000e+00 : f32
    %570 = vector.broadcast %cst_190 : f32 to vector<2x32xf32>
    %571 = arith.mulf %570, %569 : vector<2x32xf32>
    %cst_191 = arith.constant 1.000000e+00 : f32
    %572 = vector.broadcast %cst_191 : f32 to vector<2x32xf32>
    %573 = arith.subf %571, %572 : vector<2x32xf32>
    %574 = vector.extract_strided_slice %566 {offsets = [0, 96], sizes = [2, 32], strides = [1, 1]} : vector<2x128xf32> to vector<2x32xf32>
    %575 = arith.mulf %568, %513 : vector<2x32xf32>
    %576 = arith.mulf %567, %573 : vector<2x32xf32>
    %577 = arith.addf %575, %576 : vector<2x32xf32>
    %cst_192 = arith.constant 2.000000e+00 : f32
    %578 = vector.broadcast %cst_192 : f32 to vector<2x32xf32>
    %579 = arith.mulf %578, %577 : vector<2x32xf32>
    %580 = arith.negf %579 : vector<2x32xf32>
    %581 = math.exp %580 : vector<2x32xf32>
    %cst_193 = arith.constant 1.000000e+00 : f32
    %582 = vector.broadcast %cst_193 : f32 to vector<2x32xf32>
    %583 = arith.addf %582, %581 : vector<2x32xf32>
    %584 = arith.divf %582, %583 : vector<2x32xf32>
    %cst_194 = arith.constant 2.000000e+00 : f32
    %585 = vector.broadcast %cst_194 : f32 to vector<2x32xf32>
    %586 = arith.mulf %585, %584 : vector<2x32xf32>
    %cst_195 = arith.constant 1.000000e+00 : f32
    %587 = vector.broadcast %cst_195 : f32 to vector<2x32xf32>
    %588 = arith.subf %586, %587 : vector<2x32xf32>
    %589 = arith.mulf %574, %588 : vector<2x32xf32>
    %c16_196 = arith.constant 16 : index
    %c0_197 = arith.constant 0 : index
    %590 = vector.load %arg17[%c16_196, %c0_197] : memref<24x32xf32, #tpu.memory_space<vmem>>, vector<2x32xf32>
    tpu.vector_store %arg17[%c16_196, %c0_197], %589 {strides = array<i32>} : memref<24x32xf32, #tpu.memory_space<vmem>>, vector<2x32xf32>,
    %c18 = arith.constant 18 : index
    %c0_198 = arith.constant 0 : index
    %591 = vector.load %arg16[%c18, %c0_198] : memref<24x128xf32, #tpu.memory_space<vmem>>, vector<2x128xf32>
    %cst_199 = arith.constant dense<0.000000e+00> : vector<2x128xf32>
    %592 = tpu.matmul %557, %8, %cst_199 {dimension_numbers = #tpu.dot_dimension_numbers<[1], [0], [0], [1], [0, 0, 1, 1], [], []>} : vector<2x32xf32>, vector<32x128xf32>, vector<2x128xf32> -> vector<2x128xf32>
    %593 = arith.addf %591, %592 : vector<2x128xf32>
    %594 = arith.negf %593 : vector<2x128xf32>
    %595 = math.exp %594 : vector<2x128xf32>
    %cst_200 = arith.constant 1.000000e+00 : f32
    %596 = vector.broadcast %cst_200 : f32 to vector<2x128xf32>
    %597 = arith.addf %596, %595 : vector<2x128xf32>
    %598 = arith.divf %596, %597 : vector<2x128xf32>
    %599 = vector.extract_strided_slice %598 {offsets = [0, 0], sizes = [2, 32], strides = [1, 1]} : vector<2x128xf32> to vector<2x32xf32>
    %600 = vector.extract_strided_slice %598 {offsets = [0, 32], sizes = [2, 32], strides = [1, 1]} : vector<2x128xf32> to vector<2x32xf32>
    %601 = vector.extract_strided_slice %598 {offsets = [0, 64], sizes = [2, 32], strides = [1, 1]} : vector<2x128xf32> to vector<2x32xf32>
    %cst_201 = arith.constant 2.000000e+00 : f32
    %602 = vector.broadcast %cst_201 : f32 to vector<2x32xf32>
    %603 = arith.mulf %602, %601 : vector<2x32xf32>
    %cst_202 = arith.constant 1.000000e+00 : f32
    %604 = vector.broadcast %cst_202 : f32 to vector<2x32xf32>
    %605 = arith.subf %603, %604 : vector<2x32xf32>
    %606 = vector.extract_strided_slice %598 {offsets = [0, 96], sizes = [2, 32], strides = [1, 1]} : vector<2x128xf32> to vector<2x32xf32>
    %607 = arith.mulf %600, %545 : vector<2x32xf32>
    %608 = arith.mulf %599, %605 : vector<2x32xf32>
    %609 = arith.addf %607, %608 : vector<2x32xf32>
    %cst_203 = arith.constant 2.000000e+00 : f32
    %610 = vector.broadcast %cst_203 : f32 to vector<2x32xf32>
    %611 = arith.mulf %610, %609 : vector<2x32xf32>
    %612 = arith.negf %611 : vector<2x32xf32>
    %613 = math.exp %612 : vector<2x32xf32>
    %cst_204 = arith.constant 1.000000e+00 : f32
    %614 = vector.broadcast %cst_204 : f32 to vector<2x32xf32>
    %615 = arith.addf %614, %613 : vector<2x32xf32>
    %616 = arith.divf %614, %615 : vector<2x32xf32>
    %cst_205 = arith.constant 2.000000e+00 : f32
    %617 = vector.broadcast %cst_205 : f32 to vector<2x32xf32>
    %618 = arith.mulf %617, %616 : vector<2x32xf32>
    %cst_206 = arith.constant 1.000000e+00 : f32
    %619 = vector.broadcast %cst_206 : f32 to vector<2x32xf32>
    %620 = arith.subf %618, %619 : vector<2x32xf32>
    %621 = arith.mulf %606, %620 : vector<2x32xf32>
    %cst_207 = arith.constant dense<0.000000e+00> : vector<2x128xf32>
    %622 = tpu.matmul %621, %9, %cst_207 {dimension_numbers = #tpu.dot_dimension_numbers<[1], [0], [0], [1], [0, 0, 1, 1], [], []>} : vector<2x32xf32>, vector<32x128xf32>, vector<2x128xf32> -> vector<2x128xf32>
    %cst_208 = arith.constant dense<0.000000e+00> : vector<2x128xf32>
    %623 = tpu.matmul %589, %10, %cst_208 {dimension_numbers = #tpu.dot_dimension_numbers<[1], [0], [0], [1], [0, 0, 1, 1], [], []>} : vector<2x32xf32>, vector<32x128xf32>, vector<2x128xf32> -> vector<2x128xf32>
    %624 = arith.addf %622, %623 : vector<2x128xf32>
    %625 = arith.addf %624, %13 : vector<2x128xf32>
    %626 = arith.negf %625 : vector<2x128xf32>
    %627 = math.exp %626 : vector<2x128xf32>
    %cst_209 = arith.constant 1.000000e+00 : f32
    %628 = vector.broadcast %cst_209 : f32 to vector<2x128xf32>
    %629 = arith.addf %628, %627 : vector<2x128xf32>
    %630 = arith.divf %628, %629 : vector<2x128xf32>
    %631 = vector.extract_strided_slice %630 {offsets = [0, 0], sizes = [2, 32], strides = [1, 1]} : vector<2x128xf32> to vector<2x32xf32>
    %632 = vector.extract_strided_slice %630 {offsets = [0, 32], sizes = [2, 32], strides = [1, 1]} : vector<2x128xf32> to vector<2x32xf32>
    %633 = vector.extract_strided_slice %630 {offsets = [0, 64], sizes = [2, 32], strides = [1, 1]} : vector<2x128xf32> to vector<2x32xf32>
    %cst_210 = arith.constant 2.000000e+00 : f32
    %634 = vector.broadcast %cst_210 : f32 to vector<2x32xf32>
    %635 = arith.mulf %634, %633 : vector<2x32xf32>
    %cst_211 = arith.constant 1.000000e+00 : f32
    %636 = vector.broadcast %cst_211 : f32 to vector<2x32xf32>
    %637 = arith.subf %635, %636 : vector<2x32xf32>
    %638 = vector.extract_strided_slice %630 {offsets = [0, 96], sizes = [2, 32], strides = [1, 1]} : vector<2x128xf32> to vector<2x32xf32>
    %639 = arith.mulf %632, %577 : vector<2x32xf32>
    %640 = arith.mulf %631, %637 : vector<2x32xf32>
    %641 = arith.addf %639, %640 : vector<2x32xf32>
    %cst_212 = arith.constant 2.000000e+00 : f32
    %642 = vector.broadcast %cst_212 : f32 to vector<2x32xf32>
    %643 = arith.mulf %642, %641 : vector<2x32xf32>
    %644 = arith.negf %643 : vector<2x32xf32>
    %645 = math.exp %644 : vector<2x32xf32>
    %cst_213 = arith.constant 1.000000e+00 : f32
    %646 = vector.broadcast %cst_213 : f32 to vector<2x32xf32>
    %647 = arith.addf %646, %645 : vector<2x32xf32>
    %648 = arith.divf %646, %647 : vector<2x32xf32>
    %cst_214 = arith.constant 2.000000e+00 : f32
    %649 = vector.broadcast %cst_214 : f32 to vector<2x32xf32>
    %650 = arith.mulf %649, %648 : vector<2x32xf32>
    %cst_215 = arith.constant 1.000000e+00 : f32
    %651 = vector.broadcast %cst_215 : f32 to vector<2x32xf32>
    %652 = arith.subf %650, %651 : vector<2x32xf32>
    %653 = arith.mulf %638, %652 : vector<2x32xf32>
    %c18_216 = arith.constant 18 : index
    %c0_217 = arith.constant 0 : index
    %654 = vector.load %arg17[%c18_216, %c0_217] : memref<24x32xf32, #tpu.memory_space<vmem>>, vector<2x32xf32>
    tpu.vector_store %arg17[%c18_216, %c0_217], %653 {strides = array<i32>} : memref<24x32xf32, #tpu.memory_space<vmem>>, vector<2x32xf32>,
    %c20 = arith.constant 20 : index
    %c0_218 = arith.constant 0 : index
    %655 = vector.load %arg16[%c20, %c0_218] : memref<24x128xf32, #tpu.memory_space<vmem>>, vector<2x128xf32>
    %cst_219 = arith.constant dense<0.000000e+00> : vector<2x128xf32>
    %656 = tpu.matmul %621, %8, %cst_219 {dimension_numbers = #tpu.dot_dimension_numbers<[1], [0], [0], [1], [0, 0, 1, 1], [], []>} : vector<2x32xf32>, vector<32x128xf32>, vector<2x128xf32> -> vector<2x128xf32>
    %657 = arith.addf %655, %656 : vector<2x128xf32>
    %658 = arith.negf %657 : vector<2x128xf32>
    %659 = math.exp %658 : vector<2x128xf32>
    %cst_220 = arith.constant 1.000000e+00 : f32
    %660 = vector.broadcast %cst_220 : f32 to vector<2x128xf32>
    %661 = arith.addf %660, %659 : vector<2x128xf32>
    %662 = arith.divf %660, %661 : vector<2x128xf32>
    %663 = vector.extract_strided_slice %662 {offsets = [0, 0], sizes = [2, 32], strides = [1, 1]} : vector<2x128xf32> to vector<2x32xf32>
    %664 = vector.extract_strided_slice %662 {offsets = [0, 32], sizes = [2, 32], strides = [1, 1]} : vector<2x128xf32> to vector<2x32xf32>
    %665 = vector.extract_strided_slice %662 {offsets = [0, 64], sizes = [2, 32], strides = [1, 1]} : vector<2x128xf32> to vector<2x32xf32>
    %cst_221 = arith.constant 2.000000e+00 : f32
    %666 = vector.broadcast %cst_221 : f32 to vector<2x32xf32>
    %667 = arith.mulf %666, %665 : vector<2x32xf32>
    %cst_222 = arith.constant 1.000000e+00 : f32
    %668 = vector.broadcast %cst_222 : f32 to vector<2x32xf32>
    %669 = arith.subf %667, %668 : vector<2x32xf32>
    %670 = vector.extract_strided_slice %662 {offsets = [0, 96], sizes = [2, 32], strides = [1, 1]} : vector<2x128xf32> to vector<2x32xf32>
    %671 = arith.mulf %664, %609 : vector<2x32xf32>
    %672 = arith.mulf %663, %669 : vector<2x32xf32>
    %673 = arith.addf %671, %672 : vector<2x32xf32>
    %cst_223 = arith.constant 2.000000e+00 : f32
    %674 = vector.broadcast %cst_223 : f32 to vector<2x32xf32>
    %675 = arith.mulf %674, %673 : vector<2x32xf32>
    %676 = arith.negf %675 : vector<2x32xf32>
    %677 = math.exp %676 : vector<2x32xf32>
    %cst_224 = arith.constant 1.000000e+00 : f32
    %678 = vector.broadcast %cst_224 : f32 to vector<2x32xf32>
    %679 = arith.addf %678, %677 : vector<2x32xf32>
    %680 = arith.divf %678, %679 : vector<2x32xf32>
    %cst_225 = arith.constant 2.000000e+00 : f32
    %681 = vector.broadcast %cst_225 : f32 to vector<2x32xf32>
    %682 = arith.mulf %681, %680 : vector<2x32xf32>
    %cst_226 = arith.constant 1.000000e+00 : f32
    %683 = vector.broadcast %cst_226 : f32 to vector<2x32xf32>
    %684 = arith.subf %682, %683 : vector<2x32xf32>
    %685 = arith.mulf %670, %684 : vector<2x32xf32>
    %cst_227 = arith.constant dense<0.000000e+00> : vector<2x128xf32>
    %686 = tpu.matmul %685, %9, %cst_227 {dimension_numbers = #tpu.dot_dimension_numbers<[1], [0], [0], [1], [0, 0, 1, 1], [], []>} : vector<2x32xf32>, vector<32x128xf32>, vector<2x128xf32> -> vector<2x128xf32>
    %cst_228 = arith.constant dense<0.000000e+00> : vector<2x128xf32>
    %687 = tpu.matmul %653, %10, %cst_228 {dimension_numbers = #tpu.dot_dimension_numbers<[1], [0], [0], [1], [0, 0, 1, 1], [], []>} : vector<2x32xf32>, vector<32x128xf32>, vector<2x128xf32> -> vector<2x128xf32>
    %688 = arith.addf %686, %687 : vector<2x128xf32>
    %689 = arith.addf %688, %13 : vector<2x128xf32>
    %690 = arith.negf %689 : vector<2x128xf32>
    %691 = math.exp %690 : vector<2x128xf32>
    %cst_229 = arith.constant 1.000000e+00 : f32
    %692 = vector.broadcast %cst_229 : f32 to vector<2x128xf32>
    %693 = arith.addf %692, %691 : vector<2x128xf32>
    %694 = arith.divf %692, %693 : vector<2x128xf32>
    %695 = vector.extract_strided_slice %694 {offsets = [0, 0], sizes = [2, 32], strides = [1, 1]} : vector<2x128xf32> to vector<2x32xf32>
    %696 = vector.extract_strided_slice %694 {offsets = [0, 32], sizes = [2, 32], strides = [1, 1]} : vector<2x128xf32> to vector<2x32xf32>
    %697 = vector.extract_strided_slice %694 {offsets = [0, 64], sizes = [2, 32], strides = [1, 1]} : vector<2x128xf32> to vector<2x32xf32>
    %cst_230 = arith.constant 2.000000e+00 : f32
    %698 = vector.broadcast %cst_230 : f32 to vector<2x32xf32>
    %699 = arith.mulf %698, %697 : vector<2x32xf32>
    %cst_231 = arith.constant 1.000000e+00 : f32
    %700 = vector.broadcast %cst_231 : f32 to vector<2x32xf32>
    %701 = arith.subf %699, %700 : vector<2x32xf32>
    %702 = vector.extract_strided_slice %694 {offsets = [0, 96], sizes = [2, 32], strides = [1, 1]} : vector<2x128xf32> to vector<2x32xf32>
    %703 = arith.mulf %696, %641 : vector<2x32xf32>
    %704 = arith.mulf %695, %701 : vector<2x32xf32>
    %705 = arith.addf %703, %704 : vector<2x32xf32>
    %cst_232 = arith.constant 2.000000e+00 : f32
    %706 = vector.broadcast %cst_232 : f32 to vector<2x32xf32>
    %707 = arith.mulf %706, %705 : vector<2x32xf32>
    %708 = arith.negf %707 : vector<2x32xf32>
    %709 = math.exp %708 : vector<2x32xf32>
    %cst_233 = arith.constant 1.000000e+00 : f32
    %710 = vector.broadcast %cst_233 : f32 to vector<2x32xf32>
    %711 = arith.addf %710, %709 : vector<2x32xf32>
    %712 = arith.divf %710, %711 : vector<2x32xf32>
    %cst_234 = arith.constant 2.000000e+00 : f32
    %713 = vector.broadcast %cst_234 : f32 to vector<2x32xf32>
    %714 = arith.mulf %713, %712 : vector<2x32xf32>
    %cst_235 = arith.constant 1.000000e+00 : f32
    %715 = vector.broadcast %cst_235 : f32 to vector<2x32xf32>
    %716 = arith.subf %714, %715 : vector<2x32xf32>
    %717 = arith.mulf %702, %716 : vector<2x32xf32>
    %c20_236 = arith.constant 20 : index
    %c0_237 = arith.constant 0 : index
    %718 = vector.load %arg17[%c20_236, %c0_237] : memref<24x32xf32, #tpu.memory_space<vmem>>, vector<2x32xf32>
    tpu.vector_store %arg17[%c20_236, %c0_237], %717 {strides = array<i32>} : memref<24x32xf32, #tpu.memory_space<vmem>>, vector<2x32xf32>,
    %c22 = arith.constant 22 : index
    %c0_238 = arith.constant 0 : index
    %719 = vector.load %arg16[%c22, %c0_238] : memref<24x128xf32, #tpu.memory_space<vmem>>, vector<2x128xf32>
    %cst_239 = arith.constant dense<0.000000e+00> : vector<2x128xf32>
    %720 = tpu.matmul %685, %8, %cst_239 {dimension_numbers = #tpu.dot_dimension_numbers<[1], [0], [0], [1], [0, 0, 1, 1], [], []>} : vector<2x32xf32>, vector<32x128xf32>, vector<2x128xf32> -> vector<2x128xf32>
    %721 = arith.addf %719, %720 : vector<2x128xf32>
    %722 = arith.negf %721 : vector<2x128xf32>
    %723 = math.exp %722 : vector<2x128xf32>
    %cst_240 = arith.constant 1.000000e+00 : f32
    %724 = vector.broadcast %cst_240 : f32 to vector<2x128xf32>
    %725 = arith.addf %724, %723 : vector<2x128xf32>
    %726 = arith.divf %724, %725 : vector<2x128xf32>
    %727 = vector.extract_strided_slice %726 {offsets = [0, 0], sizes = [2, 32], strides = [1, 1]} : vector<2x128xf32> to vector<2x32xf32>
    %728 = vector.extract_strided_slice %726 {offsets = [0, 32], sizes = [2, 32], strides = [1, 1]} : vector<2x128xf32> to vector<2x32xf32>
    %729 = vector.extract_strided_slice %726 {offsets = [0, 64], sizes = [2, 32], strides = [1, 1]} : vector<2x128xf32> to vector<2x32xf32>
    %cst_241 = arith.constant 2.000000e+00 : f32
    %730 = vector.broadcast %cst_241 : f32 to vector<2x32xf32>
    %731 = arith.mulf %730, %729 : vector<2x32xf32>
    %cst_242 = arith.constant 1.000000e+00 : f32
    %732 = vector.broadcast %cst_242 : f32 to vector<2x32xf32>
    %733 = arith.subf %731, %732 : vector<2x32xf32>
    %734 = vector.extract_strided_slice %726 {offsets = [0, 96], sizes = [2, 32], strides = [1, 1]} : vector<2x128xf32> to vector<2x32xf32>
    %735 = arith.mulf %728, %673 : vector<2x32xf32>
    %736 = arith.mulf %727, %733 : vector<2x32xf32>
    %737 = arith.addf %735, %736 : vector<2x32xf32>
    %cst_243 = arith.constant 2.000000e+00 : f32
    %738 = vector.broadcast %cst_243 : f32 to vector<2x32xf32>
    %739 = arith.mulf %738, %737 : vector<2x32xf32>
    %740 = arith.negf %739 : vector<2x32xf32>
    %741 = math.exp %740 : vector<2x32xf32>
    %cst_244 = arith.constant 1.000000e+00 : f32
    %742 = vector.broadcast %cst_244 : f32 to vector<2x32xf32>
    %743 = arith.addf %742, %741 : vector<2x32xf32>
    %744 = arith.divf %742, %743 : vector<2x32xf32>
    %cst_245 = arith.constant 2.000000e+00 : f32
    %745 = vector.broadcast %cst_245 : f32 to vector<2x32xf32>
    %746 = arith.mulf %745, %744 : vector<2x32xf32>
    %cst_246 = arith.constant 1.000000e+00 : f32
    %747 = vector.broadcast %cst_246 : f32 to vector<2x32xf32>
    %748 = arith.subf %746, %747 : vector<2x32xf32>
    %749 = arith.mulf %734, %748 : vector<2x32xf32>
    %cst_247 = arith.constant dense<0.000000e+00> : vector<2x128xf32>
    %750 = tpu.matmul %749, %9, %cst_247 {dimension_numbers = #tpu.dot_dimension_numbers<[1], [0], [0], [1], [0, 0, 1, 1], [], []>} : vector<2x32xf32>, vector<32x128xf32>, vector<2x128xf32> -> vector<2x128xf32>
    %cst_248 = arith.constant dense<0.000000e+00> : vector<2x128xf32>
    %751 = tpu.matmul %717, %10, %cst_248 {dimension_numbers = #tpu.dot_dimension_numbers<[1], [0], [0], [1], [0, 0, 1, 1], [], []>} : vector<2x32xf32>, vector<32x128xf32>, vector<2x128xf32> -> vector<2x128xf32>
    %752 = arith.addf %750, %751 : vector<2x128xf32>
    %753 = arith.addf %752, %13 : vector<2x128xf32>
    %754 = arith.negf %753 : vector<2x128xf32>
    %755 = math.exp %754 : vector<2x128xf32>
    %cst_249 = arith.constant 1.000000e+00 : f32
    %756 = vector.broadcast %cst_249 : f32 to vector<2x128xf32>
    %757 = arith.addf %756, %755 : vector<2x128xf32>
    %758 = arith.divf %756, %757 : vector<2x128xf32>
    %759 = vector.extract_strided_slice %758 {offsets = [0, 0], sizes = [2, 32], strides = [1, 1]} : vector<2x128xf32> to vector<2x32xf32>
    %760 = vector.extract_strided_slice %758 {offsets = [0, 32], sizes = [2, 32], strides = [1, 1]} : vector<2x128xf32> to vector<2x32xf32>
    %761 = vector.extract_strided_slice %758 {offsets = [0, 64], sizes = [2, 32], strides = [1, 1]} : vector<2x128xf32> to vector<2x32xf32>
    %cst_250 = arith.constant 2.000000e+00 : f32
    %762 = vector.broadcast %cst_250 : f32 to vector<2x32xf32>
    %763 = arith.mulf %762, %761 : vector<2x32xf32>
    %cst_251 = arith.constant 1.000000e+00 : f32
    %764 = vector.broadcast %cst_251 : f32 to vector<2x32xf32>
    %765 = arith.subf %763, %764 : vector<2x32xf32>
    %766 = vector.extract_strided_slice %758 {offsets = [0, 96], sizes = [2, 32], strides = [1, 1]} : vector<2x128xf32> to vector<2x32xf32>
    %767 = arith.mulf %760, %705 : vector<2x32xf32>
    %768 = arith.mulf %759, %765 : vector<2x32xf32>
    %769 = arith.addf %767, %768 : vector<2x32xf32>
    %cst_252 = arith.constant 2.000000e+00 : f32
    %770 = vector.broadcast %cst_252 : f32 to vector<2x32xf32>
    %771 = arith.mulf %770, %769 : vector<2x32xf32>
    %772 = arith.negf %771 : vector<2x32xf32>
    %773 = math.exp %772 : vector<2x32xf32>
    %cst_253 = arith.constant 1.000000e+00 : f32
    %774 = vector.broadcast %cst_253 : f32 to vector<2x32xf32>
    %775 = arith.addf %774, %773 : vector<2x32xf32>
    %776 = arith.divf %774, %775 : vector<2x32xf32>
    %cst_254 = arith.constant 2.000000e+00 : f32
    %777 = vector.broadcast %cst_254 : f32 to vector<2x32xf32>
    %778 = arith.mulf %777, %776 : vector<2x32xf32>
    %cst_255 = arith.constant 1.000000e+00 : f32
    %779 = vector.broadcast %cst_255 : f32 to vector<2x32xf32>
    %780 = arith.subf %778, %779 : vector<2x32xf32>
    %781 = arith.mulf %766, %780 : vector<2x32xf32>
    %c22_256 = arith.constant 22 : index
    %c0_257 = arith.constant 0 : index
    %782 = vector.load %arg17[%c22_256, %c0_257] : memref<24x32xf32, #tpu.memory_space<vmem>>, vector<2x32xf32>
    tpu.vector_store %arg17[%c22_256, %c0_257], %781 {strides = array<i32>} : memref<24x32xf32, #tpu.memory_space<vmem>>, vector<2x32xf32>,
    %c0_258 = arith.constant 0 : index
    %c0_259 = arith.constant 0 : index
    %783 = vector.load %arg17[%c0_258, %c0_259] : memref<24x32xf32, #tpu.memory_space<vmem>>, vector<24x32xf32>
    %c0_260 = arith.constant 0 : index
    %c0_261 = arith.constant 0 : index
    %784 = vector.load %arg12[%c0_260, %c0_261] : memref<32x128xf32, #tpu.memory_space<vmem>>, vector<32x128xf32>
    %cst_262 = arith.constant dense<0.000000e+00> : vector<24x128xf32>
    %785 = tpu.matmul %783, %784, %cst_262 {dimension_numbers = #tpu.dot_dimension_numbers<[1], [0], [0], [1], [0, 0, 1, 1], [], []>} : vector<24x32xf32>, vector<32x128xf32>, vector<24x128xf32> -> vector<24x128xf32>
    %c0_263 = arith.constant 0 : index
    %c0_264 = arith.constant 0 : index
    %786 = vector.load %arg13[%c0_263, %c0_264] : memref<1x128xf32, #tpu.memory_space<vmem>>, vector<1x128xf32>
    %787 = vector.broadcast %786 : vector<1x128xf32> to vector<24x128xf32>
    %788 = arith.addf %785, %787 : vector<24x128xf32>
    %789 = vector.extract_strided_slice %788 {offsets = [0, 0], sizes = [24, 4], strides = [1, 1]} : vector<24x128xf32> to vector<24x4xf32>
    %790 = vector.extract_strided_slice %788 {offsets = [0, 4], sizes = [24, 4], strides = [1, 1]} : vector<24x128xf32> to vector<24x4xf32>
    %791 = vector.extract_strided_slice %788 {offsets = [0, 8], sizes = [24, 4], strides = [1, 1]} : vector<24x128xf32> to vector<24x4xf32>
    %792 = vector.extract_strided_slice %788 {offsets = [0, 12], sizes = [24, 4], strides = [1, 1]} : vector<24x128xf32> to vector<24x4xf32>
    %cst_265 = arith.constant 0.541324854 : f32
    %793 = vector.broadcast %cst_265 : f32 to vector<24x4xf32>
    %794 = arith.addf %792, %793 : vector<24x4xf32>
    %cst_266 = arith.constant 0.000000e+00 : f32
    %795 = vector.broadcast %cst_266 : f32 to vector<24x4xf32>
    %796 = arith.maximumf %794, %795 : vector<24x4xf32>
    %797 = vector.broadcast %cst_266 : f32 to vector<24x4xf32>
    %798 = arith.subf %794, %797 : vector<24x4xf32>
    %799 = arith.cmpf one, %798, %798 : vector<24x4xf32>
    %800 = vector.broadcast %cst_266 : f32 to vector<24x4xf32>
    %801 = arith.addf %794, %800 : vector<24x4xf32>
    %802 = math.absf %798 : vector<24x4xf32>
    %cst_267 = arith.constant 0.000000e+00 : f32
    %803 = vector.broadcast %cst_267 : f32 to vector<24x4xf32>
    %804 = arith.subf %803, %802 : vector<24x4xf32>
    %805 = math.exp %804 : vector<24x4xf32>
    %806 = math.log1p %805 : vector<24x4xf32>
    %807 = arith.addf %796, %806 : vector<24x4xf32>
    %808 = arith.select %799, %801, %807 : vector<24x4xi1>, vector<24x4xf32>
    %cst_268 = arith.constant 9.99999997E-7 : f32
    %809 = vector.broadcast %cst_268 : f32 to vector<24x4xf32>
    %810 = arith.addf %808, %809 : vector<24x4xf32>
    %c0_269 = arith.constant 0 : index
    %c0_270 = arith.constant 0 : index
    %c0_271 = arith.constant 0 : index
    %811 = vector.load %arg3[%c0_269, %c0_270, %c0_271] : memref<1x24x4xf32, #tpu.memory_space<vmem>>, vector<1x24x4xf32>
    %812 = vector.shape_cast %811 : vector<1x24x4xf32> to vector<24x4xf32>
    %c0_272 = arith.constant 0 : index
    %c0_273 = arith.constant 0 : index
    %c0_274 = arith.constant 0 : index
    %813 = vector.load %arg2[%c0_272, %c0_273, %c0_274] : memref<1x24x4xf32, #tpu.memory_space<vmem>>, vector<1x24x4xf32>
    %814 = vector.shape_cast %813 : vector<1x24x4xf32> to vector<24x4xf32>
    %815 = arith.divf %814, %812 : vector<24x4xf32>
    %816 = arith.subf %815, %789 : vector<24x4xf32>
    %cst_275 = arith.constant 1.000000e+00 : f32
    %817 = vector.broadcast %cst_275 : f32 to vector<24x4xf32>
    %818 = arith.divf %817, %810 : vector<24x4xf32>
    %819 = arith.mulf %816, %816 : vector<24x4xf32>
    %820 = arith.mulf %819, %818 : vector<24x4xf32>
    %cst_276 = arith.constant dense<0.000000e+00> : vector<24xf32>
    %821 = vector.multi_reduction <add>, %820, %cst_276 [1] : vector<24x4xf32> to vector<24xf32>
    %822 = vector.shape_cast %821 : vector<24xf32> to vector<24x1xf32>
    %823 = arith.mulf %790, %816 : vector<24x4xf32>
    %824 = arith.mulf %823, %818 : vector<24x4xf32>
    %cst_277 = arith.constant dense<0.000000e+00> : vector<24xf32>
    %825 = vector.multi_reduction <add>, %824, %cst_277 [1] : vector<24x4xf32> to vector<24xf32>
    %826 = vector.shape_cast %825 : vector<24xf32> to vector<24x1xf32>
    %827 = arith.mulf %791, %816 : vector<24x4xf32>
    %828 = arith.mulf %827, %818 : vector<24x4xf32>
    %cst_278 = arith.constant dense<0.000000e+00> : vector<24xf32>
    %829 = vector.multi_reduction <add>, %828, %cst_278 [1] : vector<24x4xf32> to vector<24xf32>
    %830 = vector.shape_cast %829 : vector<24xf32> to vector<24x1xf32>
    %831 = arith.mulf %790, %790 : vector<24x4xf32>
    %832 = arith.mulf %831, %818 : vector<24x4xf32>
    %cst_279 = arith.constant dense<0.000000e+00> : vector<24xf32>
    %833 = vector.multi_reduction <add>, %832, %cst_279 [1] : vector<24x4xf32> to vector<24xf32>
    %834 = vector.shape_cast %833 : vector<24xf32> to vector<24x1xf32>
    %cst_280 = arith.constant 1.000000e+00 : f32
    %835 = vector.broadcast %cst_280 : f32 to vector<24x1xf32>
    %836 = arith.addf %835, %834 : vector<24x1xf32>
    %837 = arith.mulf %790, %791 : vector<24x4xf32>
    %838 = arith.mulf %837, %818 : vector<24x4xf32>
    %cst_281 = arith.constant dense<0.000000e+00> : vector<24xf32>
    %839 = vector.multi_reduction <add>, %838, %cst_281 [1] : vector<24x4xf32> to vector<24xf32>
    %840 = vector.shape_cast %839 : vector<24xf32> to vector<24x1xf32>
    %841 = arith.mulf %791, %791 : vector<24x4xf32>
    %842 = arith.mulf %841, %818 : vector<24x4xf32>
    %cst_282 = arith.constant dense<0.000000e+00> : vector<24xf32>
    %843 = vector.multi_reduction <add>, %842, %cst_282 [1] : vector<24x4xf32> to vector<24xf32>
    %844 = vector.shape_cast %843 : vector<24xf32> to vector<24x1xf32>
    %cst_283 = arith.constant 1.000000e+00 : f32
    %845 = vector.broadcast %cst_283 : f32 to vector<24x1xf32>
    %846 = arith.addf %845, %844 : vector<24x1xf32>
    %847 = arith.mulf %836, %846 : vector<24x1xf32>
    %848 = arith.mulf %840, %840 : vector<24x1xf32>
    %849 = arith.subf %847, %848 : vector<24x1xf32>
    %850 = arith.mulf %846, %826 : vector<24x1xf32>
    %851 = arith.mulf %850, %826 : vector<24x1xf32>
    %cst_284 = arith.constant 2.000000e+00 : f32
    %852 = vector.broadcast %cst_284 : f32 to vector<24x1xf32>
    %853 = arith.mulf %852, %840 : vector<24x1xf32>
    %854 = arith.mulf %853, %826 : vector<24x1xf32>
    %855 = arith.mulf %854, %830 : vector<24x1xf32>
    %856 = arith.subf %851, %855 : vector<24x1xf32>
    %857 = arith.mulf %836, %830 : vector<24x1xf32>
    %858 = arith.mulf %857, %830 : vector<24x1xf32>
    %859 = arith.addf %856, %858 : vector<24x1xf32>
    %860 = arith.divf %859, %849 : vector<24x1xf32>
    %861 = arith.subf %822, %860 : vector<24x1xf32>
    %862 = math.log %810 : vector<24x4xf32>
    %cst_285 = arith.constant dense<0.000000e+00> : vector<24xf32>
    %863 = vector.multi_reduction <add>, %862, %cst_285 [1] : vector<24x4xf32> to vector<24xf32>
    %864 = vector.shape_cast %863 : vector<24xf32> to vector<24x1xf32>
    %865 = math.log %849 : vector<24x1xf32>
    %866 = arith.addf %864, %865 : vector<24x1xf32>
    %cst_286 = arith.constant 6.28318548 : f32
    %867 = math.log %cst_286 : f32
    %cst_287 = arith.constant 4.000000e+00 : f32
    %868 = arith.mulf %cst_287, %867 : f32
    %869 = vector.broadcast %868 : f32 to vector<24x1xf32>
    %870 = arith.addf %869, %866 : vector<24x1xf32>
    %871 = arith.addf %870, %861 : vector<24x1xf32>
    %cst_288 = arith.constant -5.000000e-01 : f32
    %872 = vector.broadcast %cst_288 : f32 to vector<24x1xf32>
    %873 = arith.mulf %872, %871 : vector<24x1xf32>
    %874 = math.log %812 : vector<24x4xf32>
    %cst_289 = arith.constant dense<0.000000e+00> : vector<24xf32>
    %875 = vector.multi_reduction <add>, %874, %cst_289 [1] : vector<24x4xf32> to vector<24xf32>
    %876 = vector.shape_cast %875 : vector<24xf32> to vector<24x1xf32>
    %877 = arith.subf %876, %873 : vector<24x1xf32>
    %878 = tpu.iota {dimensions = array<i32: 1>} : vector<24x128xi32>
    %c16_i32 = arith.constant 16 : i32
    %879 = vector.broadcast %c16_i32 : i32 to vector<24x128xi32>
    %880 = arith.cmpi eq, %878, %879 : vector<24x128xi32>
    %881 = vector.shape_cast %877 : vector<24x1xf32> to vector<24x1xf32>
    %882 = vector.broadcast %881 : vector<24x1xf32> to vector<24x128xf32>
    %883 = arith.select %880, %882, %788 : vector<24x128xi1>, vector<24x128xf32>
    %c0_290 = arith.constant 0 : index
    %c0_291 = arith.constant 0 : index
    %c0_292 = arith.constant 0 : index
    %884 = vector.load %arg14[%c0_290, %c0_291, %c0_292] : memref<1x24x128xf32, #tpu.memory_space<vmem>>, vector<1x24x128xf32>
    %885 = vector.shape_cast %884 : vector<1x24x128xf32> to vector<24x128xf32>
    %886 = vector.shape_cast %883 : vector<24x128xf32> to vector<1x24x128xf32>
    tpu.vector_store %arg14[%c0_290, %c0_291, %c0_292], %886 {strides = array<i32>} : memref<1x24x128xf32, #tpu.memory_space<vmem>>, vector<1x24x128xf32>,
    %c0_293 = arith.constant 0 : index
    %c0_294 = arith.constant 0 : index
    %c0_295 = arith.constant 0 : index
    %887 = vector.load %arg4[%c0_293, %c0_294, %c0_295] : memref<1x24x1xf32, #tpu.memory_space<vmem>>, vector<1x24x1xf32>
    %888 = vector.shape_cast %887 : vector<1x24x1xf32> to vector<24x1xf32>
    %cst_296 = arith.constant 0.000000e+00 : f32
    %889 = vector.broadcast %cst_296 : f32 to vector<24x1xf32>
    %890 = arith.cmpf one, %888, %889 : vector<24x1xf32>
    %891 = arith.mulf %877, %888 : vector<24x1xf32>
    %cst_297 = arith.constant 0.000000e+00 : f32
    %892 = vector.broadcast %cst_297 : f32 to vector<24x1xf32>
    %893 = arith.select %890, %891, %892 : vector<24x1xi1>, vector<24x1xf32>
    %c0_298 = arith.constant 0 : index
    %c0_299 = arith.constant 0 : index
    %894 = vector.load %arg5[%c0_298, %c0_299] : memref<2x24xf32, #tpu.memory_space<vmem>>, vector<2x24xf32>
    %cst_300 = arith.constant dense<0.000000e+00> : vector<2x1xf32>
    %895 = tpu.matmul %894, %888, %cst_300 {dimension_numbers = #tpu.dot_dimension_numbers<[1], [0], [0], [1], [0, 0, 1, 1], [], []>} : vector<2x24xf32>, vector<24x1xf32>, vector<2x1xf32> -> vector<2x1xf32>
    %c0_301 = arith.constant 0 : index
    %c0_302 = arith.constant 0 : index
    %896 = vector.load %arg5[%c0_301, %c0_302] : memref<2x24xf32, #tpu.memory_space<vmem>>, vector<2x24xf32>
    %cst_303 = arith.constant dense<0.000000e+00> : vector<2x1xf32>
    %897 = tpu.matmul %896, %893, %cst_303 {dimension_numbers = #tpu.dot_dimension_numbers<[1], [0], [0], [1], [0, 0, 1, 1], [], []>} : vector<2x24xf32>, vector<24x1xf32>, vector<2x1xf32> -> vector<2x1xf32>
    %cst_304 = arith.constant 1.000000e+00 : f32
    %898 = vector.broadcast %cst_304 : f32 to vector<2x1xf32>
    %899 = arith.maximumf %895, %898 : vector<2x1xf32>
    %900 = arith.divf %897, %899 : vector<2x1xf32>
    %c0_305 = arith.constant 0 : index
    %c0_306 = arith.constant 0 : index
    %c0_307 = arith.constant 0 : index
    %901 = vector.load %arg15[%c0_305, %c0_306, %c0_307] : memref<1x2x1xf32, #tpu.memory_space<vmem>>, vector<1x2x1xf32>
    %902 = vector.shape_cast %901 : vector<1x2x1xf32> to vector<2x1xf32>
    %903 = vector.shape_cast %900 : vector<2x1xf32> to vector<1x2x1xf32>
    tpu.vector_store %arg15[%c0_305, %c0_306, %c0_307], %903 {strides = array<i32>} : memref<1x2x1xf32, #tpu.memory_space<vmem>>, vector<1x2x1xf32>,
    return
  }
  func.func @transform_0(%arg0: i32) -> (i32, i32, i32) {
    %c0_i32 = arith.constant 0 : i32
    %c0_i32_0 = arith.constant 0 : i32
    %c0_i32_1 = arith.constant 0 : i32
    return %arg0, %c0_i32, %c0_i32_0 : i32, i32, i32
  }
  func.func @transform_1(%arg0: i32) -> (i32, i32, i32) {
    %c0_i32 = arith.constant 0 : i32
    %c0_i32_0 = arith.constant 0 : i32
    %c0_i32_1 = arith.constant 0 : i32
    return %arg0, %c0_i32, %c0_i32_0 : i32, i32, i32
  }
  func.func @transform_2(%arg0: i32) -> (i32, i32, i32) {
    %c0_i32 = arith.constant 0 : i32
    %c0_i32_0 = arith.constant 0 : i32
    %c0_i32_1 = arith.constant 0 : i32
    return %arg0, %c0_i32, %c0_i32_0 : i32, i32, i32
  }
  func.func @transform_3(%arg0: i32) -> (i32, i32, i32) {
    %c0_i32 = arith.constant 0 : i32
    %c0_i32_0 = arith.constant 0 : i32
    %c0_i32_1 = arith.constant 0 : i32
    return %arg0, %c0_i32, %c0_i32_0 : i32, i32, i32
  }
  func.func @transform_4(%arg0: i32) -> (i32, i32) {
    %c0_i32 = arith.constant 0 : i32
    %c0_i32_0 = arith.constant 0 : i32
    %c0_i32_1 = arith.constant 0 : i32
    return %c0_i32, %c0_i32_0 : i32, i32
  }
  func.func @transform_5(%arg0: i32) -> (i32, i32) {
    %c0_i32 = arith.constant 0 : i32
    %c0_i32_0 = arith.constant 0 : i32
    %c0_i32_1 = arith.constant 0 : i32
    return %c0_i32, %c0_i32_0 : i32, i32
  }
  func.func @transform_6(%arg0: i32) -> (i32, i32) {
    %c0_i32 = arith.constant 0 : i32
    %c0_i32_0 = arith.constant 0 : i32
    %c0_i32_1 = arith.constant 0 : i32
    return %c0_i32, %c0_i32_0 : i32, i32
  }
  func.func @transform_7(%arg0: i32) -> (i32, i32) {
    %c0_i32 = arith.constant 0 : i32
    %c0_i32_0 = arith.constant 0 : i32
    %c0_i32_1 = arith.constant 0 : i32
    return %c0_i32, %c0_i32_0 : i32, i32
  }
  func.func @transform_8(%arg0: i32) -> (i32, i32) {
    %c0_i32 = arith.constant 0 : i32
    %c0_i32_0 = arith.constant 0 : i32
    %c0_i32_1 = arith.constant 0 : i32
    return %c0_i32, %c0_i32_0 : i32, i32
  }
  func.func @transform_9(%arg0: i32) -> (i32, i32) {
    %c0_i32 = arith.constant 0 : i32
    %c0_i32_0 = arith.constant 0 : i32
    %c0_i32_1 = arith.constant 0 : i32
    return %c0_i32, %c0_i32_0 : i32, i32
  }
  func.func @transform_10(%arg0: i32) -> (i32, i32) {
    %c0_i32 = arith.constant 0 : i32
    %c0_i32_0 = arith.constant 0 : i32
    %c0_i32_1 = arith.constant 0 : i32
    return %c0_i32, %c0_i32_0 : i32, i32
  }
  func.func @transform_11(%arg0: i32) -> (i32, i32) {
    %c0_i32 = arith.constant 0 : i32
    %c0_i32_0 = arith.constant 0 : i32
    %c0_i32_1 = arith.constant 0 : i32
    return %c0_i32, %c0_i32_0 : i32, i32
  }
  func.func @transform_12(%arg0: i32) -> (i32, i32) {
    %c0_i32 = arith.constant 0 : i32
    %c0_i32_0 = arith.constant 0 : i32
    %c0_i32_1 = arith.constant 0 : i32
    return %c0_i32, %c0_i32_0 : i32, i32
  }
  func.func @transform_13(%arg0: i32) -> (i32, i32, i32) {
    %c0_i32 = arith.constant 0 : i32
    %c0_i32_0 = arith.constant 0 : i32
    %c0_i32_1 = arith.constant 0 : i32
    return %arg0, %c0_i32, %c0_i32_0 : i32, i32, i32
  }
  func.func @transform_14(%arg0: i32) -> (i32, i32, i32) {
    %c0_i32 = arith.constant 0 : i32
    %c0_i32_0 = arith.constant 0 : i32
    %c0_i32_1 = arith.constant 0 : i32
    return %arg0, %c0_i32, %c0_i32_0 : i32, i32, i32
  }
}

</mosaic_0001>

<llo_original>
// kernel: deepvar_forward.1
$region0: #{deepvar_forward.1}
  #allocation0 [shape = 'u32[]', space=smem, size = 0x4, offset = 0x4, fixed_abs, tag = 'smem constant byte address 0x4 - core index']
  #allocation1 [shape = 'u32[144,128]{1,0:T(1,128)}', space=vmem, size = 0x12000, scoped, tag = 'internal scratch']
  #allocation2 [shape = 'f32[24,128]{1,0:T(8,128)}', space=vmem, size = 0x3000, scoped, tag = 'scratch operand']
  #allocation3 [shape = 'f32[24,32]{1,0:T(8,128)}', space=vmem, size = 0x3000, scoped, tag = 'scratch operand']
  %s0 = inlined_call_operand.vmem [shape: f32[1,24,22], index: 0, kind: input, shape index: {}]
  %s1 = inlined_call_operand.vmem [shape: f32[1,24,4], index: 1, kind: input, shape index: {}]
  %s2 = inlined_call_operand.vmem [shape: f32[1,24,4], index: 2, kind: input, shape index: {}]
  %s3 = inlined_call_operand.vmem [shape: f32[1,24,1], index: 3, kind: input, shape index: {}]
  %s4 = inlined_call_operand.vmem [shape: f32[2,24], index: 4, kind: input, shape index: {}]
  %s5 = inlined_call_operand.vmem [shape: f32[22,128], index: 5, kind: input, shape index: {}]
  %s6 = inlined_call_operand.vmem [shape: f32[1,128], index: 6, kind: input, shape index: {}]
  %s7 = inlined_call_operand.vmem [shape: f32[32,128], index: 7, kind: input, shape index: {}]
  %s8 = inlined_call_operand.vmem [shape: f32[32,128], index: 8, kind: input, shape index: {}]
  %s9 = inlined_call_operand.vmem [shape: f32[32,128], index: 9, kind: input, shape index: {}]
  %s10 = inlined_call_operand.vmem [shape: f32[1,128], index: 10, kind: input, shape index: {}]
  %s11 = inlined_call_operand.vmem [shape: f32[32,128], index: 11, kind: input, shape index: {}]
  %s12 = inlined_call_operand.vmem [shape: f32[1,128], index: 12, kind: input, shape index: {}]
  %s13 = inlined_call_operand.vmem [shape: f32[1,24,128], index: 13, kind: output, shape index: {0}]
  %s14 = inlined_call_operand.vmem [shape: f32[1,2,1], index: 14, kind: output, shape index: {1}]
  %15 = xla_tuple %s13, %s14
  %s16 = sld [smem:[#allocation0]]
  $region70: #{deepvar_forward.1} parent=0
    _
  %s18 = ssub.s32 1, %s16
  %s19 = scalar_select 0, %s18, %s16
  // Predicated region
  $region2: #{deepvar_forward.1} parent=0 // pred_check
    _
  $region3: #{deepvar_forward.1} parent=0 // pred_check_branch
    %21 = sbr.rel (0) target = $region5
  $region4: #{deepvar_forward.1} parent=0 // pred_region
    _
  $region5: #{deepvar_forward.1} parent=0 // pred_fallthru
    _
  // Predicated region
  $region6: #{deepvar_forward.1} parent=0 // pred_check
    _
  $region7: #{deepvar_forward.1} parent=0 // pred_check_branch
    %23 = sbr.rel (0) target = $region9
  $region8: #{deepvar_forward.1} parent=0 // pred_region
    _
  $region9: #{deepvar_forward.1} parent=0 // pred_fallthru
    _
  // Predicated region
  $region10: #{deepvar_forward.1} parent=0 // pred_check
    _
  $region11: #{deepvar_forward.1} parent=0 // pred_check_branch
    %25 = sbr.rel (0) target = $region13
  $region12: #{deepvar_forward.1} parent=0 // pred_region
    _
  $region13: #{deepvar_forward.1} parent=0 // pred_fallthru
    _
  // Predicated region
  $region14: #{deepvar_forward.1} parent=0 // pred_check
    _
  $region15: #{deepvar_forward.1} parent=0 // pred_check_branch
    %27 = sbr.rel (0) target = $region17
  $region16: #{deepvar_forward.1} parent=0 // pred_region
    _
  $region17: #{deepvar_forward.1} parent=0 // pred_fallthru
    _
  // Predicated region
  $region18: #{deepvar_forward.1} parent=0 // pred_check
    _
  $region19: #{deepvar_forward.1} parent=0 // pred_check_branch
    %29 = sbr.rel (0) target = $region21
  $region20: #{deepvar_forward.1} parent=0 // pred_region
    _
  $region21: #{deepvar_forward.1} parent=0 // pred_fallthru
    _
  // Predicated region
  $region22: #{deepvar_forward.1} parent=0 // pred_check
    _
  $region23: #{deepvar_forward.1} parent=0 // pred_check_branch
    %31 = sbr.rel (0) target = $region25
  $region24: #{deepvar_forward.1} parent=0 // pred_region
    _
  $region25: #{deepvar_forward.1} parent=0 // pred_fallthru
    _
  // Predicated region
  $region26: #{deepvar_forward.1} parent=0 // pred_check
    _
  $region27: #{deepvar_forward.1} parent=0 // pred_check_branch
    %33 = sbr.rel (0) target = $region29
  $region28: #{deepvar_forward.1} parent=0 // pred_region
    _
  $region29: #{deepvar_forward.1} parent=0 // pred_fallthru
    _
  // Predicated region
  $region30: #{deepvar_forward.1} parent=0 // pred_check
    _
  $region31: #{deepvar_forward.1} parent=0 // pred_check_branch
    %35 = sbr.rel (0) target = $region33
  $region32: #{deepvar_forward.1} parent=0 // pred_region
    _
  $region33: #{deepvar_forward.1} parent=0 // pred_fallthru
    _
  // Predicated region
  $region34: #{deepvar_forward.1} parent=0 // pred_check
    _
  $region35: #{deepvar_forward.1} parent=0 // pred_check_branch
    %37 = sbr.rel (0) target = $region37
  $region36: #{deepvar_forward.1} parent=0 // pred_region
    _
  $region37: #{deepvar_forward.1} parent=0 // pred_fallthru
    _
  // Predicated region
  $region38: #{deepvar_forward.1} parent=0 // pred_check
    _
  $region39: #{deepvar_forward.1} parent=0 // pred_check_branch
    %39 = sbr.rel (0) target = $region41
  $region40: #{deepvar_forward.1} parent=0 // pred_region
    _
  $region41: #{deepvar_forward.1} parent=0 // pred_fallthru
    _
  // Predicated region
  $region42: #{deepvar_forward.1} parent=0 // pred_check
    _
  $region43: #{deepvar_forward.1} parent=0 // pred_check_branch
    %41 = sbr.rel (0) target = $region45
  $region44: #{deepvar_forward.1} parent=0 // pred_region
    _
  $region45: #{deepvar_forward.1} parent=0 // pred_fallthru
    _
  // Predicated region
  $region46: #{deepvar_forward.1} parent=0 // pred_check
    _
  $region47: #{deepvar_forward.1} parent=0 // pred_check_branch
    %43 = sbr.rel (0) target = $region49
  $region48: #{deepvar_forward.1} parent=0 // pred_region
    _
  $region49: #{deepvar_forward.1} parent=0 // pred_fallthru
    _
  // Predicated region
  $region50: #{deepvar_forward.1} parent=0 // pred_check
    _
  $region51: #{deepvar_forward.1} parent=0 // pred_check_branch
    %45 = sbr.rel (0) target = $region53
  $region52: #{deepvar_forward.1} parent=0 // pred_region
    _
  $region53: #{deepvar_forward.1} parent=0 // pred_fallthru
    _
  %v46 = vld [vmem:[%s0] sm:$0xff]
  %v47 = vld [vmem:[%s0 + $0x8] sm:$0xff]
  %v48 = vld [vmem:[%s0 + $0x10] sm:$0xff]
  %v49 = vld [vmem:[%s5] sm:$0xff]
  %v50 = vld [vmem:[%s5 + $0x8] sm:$0xff]
  %v51 = vld [vmem:[%s5 + $0x10] sm:$0x3f]
  %v52 = vld [vmem:[%s6] sm:$0x1]
  %v54 = vlaneseq
  %v55 = vshrl.u32 %v54, 7
  %v56 = vsub.s32 0, %v55
  %v57 = vrot.slane %v52, %v56
  %vm59 = vcmask 179200
  %v61 = vsel %vm59, %v46, 0
  %v64 = vsel %vm59, %v47, 0
  %v67 = vsel %vm59, %v48, 0
  %vm69 = vcmask 1045504
  %v71 = vsel %vm69, %v51, 0
  %73 = vmatprep.subr.mxu0 0.0
  %74 = vmatpush1.msra.mxu0 %v49
  %75 = vmatprep.subr.mxu0 0.0
  %76 = vmatpush1.msra.mxu0 %v50
  %77 = vmatprep.subr.mxu0 0.0
  %78 = vmatpush1.msra.mxu0 %v71
  %79 = vmatprep.subr.mxu0 0.0
  %80 = vmatpush1.msra.mxu0 0.0
  %81 = vmatprep.subr.mxu0 0.0
  %82 = vmatpush1.msra.mxu0 0.0
  %83 = vmatprep.subr.mxu0 0.0
  %84 = vmatpush1.msra.mxu0 0.0
  %85 = vmatprep.subr.mxu0 0.0
  %86 = vmatpush1.msra.mxu0 0.0
  %87 = vmatprep.subr.mxu0 0.0
  %88 = vmatpush1.msra.mxu0 0.0
  %89 = vmatprep.subr.mxu0 0.0
  %90 = vmatpush1.msra.mxu0 0.0
  %91 = vmatprep.subr.mxu0 0.0
  %92 = vmatpush1.msra.mxu0 0.0
  %93 = vmatprep.subr.mxu0 0.0
  %94 = vmatpush1.msra.mxu0 0.0
  %95 = vmatprep.subr.mxu0 0.0
  %96 = vmatpush1.msra.mxu0 0.0
  %97 = vmatprep.subr.mxu0 0.0
  %98 = vmatpush1.msra.mxu0 0.0
  %99 = vmatprep.subr.mxu0 0.0
  %100 = vmatpush1.msra.mxu0 0.0
  %101 = vmatprep.subr.mxu0 0.0
  %102 = vmatpush1.msra.mxu0 0.0
  %103 = vmatprep.subr.mxu0 0.0
  %104 = vmatpush1.msra.mxu0 0.0
  %105 = vmatprep.subr.mxu0 0.0
  %106 = vmatpush1.msra.mxu0 0.0
  %107 = vmatprep.subr.mxu0 0.0
  %108 = vmatpush1.msra.mxu0 0.0
  %109 = vmatprep.subr.mxu0 0.0
  %110 = vmatpush1.msra.mxu0 0.0
  %111 = vmatprep.subr.mxu0 0.0
  %112 = vmatpush1.msra.mxu0 0.0
  %113 = vmatprep.subr.mxu0 0.0
  %114 = vmatpush1.msra.mxu0 0.0
  %115 = vmatprep.subr.mxu0 0.0
  %116 = vmatpush1.msra.mxu0 0.0
  %117 = vmatprep.subr.mxu0 0.0
  %118 = vmatpush1.msra.mxu0 0.0
  %119 = vmatprep.subr.mxu0 0.0
  %120 = vmatpush1.msra.mxu0 0.0
  %121 = vmatprep.subr.mxu0 0.0
  %122 = vmatpush1.msra.mxu0 0.0
  %123 = vmatprep.subr.mxu0 0.0
  %124 = vmatpush1.msra.mxu0 0.0
  %125 = vmatprep.subr.mxu0 0.0
  %126 = vmatpush1.msra.mxu0 0.0
  %127 = vmatprep.subr.mxu0 0.0
  %128 = vmatpush1.msra.mxu0 0.0
  %129 = vmatprep.subr.mxu0 0.0
  %130 = vmatpush1.msra.mxu0 0.0
  %131 = vmatprep.subr.mxu0 0.0
  %132 = vmatpush1.msra.mxu0 0.0
  %133 = vmatprep.subr.mxu0 0.0
  %134 = vmatpush1.msra.mxu0 0.0
  %135 = vmatprep.subr.mxu0 0.0
  %136 = vmatpush1.msra.mxu0 0.0
  %137 = vmatprep.mubr.f32.mxu0 0.0
  %138 = vmatmul.mubr.f32.gmra.mrb[0].mxu0 %v61
  %v139 = vpop.f32.mrb[0].mxu0
  %v140 = vadd.f32 %v57, %v139
  %v141 = vpop.f32.mrb[0].mxu0
  %142 = vmatprep.mubr.f32.mxu0 0.0
  %143 = vmatmul.mubr.f32.gmra.mrb[0].mxu0 %v64
  %v144 = vpop.f32.mrb[0].mxu0
  %v145 = vadd.f32 %v57, %v144
  %v146 = vpop.f32.mrb[0].mxu0
  %147 = vmatprep.mubr.f32.mxu0 0.0
  %148 = vmatmul.mubr.f32.gmra.mrb[0].mxu0 %v67
  %v149 = vpop.f32.mrb[0].mxu0
  %v150 = vadd.f32 %v57, %v149
  %v151 = vpop.f32.mrb[0].mxu0
  %152 = vdwg.mxu0
  %153 = vst [vmem:[#allocation2] sm:$0xff] %v140
  %154 = vst [vmem:[#allocation2 + $0x8] sm:$0xff] %v145
  %155 = vst [vmem:[#allocation2 + $0x10] sm:$0xff] %v150
  %v156 = vld [vmem:[%s7] sm:$0xff]
  %v157 = vld [vmem:[%s7 + $0x8] sm:$0xff]
  %v158 = vld [vmem:[%s7 + $0x10] sm:$0xff]
  %v159 = vld [vmem:[%s7 + $0x18] sm:$0xff]
  %v160 = vld [vmem:[%s8] sm:$0xff]
  %v161 = vld [vmem:[%s8 + $0x8] sm:$0xff]
  %v162 = vld [vmem:[%s8 + $0x10] sm:$0xff]
  %v163 = vld [vmem:[%s8 + $0x18] sm:$0xff]
  %v164 = vld [vmem:[%s9] sm:$0xff]
  %v165 = vld [vmem:[%s9 + $0x8] sm:$0xff]
  %v166 = vld [vmem:[%s9 + $0x10] sm:$0xff]
  %v167 = vld [vmem:[%s9 + $0x18] sm:$0xff]
  %v168 = vld [vmem:[%s10] sm:$0x1]
  %v170 = vlaneseq
  %v171 = vshrl.u32 %v170, 7
  %v172 = vsub.s32 0, %v171
  %v173 = vrot.slane %v168, %v172
  %v175 = vld [vmem:[#allocation2] sm:$0x3]
  %vm176 = vcmask 261120
  %v178 = vsel %vm176, 0.0, 0
  %180 = vmatprep.subr.mxu0 0.0
  %181 = vmatpush1.msra.mxu0 %v156
  %182 = vmatprep.subr.mxu0 0.0
  %183 = vmatpush1.msra.mxu0 %v157
  %184 = vmatprep.subr.mxu0 0.0
  %185 = vmatpush1.msra.mxu0 %v158
  %186 = vmatprep.subr.mxu0 0.0
  %187 = vmatpush1.msra.mxu0 %v159
  %188 = vmatprep.subr.mxu0 0.0
  %189 = vmatpush1.msra.mxu0 0.0
  %190 = vmatprep.subr.mxu0 0.0
  %191 = vmatpush1.msra.mxu0 0.0
  %192 = vmatprep.subr.mxu0 0.0
  %193 = vmatpush1.msra.mxu0 0.0
  %194 = vmatprep.subr.mxu0 0.0
  %195 = vmatpush1.msra.mxu0 0.0
  %196 = vmatprep.subr.mxu0 0.0
  %197 = vmatpush1.msra.mxu0 0.0
  %198 = vmatprep.subr.mxu0 0.0
  %199 = vmatpush1.msra.mxu0 0.0
  %200 = vmatprep.subr.mxu0 0.0
  %201 = vmatpush1.msra.mxu0 0.0
  %202 = vmatprep.subr.mxu0 0.0
  %203 = vmatpush1.msra.mxu0 0.0
  %204 = vmatprep.subr.mxu0 0.0
  %205 = vmatpush1.msra.mxu0 0.0
  %206 = vmatprep.subr.mxu0 0.0
  %207 = vmatpush1.msra.mxu0 0.0
  %208 = vmatprep.subr.mxu0 0.0
  %209 = vmatpush1.msra.mxu0 0.0
  %210 = vmatprep.subr.mxu0 0.0
  %211 = vmatpush1.msra.mxu0 0.0
  %212 = vmatprep.subr.mxu0 0.0
  %213 = vmatpush1.msra.mxu0 0.0
  %214 = vmatprep.subr.mxu0 0.0
  %215 = vmatpush1.msra.mxu0 0.0
  %216 = vmatprep.subr.mxu0 0.0
  %217 = vmatpush1.msra.mxu0 0.0
  %218 = vmatprep.subr.mxu0 0.0
  %219 = vmatpush1.msra.mxu0 0.0
  %220 = vmatprep.subr.mxu0 0.0
  %221 = vmatpush1.msra.mxu0 0.0
  %222 = vmatprep.subr.mxu0 0.0
  %223 = vmatpush1.msra.mxu0 0.0
  %224 = vmatprep.subr.mxu0 0.0
  %225 = vmatpush1.msra.mxu0 0.0
  %226 = vmatprep.subr.mxu0 0.0
  %227 = vmatpush1.msra.mxu0 0.0
  %228 = vmatprep.subr.mxu0 0.0
  %229 = vmatpush1.msra.mxu0 0.0
  %230 = vmatprep.subr.mxu0 0.0
  %231 = vmatpush1.msra.mxu0 0.0
  %232 = vmatprep.subr.mxu0 0.0
  %233 = vmatpush1.msra.mxu0 0.0
  %234 = vmatprep.subr.mxu0 0.0
  %235 = vmatpush1.msra.mxu0 0.0
  %236 = vmatprep.subr.mxu0 0.0
  %237 = vmatpush1.msra.mxu0 0.0
  %238 = vmatprep.subr.mxu0 0.0
  %239 = vmatpush1.msra.mxu0 0.0
  %240 = vmatprep.subr.mxu0 0.0
  %241 = vmatpush1.msra.mxu0 0.0
  %242 = vmatprep.subr.mxu0 0.0
  %243 = vmatpush1.msra.mxu0 0.0
  %244 = vmatprep.mubr.f32.mxu0 0.0
  %245 = vmatmul.mubr.f32.gmra.mrb[0].mxu0 %v178
  %v246 = vpop.f32.mrb[0].mxu0
  %v247 = vadd.f32 0.0, %v246
  %v248 = vpop.f32.mrb[0].mxu0
  %249 = vdwg.mxu0
  %v250 = vadd.f32 %v175, %v247
  %v251 = vxor.u32 %v250, 2147483648
  %v252 = vmul.f32 %v251, 1.442695
  %v253 = vpow.pop %v252
  %v254 = vadd.f32 %v253, 1.0
  %v255 = vrcp.pop %v254
  %v256 = vmul.f32 1.0, %v255
  %v257 = vmul.f32 %v256, 2.0
  %v258 = vsub.f32 %v257, 1.0
  %v259 = vmul.f32 %v256, 0.0
  %261 = vrot.lane.b32.xlu0 %v258, 64
  %v262 = vpop.permute.xlu0 %261
  %v264 = vmul.f32 %v256, %v262
  %266 = vrot.lane.b32.xlu0 %v264, 32
  %v267 = vpop.permute.xlu0 %266
  %v269 = vadd.f32 %v259, %v267
  %v270 = vmul.f32 %v269, 2.0
  %v271 = vxor.u32 %v270, 2147483648
  %v272 = vmul.f32 %v271, 1.442695
  %v273 = vpow.pop %v272
  %v274 = vadd.f32 %v273, 1.0
  %v275 = vrcp.pop %v274
  %v276 = vmul.f32 1.0, %v275
  %v277 = vmul.f32 %v276, 2.0
  %v278 = vsub.f32 %v277, 1.0
  %280 = vrot.lane.b32.xlu0 %v278, 64
  %v281 = vpop.permute.xlu0 %280
  %v283 = vmul.f32 %v256, %v281
  %284 = vmatprep.subr.mxu0 0.0
  %285 = vmatpush1.msra.mxu0 %v164
  %286 = vmatprep.subr.mxu0 0.0
  %287 = vmatpush1.msra.mxu0 %v165
  %288 = vmatprep.subr.mxu0 0.0
  %289 = vmatpush1.msra.mxu0 %v166
  %290 = vmatprep.subr.mxu0 0.0
  %291 = vmatpush1.msra.mxu0 %v167
  %292 = vmatprep.subr.mxu0 0.0
  %293 = vmatpush1.msra.mxu0 0.0
  %294 = vmatprep.subr.mxu0 0.0
  %295 = vmatpush1.msra.mxu0 0.0
  %296 = vmatprep.subr.mxu0 0.0
  %297 = vmatpush1.msra.mxu0 0.0
  %298 = vmatprep.subr.mxu0 0.0
  %299 = vmatpush1.msra.mxu0 0.0
  %300 = vmatprep.subr.mxu0 0.0
  %301 = vmatpush1.msra.mxu0 0.0
  %302 = vmatprep.subr.mxu0 0.0
  %303 = vmatpush1.msra.mxu0 0.0
  %304 = vmatprep.subr.mxu0 0.0
  %305 = vmatpush1.msra.mxu0 0.0
  %306 = vmatprep.subr.mxu0 0.0
  %307 = vmatpush1.msra.mxu0 0.0
  %308 = vmatprep.subr.mxu0 0.0
  %309 = vmatpush1.msra.mxu0 0.0
  %310 = vmatprep.subr.mxu0 0.0
  %311 = vmatpush1.msra.mxu0 0.0
  %312 = vmatprep.subr.mxu0 0.0
  %313 = vmatpush1.msra.mxu0 0.0
  %314 = vmatprep.subr.mxu0 0.0
  %315 = vmatpush1.msra.mxu0 0.0
  %316 = vmatprep.subr.mxu0 0.0
  %317 = vmatpush1.msra.mxu0 0.0
  %318 = vmatprep.subr.mxu0 0.0
  %319 = vmatpush1.msra.mxu0 0.0
  %320 = vmatprep.subr.mxu0 0.0
  %321 = vmatpush1.msra.mxu0 0.0
  %322 = vmatprep.subr.mxu0 0.0
  %323 = vmatpush1.msra.mxu0 0.0
  %324 = vmatprep.subr.mxu0 0.0
  %325 = vmatpush1.msra.mxu0 0.0
  %326 = vmatprep.subr.mxu0 0.0
  %327 = vmatpush1.msra.mxu0 0.0
  %328 = vmatprep.subr.mxu0 0.0
  %329 = vmatpush1.msra.mxu0 0.0
  %330 = vmatprep.subr.mxu0 0.0
  %331 = vmatpush1.msra.mxu0 0.0
  %332 = vmatprep.subr.mxu0 0.0
  %333 = vmatpush1.msra.mxu0 0.0
  %334 = vmatprep.subr.mxu0 0.0
  %335 = vmatpush1.msra.mxu0 0.0
  %336 = vmatprep.subr.mxu0 0.0
  %337 = vmatpush1.msra.mxu0 0.0
  %338 = vmatprep.subr.mxu0 0.0
  %339 = vmatpush1.msra.mxu0 0.0
  %340 = vmatprep.subr.mxu0 0.0
  %341 = vmatpush1.msra.mxu0 0.0
  %342 = vmatprep.subr.mxu0 0.0
  %343 = vmatpush1.msra.mxu0 0.0
  %344 = vmatprep.subr.mxu0 0.0
  %345 = vmatpush1.msra.mxu0 0.0
  %346 = vmatprep.subr.mxu0 0.0
  %347 = vmatpush1.msra.mxu0 0.0
  %348 = vmatprep.mubr.f32.mxu0 0.0
  %349 = vmatmul.mubr.f32.gmra.mrb[0].mxu0 %v178
  %v350 = vpop.f32.mrb[0].mxu0
  %v351 = vadd.f32 0.0, %v350
  %v352 = vpop.f32.mrb[0].mxu0
  %353 = vdwg.mxu0
  %355 = vrot.lane.b32.xlu0 %v283, 32
  %v356 = vpop.permute.xlu0 %355
  %v357 = vsel %vm176, %v356, 0
  %359 = vmatprep.subr.mxu0 0.0
  %360 = vmatpush1.msra.mxu0 %v160
  %361 = vmatprep.subr.mxu0 0.0
  %362 = vmatpush1.msra.mxu0 %v161
  %363 = vmatprep.subr.mxu0 0.0
  %364 = vmatpush1.msra.mxu0 %v162
  %365 = vmatprep.subr.mxu0 0.0
  %366 = vmatpush1.msra.mxu0 %v163
  %367 = vmatprep.subr.mxu0 0.0
  %368 = vmatpush1.msra.mxu0 0.0
  %369 = vmatprep.subr.mxu0 0.0
  %370 = vmatpush1.msra.mxu0 0.0
  %371 = vmatprep.subr.mxu0 0.0
  %372 = vmatpush1.msra.mxu0 0.0
  %373 = vmatprep.subr.mxu0 0.0
  %374 = vmatpush1.msra.mxu0 0.0
  %375 = vmatprep.subr.mxu0 0.0
  %376 = vmatpush1.msra.mxu0 0.0
  %377 = vmatprep.subr.mxu0 0.0
  %378 = vmatpush1.msra.mxu0 0.0
  %379 = vmatprep.subr.mxu0 0.0
  %380 = vmatpush1.msra.mxu0 0.0
  %381 = vmatprep.subr.mxu0 0.0
  %382 = vmatpush1.msra.mxu0 0.0
  %383 = vmatprep.subr.mxu0 0.0
  %384 = vmatpush1.msra.mxu0 0.0
  %385 = vmatprep.subr.mxu0 0.0
  %386 = vmatpush1.msra.mxu0 0.0
  %387 = vmatprep.subr.mxu0 0.0
  %388 = vmatpush1.msra.mxu0 0.0
  %389 = vmatprep.subr.mxu0 0.0
  %390 = vmatpush1.msra.mxu0 0.0
  %391 = vmatprep.subr.mxu0 0.0
  %392 = vmatpush1.msra.mxu0 0.0
  %393 = vmatprep.subr.mxu0 0.0
  %394 = vmatpush1.msra.mxu0 0.0
  %395 = vmatprep.subr.mxu0 0.0
  %396 = vmatpush1.msra.mxu0 0.0
  %397 = vmatprep.subr.mxu0 0.0
  %398 = vmatpush1.msra.mxu0 0.0
  %399 = vmatprep.subr.mxu0 0.0
  %400 = vmatpush1.msra.mxu0 0.0
  %401 = vmatprep.subr.mxu0 0.0
  %402 = vmatpush1.msra.mxu0 0.0
  %403 = vmatprep.subr.mxu0 0.0
  %404 = vmatpush1.msra.mxu0 0.0
  %405 = vmatprep.subr.mxu0 0.0
  %406 = vmatpush1.msra.mxu0 0.0
  %407 = vmatprep.subr.mxu0 0.0
  %408 = vmatpush1.msra.mxu0 0.0
  %409 = vmatprep.subr.mxu0 0.0
  %410 = vmatpush1.msra.mxu0 0.0
  %411 = vmatprep.subr.mxu0 0.0
  %412 = vmatpush1.msra.mxu0 0.0
  %413 = vmatprep.subr.mxu0 0.0
  %414 = vmatpush1.msra.mxu0 0.0
  %415 = vmatprep.subr.mxu0 0.0
  %416 = vmatpush1.msra.mxu0 0.0
  %417 = vmatprep.subr.mxu0 0.0
  %418 = vmatpush1.msra.mxu0 0.0
  %419 = vmatprep.subr.mxu0 0.0
  %420 = vmatpush1.msra.mxu0 0.0
  %421 = vmatprep.subr.mxu0 0.0
  %422 = vmatpush1.msra.mxu0 0.0
  %423 = vmatprep.mubr.f32.mxu0 0.0
  %424 = vmatmul.mubr.f32.gmra.mrb[0].mxu0 %v357
  %v425 = vpop.f32.mrb[0].mxu0
  %v426 = vadd.f32 %v351, %v425
  %v427 = vpop.f32.mrb[0].mxu0
  %428 = vdwg.mxu0
  %v429 = vadd.f32 %v426, %v173
  %v430 = vxor.u32 %v429, 2147483648
  %v431 = vmul.f32 %v430, 1.442695
  %v432 = vpow.pop %v431
  %v433 = vadd.f32 %v432, 1.0
  %v434 = vrcp.pop %v433
  %v435 = vmul.f32 1.0, %v434
  %v436 = vmul.f32 %v435, 2.0
  %v437 = vsub.f32 %v436, 1.0
  %v438 = vmul.f32 %v435, 0.0
  %440 = vrot.lane.b32.xlu0 %v437, 64
  %v441 = vpop.permute.xlu0 %440
  %v443 = vmul.f32 %v435, %v441
  %445 = vrot.lane.b32.xlu0 %v443, 32
  %v446 = vpop.permute.xlu0 %445
  %v448 = vadd.f32 %v438, %v446
  %v449 = vmul.f32 %v448, 2.0
  %v450 = vxor.u32 %v449, 2147483648
  %v451 = vmul.f32 %v450, 1.442695
  %v452 = vpow.pop %v451
  %v453 = vadd.f32 %v452, 1.0
  %v454 = vrcp.pop %v453
  %v455 = vmul.f32 1.0, %v454
  %v456 = vmul.f32 %v455, 2.0
  %v457 = vsub.f32 %v456, 1.0
  %459 = vrot.lane.b32.xlu0 %v457, 64
  %v460 = vpop.permute.xlu0 %459
  %v462 = vmul.f32 %v435, %v460
  %464 = vrot.lane.b32.xlu0 %v462, 32
  %v465 = vpop.permute.xlu0 %464
  %vm467 = vcmask 254976
  %468 = vst.msk [vmem:[#allocation3] sm:$0x3] %vm467, %v465
  %v469 = vld [vmem:[#allocation2 + $0x2] sm:$0x3]
  %470 = vmatprep.subr.mxu0 0.0
  %471 = vmatpush1.msra.mxu0 %v156
  %472 = vmatprep.subr.mxu0 0.0
  %473 = vmatpush1.msra.mxu0 %v157
  %474 = vmatprep.subr.mxu0 0.0
  %475 = vmatpush1.msra.mxu0 %v158
  %476 = vmatprep.subr.mxu0 0.0
  %477 = vmatpush1.msra.mxu0 %v159
  %478 = vmatprep.subr.mxu0 0.0
  %479 = vmatpush1.msra.mxu0 0.0
  %480 = vmatprep.subr.mxu0 0.0
  %481 = vmatpush1.msra.mxu0 0.0
  %482 = vmatprep.subr.mxu0 0.0
  %483 = vmatpush1.msra.mxu0 0.0
  %484 = vmatprep.subr.mxu0 0.0
  %485 = vmatpush1.msra.mxu0 0.0
  %486 = vmatprep.subr.mxu0 0.0
  %487 = vmatpush1.msra.mxu0 0.0
  %488 = vmatprep.subr.mxu0 0.0
  %489 = vmatpush1.msra.mxu0 0.0
  %490 = vmatprep.subr.mxu0 0.0
  %491 = vmatpush1.msra.mxu0 0.0
  %492 = vmatprep.subr.mxu0 0.0
  %493 = vmatpush1.msra.mxu0 0.0
  %494 = vmatprep.subr.mxu0 0.0
  %495 = vmatpush1.msra.mxu0 0.0
  %496 = vmatprep.subr.mxu0 0.0
  %497 = vmatpush1.msra.mxu0 0.0
  %498 = vmatprep.subr.mxu0 0.0
  %499 = vmatpush1.msra.mxu0 0.0
  %500 = vmatprep.subr.mxu0 0.0
  %501 = vmatpush1.msra.mxu0 0.0
  %502 = vmatprep.subr.mxu0 0.0
  %503 = vmatpush1.msra.mxu0 0.0
  %504 = vmatprep.subr.mxu0 0.0
  %505 = vmatpush1.msra.mxu0 0.0
  %506 = vmatprep.subr.mxu0 0.0
  %507 = vmatpush1.msra.mxu0 0.0
  %508 = vmatprep.subr.mxu0 0.0
  %509 = vmatpush1.msra.mxu0 0.0
  %510 = vmatprep.subr.mxu0 0.0
  %511 = vmatpush1.msra.mxu0 0.0
  %512 = vmatprep.subr.mxu0 0.0
  %513 = vmatpush1.msra.mxu0 0.0
  %514 = vmatprep.subr.mxu0 0.0
  %515 = vmatpush1.msra.mxu0 0.0
  %516 = vmatprep.subr.mxu0 0.0
  %517 = vmatpush1.msra.mxu0 0.0
  %518 = vmatprep.subr.mxu0 0.0
  %519 = vmatpush1.msra.mxu0 0.0
  %520 = vmatprep.subr.mxu0 0.0
  %521 = vmatpush1.msra.mxu0 0.0
  %522 = vmatprep.subr.mxu0 0.0
  %523 = vmatpush1.msra.mxu0 0.0
  %524 = vmatprep.subr.mxu0 0.0
  %525 = vmatpush1.msra.mxu0 0.0
  %526 = vmatprep.subr.mxu0 0.0
  %527 = vmatpush1.msra.mxu0 0.0
  %528 = vmatprep.subr.mxu0 0.0
  %529 = vmatpush1.msra.mxu0 0.0
  %530 = vmatprep.subr.mxu0 0.0
  %531 = vmatpush1.msra.mxu0 0.0
  %532 = vmatprep.subr.mxu0 0.0
  %533 = vmatpush1.msra.mxu0 0.0
  %534 = vmatprep.mubr.f32.mxu0 0.0
  %535 = vmatmul.mubr.f32.gmra.mrb[0].mxu0 %v357
  %v536 = vpop.f32.mrb[0].mxu0
  %v537 = vadd.f32 0.0, %v536
  %v538 = vpop.f32.mrb[0].mxu0
  %539 = vdwg.mxu0
  %v540 = vadd.f32 %v469, %v537
  %v541 = vxor.u32 %v540, 2147483648
  %v542 = vmul.f32 %v541, 1.442695
  %v543 = vpow.pop %v542
  %v544 = vadd.f32 %v543, 1.0
  %v545 = vrcp.pop %v544
  %v546 = vmul.f32 1.0, %v545
  %v547 = vmul.f32 %v546, 2.0
  %v548 = vsub.f32 %v547, 1.0
  %v549 = vmul.f32 %v546, %v269
  %551 = vrot.lane.b32.xlu0 %v548, 64
  %v552 = vpop.permute.xlu0 %551
  %v554 = vmul.f32 %v546, %v552
  %556 = vrot.lane.b32.xlu0 %v554, 32
  %v557 = vpop.permute.xlu0 %556
  %v559 = vadd.f32 %v549, %v557
  %v560 = vmul.f32 %v559, 2.0
  %v561 = vxor.u32 %v560, 2147483648
  %v562 = vmul.f32 %v561, 1.442695
  %v563 = vpow.pop %v562
  %v564 = vadd.f32 %v563, 1.0
  %v565 = vrcp.pop %v564
  %v566 = vmul.f32 1.0, %v565
  %v567 = vmul.f32 %v566, 2.0
  %v568 = vsub.f32 %v567, 1.0
  %570 = vrot.lane.b32.xlu0 %v568, 64
  %v571 = vpop.permute.xlu0 %570
  %v573 = vmul.f32 %v546, %v571
  %v574 = vsel %vm176, %v465, 0
  %576 = vmatprep.subr.mxu0 0.0
  %577 = vmatpush1.msra.mxu0 %v164
  %578 = vmatprep.subr.mxu0 0.0
  %579 = vmatpush1.msra.mxu0 %v165
  %580 = vmatprep.subr.mxu0 0.0
  %581 = vmatpush1.msra.mxu0 %v166
  %582 = vmatprep.subr.mxu0 0.0
  %583 = vmatpush1.msra.mxu0 %v167
  %584 = vmatprep.subr.mxu0 0.0
  %585 = vmatpush1.msra.mxu0 0.0
  %586 = vmatprep.subr.mxu0 0.0
  %587 = vmatpush1.msra.mxu0 0.0
  %588 = vmatprep.subr.mxu0 0.0
  %589 = vmatpush1.msra.mxu0 0.0
  %590 = vmatprep.subr.mxu0 0.0
  %591 = vmatpush1.msra.mxu0 0.0
  %592 = vmatprep.subr.mxu0 0.0
  %593 = vmatpush1.msra.mxu0 0.0
  %594 = vmatprep.subr.mxu0 0.0
  %595 = vmatpush1.msra.mxu0 0.0
  %596 = vmatprep.subr.mxu0 0.0
  %597 = vmatpush1.msra.mxu0 0.0
  %598 = vmatprep.subr.mxu0 0.0
  %599 = vmatpush1.msra.mxu0 0.0
  %600 = vmatprep.subr.mxu0 0.0
  %601 = vmatpush1.msra.mxu0 0.0
  %602 = vmatprep.subr.mxu0 0.0
  %603 = vmatpush1.msra.mxu0 0.0
  %604 = vmatprep.subr.mxu0 0.0
  %605 = vmatpush1.msra.mxu0 0.0
  %606 = vmatprep.subr.mxu0 0.0
  %607 = vmatpush1.msra.mxu0 0.0
  %608 = vmatprep.subr.mxu0 0.0
  %609 = vmatpush1.msra.mxu0 0.0
  %610 = vmatprep.subr.mxu0 0.0
  %611 = vmatpush1.msra.mxu0 0.0
  %612 = vmatprep.subr.mxu0 0.0
  %613 = vmatpush1.msra.mxu0 0.0
  %614 = vmatprep.subr.mxu0 0.0
  %615 = vmatpush1.msra.mxu0 0.0
  %616 = vmatprep.subr.mxu0 0.0
  %617 = vmatpush1.msra.mxu0 0.0
  %618 = vmatprep.subr.mxu0 0.0
  %619 = vmatpush1.msra.mxu0 0.0
  %620 = vmatprep.subr.mxu0 0.0
  %621 = vmatpush1.msra.mxu0 0.0
  %622 = vmatprep.subr.mxu0 0.0
  %623 = vmatpush1.msra.mxu0 0.0
  %624 = vmatprep.subr.mxu0 0.0
  %625 = vmatpush1.msra.mxu0 0.0
  %626 = vmatprep.subr.mxu0 0.0
  %627 = vmatpush1.msra.mxu0 0.0
  %628 = vmatprep.subr.mxu0 0.0
  %629 = vmatpush1.msra.mxu0 0.0
  %630 = vmatprep.subr.mxu0 0.0
  %631 = vmatpush1.msra.mxu0 0.0
  %632 = vmatprep.subr.mxu0 0.0
  %633 = vmatpush1.msra.mxu0 0.0
  %634 = vmatprep.subr.mxu0 0.0
  %635 = vmatpush1.msra.mxu0 0.0
  %636 = vmatprep.subr.mxu0 0.0
  %637 = vmatpush1.msra.mxu0 0.0
  %638 = vmatprep.subr.mxu0 0.0
  %639 = vmatpush1.msra.mxu0 0.0
  %640 = vmatprep.mubr.f32.mxu0 0.0
  %641 = vmatmul.mubr.f32.gmra.mrb[0].mxu0 %v574
  %v642 = vpop.f32.mrb[0].mxu0
  %v643 = vadd.f32 0.0, %v642
  %v644 = vpop.f32.mrb[0].mxu0
  %645 = vdwg.mxu0
  %647 = vrot.lane.b32.xlu0 %v573, 32
  %v648 = vpop.permute.xlu0 %647
  %v649 = vsel %vm176, %v648, 0
  %651 = vmatprep.subr.mxu0 0.0
  %652 = vmatpush1.msra.mxu0 %v160
  %653 = vmatprep.subr.mxu0 0.0
  %654 = vmatpush1.msra.mxu0 %v161
  %655 = vmatprep.subr.mxu0 0.0
  %656 = vmatpush1.msra.mxu0 %v162
  %657 = vmatprep.subr.mxu0 0.0
  %658 = vmatpush1.msra.mxu0 %v163
  %659 = vmatprep.subr.mxu0 0.0
  %660 = vmatpush1.msra.mxu0 0.0
  %661 = vmatprep.subr.mxu0 0.0
  %662 = vmatpush1.msra.mxu0 0.0
  %663 = vmatprep.subr.mxu0 0.0
  %664 = vmatpush1.msra.mxu0 0.0
  %665 = vmatprep.subr.mxu0 0.0
  %666 = vmatpush1.msra.mxu0 0.0
  %667 = vmatprep.subr.mxu0 0.0
  %668 = vmatpush1.msra.mxu0 0.0
  %669 = vmatprep.subr.mxu0 0.0
  %670 = vmatpush1.msra.mxu0 0.0
  %671 = vmatprep.subr.mxu0 0.0
  %672 = vmatpush1.msra.mxu0 0.0
  %673 = vmatprep.subr.mxu0 0.0
  %674 = vmatpush1.msra.mxu0 0.0
  %675 = vmatprep.subr.mxu0 0.0
  %676 = vmatpush1.msra.mxu0 0.0
  %677 = vmatprep.subr.mxu0 0.0
  %678 = vmatpush1.msra.mxu0 0.0
  %679 = vmatprep.subr.mxu0 0.0
  %680 = vmatpush1.msra.mxu0 0.0
  %681 = vmatprep.subr.mxu0 0.0
  %682 = vmatpush1.msra.mxu0 0.0
  %683 = vmatprep.subr.mxu0 0.0
  %684 = vmatpush1.msra.mxu0 0.0
  %685 = vmatprep.subr.mxu0 0.0
  %686 = vmatpush1.msra.mxu0 0.0
  %687 = vmatprep.subr.mxu0 0.0
  %688 = vmatpush1.msra.mxu0 0.0
  %689 = vmatprep.subr.mxu0 0.0
  %690 = vmatpush1.msra.mxu0 0.0
  %691 = vmatprep.subr.mxu0 0.0
  %692 = vmatpush1.msra.mxu0 0.0
  %693 = vmatprep.subr.mxu0 0.0
  %694 = vmatpush1.msra.mxu0 0.0
  %695 = vmatprep.subr.mxu0 0.0
  %696 = vmatpush1.msra.mxu0 0.0
  %697 = vmatprep.subr.mxu0 0.0
  %698 = vmatpush1.msra.mxu0 0.0
  %699 = vmatprep.subr.mxu0 0.0
  %700 = vmatpush1.msra.mxu0 0.0
  %701 = vmatprep.subr.mxu0 0.0
  %702 = vmatpush1.msra.mxu0 0.0
  %703 = vmatprep.subr.mxu0 0.0
  %704 = vmatpush1.msra.mxu0 0.0
  %705 = vmatprep.subr.mxu0 0.0
  %706 = vmatpush1.msra.mxu0 0.0
  %707 = vmatprep.subr.mxu0 0.0
  %708 = vmatpush1.msra.mxu0 0.0
  %709 = vmatprep.subr.mxu0 0.0
  %710 = vmatpush1.msra.mxu0 0.0
  %711 = vmatprep.subr.mxu0 0.0
  %712 = vmatpush1.msra.mxu0 0.0
  %713 = vmatprep.subr.mxu0 0.0
  %714 = vmatpush1.msra.mxu0 0.0
  %715 = vmatprep.mubr.f32.mxu0 0.0
  %716 = vmatmul.mubr.f32.gmra.mrb[0].mxu0 %v649
  %v717 = vpop.f32.mrb[0].mxu0
  %v718 = vadd.f32 %v643, %v717
  %v719 = vpop.f32.mrb[0].mxu0
  %720 = vdwg.mxu0
  %v721 = vadd.f32 %v718, %v173
  %v722 = vxor.u32 %v721, 2147483648
  %v723 = vmul.f32 %v722, 1.442695
  %v724 = vpow.pop %v723
  %v725 = vadd.f32 %v724, 1.0
  %v726 = vrcp.pop %v725
  %v727 = vmul.f32 1.0, %v726
  %v728 = vmul.f32 %v727, 2.0
  %v729 = vsub.f32 %v728, 1.0
  %v730 = vmul.f32 %v727, %v448
  %732 = vrot.lane.b32.xlu0 %v729, 64
  %v733 = vpop.permute.xlu0 %732
  %v735 = vmul.f32 %v727, %v733
  %737 = vrot.lane.b32.xlu0 %v735, 32
  %v738 = vpop.permute.xlu0 %737
  %v740 = vadd.f32 %v730, %v738
  %v741 = vmul.f32 %v740, 2.0
  %v742 = vxor.u32 %v741, 2147483648
  %v743 = vmul.f32 %v742, 1.442695
  %v744 = vpow.pop %v743
  %v745 = vadd.f32 %v744, 1.0
  %v746 = vrcp.pop %v745
  %v747 = vmul.f32 1.0, %v746
  %v748 = vmul.f32 %v747, 2.0
  %v749 = vsub.f32 %v748, 1.0
  %751 = vrot.lane.b32.xlu0 %v749, 64
  %v752 = vpop.permute.xlu0 %751
  %v754 = vmul.f32 %v727, %v752
  %756 = vrot.lane.b32.xlu0 %v754, 32
  %v757 = vpop.permute.xlu0 %756
  %759 = vst.msk [vmem:[#allocation3 + $0x2] sm:$0x3] %vm467, %v757
  %v760 = vld [vmem:[#allocation2 + $0x4] sm:$0x3]
  %761 = vmatprep.subr.mxu0 0.0
  %762 = vmatpush1.msra.mxu0 %v156
  %763 = vmatprep.subr.mxu0 0.0
  %764 = vmatpush1.msra.mxu0 %v157
  %765 = vmatprep.subr.mxu0 0.0
  %766 = vmatpush1.msra.mxu0 %v158
  %767 = vmatprep.subr.mxu0 0.0
  %768 = vmatpush1.msra.mxu0 %v159
  %769 = vmatprep.subr.mxu0 0.0
  %770 = vmatpush1.msra.mxu0 0.0
  %771 = vmatprep.subr.mxu0 0.0
  %772 = vmatpush1.msra.mxu0 0.0
  %773 = vmatprep.subr.mxu0 0.0
  %774 = vmatpush1.msra.mxu0 0.0
  %775 = vmatprep.subr.mxu0 0.0
  %776 = vmatpush1.msra.mxu0 0.0
  %777 = vmatprep.subr.mxu0 0.0
  %778 = vmatpush1.msra.mxu0 0.0
  %779 = vmatprep.subr.mxu0 0.0
  %780 = vmatpush1.msra.mxu0 0.0
  %781 = vmatprep.subr.mxu0 0.0
  %782 = vmatpush1.msra.mxu0 0.0
  %783 = vmatprep.subr.mxu0 0.0
  %784 = vmatpush1.msra.mxu0 0.0
  %785 = vmatprep.subr.mxu0 0.0
  %786 = vmatpush1.msra.mxu0 0.0
  %787 = vmatprep.subr.mxu0 0.0
  %788 = vmatpush1.msra.mxu0 0.0
  %789 = vmatprep.subr.mxu0 0.0
  %790 = vmatpush1.msra.mxu0 0.0
  %791 = vmatprep.subr.mxu0 0.0
  %792 = vmatpush1.msra.mxu0 0.0
  %793 = vmatprep.subr.mxu0 0.0
  %794 = vmatpush1.msra.mxu0 0.0
  %795 = vmatprep.subr.mxu0 0.0
  %796 = vmatpush1.msra.mxu0 0.0
  %797 = vmatprep.subr.mxu0 0.0
  %798 = vmatpush1.msra.mxu0 0.0
  %799 = vmatprep.subr.mxu0 0.0
  %800 = vmatpush1.msra.mxu0 0.0
  %801 = vmatprep.subr.mxu0 0.0
  %802 = vmatpush1.msra.mxu0 0.0
  %803 = vmatprep.subr.mxu0 0.0
  %804 = vmatpush1.msra.mxu0 0.0
  %805 = vmatprep.subr.mxu0 0.0
  %806 = vmatpush1.msra.mxu0 0.0
  %807 = vmatprep.subr.mxu0 0.0
  %808 = vmatpush1.msra.mxu0 0.0
  %809 = vmatprep.subr.mxu0 0.0
  %810 = vmatpush1.msra.mxu0 0.0
  %811 = vmatprep.subr.mxu0 0.0
  %812 = vmatpush1.msra.mxu0 0.0
  %813 = vmatprep.subr.mxu0 0.0
  %814 = vmatpush1.msra.mxu0 0.0
  %815 = vmatprep.subr.mxu0 0.0
  %816 = vmatpush1.msra.mxu0 0.0
  %817 = vmatprep.subr.mxu0 0.0
  %818 = vmatpush1.msra.mxu0 0.0
  %819 = vmatprep.subr.mxu0 0.0
  %820 = vmatpush1.msra.mxu0 0.0
  %821 = vmatprep.subr.mxu0 0.0
  %822 = vmatpush1.msra.mxu0 0.0
  %823 = vmatprep.subr.mxu0 0.0
  %824 = vmatpush1.msra.mxu0 0.0
  %825 = vmatprep.mubr.f32.mxu0 0.0
  %826 = vmatmul.mubr.f32.gmra.mrb[0].mxu0 %v649
  %v827 = vpop.f32.mrb[0].mxu0
  %v828 = vadd.f32 0.0, %v827
  %v829 = vpop.f32.mrb[0].mxu0
  %830 = vdwg.mxu0
  %v831 = vadd.f32 %v760, %v828
  %v832 = vxor.u32 %v831, 2147483648
  %v833 = vmul.f32 %v832, 1.442695
  %v834 = vpow.pop %v833
  %v835 = vadd.f32 %v834, 1.0
  %v836 = vrcp.pop %v835
  %v837 = vmul.f32 1.0, %v836
  %v838 = vmul.f32 %v837, 2.0
  %v839 = vsub.f32 %v838, 1.0
  %v840 = vmul.f32 %v837, %v559
  %842 = vrot.lane.b32.xlu0 %v839, 64
  %v843 = vpop.permute.xlu0 %842
  %v845 = vmul.f32 %v837, %v843
  %847 = vrot.lane.b32.xlu0 %v845, 32
  %v848 = vpop.permute.xlu0 %847
  %v850 = vadd.f32 %v840, %v848
  %v851 = vmul.f32 %v850, 2.0
  %v852 = vxor.u32 %v851, 2147483648
  %v853 = vmul.f32 %v852, 1.442695
  %v854 = vpow.pop %v853
  %v855 = vadd.f32 %v854, 1.0
  %v856 = vrcp.pop %v855
  %v857 = vmul.f32 1.0, %v856
  %v858 = vmul.f32 %v857, 2.0
  %v859 = vsub.f32 %v858, 1.0
  %861 = vrot.lane.b32.xlu0 %v859, 64
  %v862 = vpop.permute.xlu0 %861
  %v864 = vmul.f32 %v837, %v862
  %v865 = vsel %vm176, %v757, 0
  %867 = vmatprep.subr.mxu0 0.0
  %868 = vmatpush1.msra.mxu0 %v164
  %869 = vmatprep.subr.mxu0 0.0
  %870 = vmatpush1.msra.mxu0 %v165
  %871 = vmatprep.subr.mxu0 0.0
  %872 = vmatpush1.msra.mxu0 %v166
  %873 = vmatprep.subr.mxu0 0.0
  %874 = vmatpush1.msra.mxu0 %v167
  %875 = vmatprep.subr.mxu0 0.0
  %876 = vmatpush1.msra.mxu0 0.0
  %877 = vmatprep.subr.mxu0 0.0
  %878 = vmatpush1.msra.mxu0 0.0
  %879 = vmatprep.subr.mxu0 0.0
  %880 = vmatpush1.msra.mxu0 0.0
  %881 = vmatprep.subr.mxu0 0.0
  %882 = vmatpush1.msra.mxu0 0.0
  %883 = vmatprep.subr.mxu0 0.0
  %884 = vmatpush1.msra.mxu0 0.0
  %885 = vmatprep.subr.mxu0 0.0
  %886 = vmatpush1.msra.mxu0 0.0
  %887 = vmatprep.subr.mxu0 0.0
  %888 = vmatpush1.msra.mxu0 0.0
  %889 = vmatprep.subr.mxu0 0.0
  %890 = vmatpush1.msra.mxu0 0.0
  %891 = vmatprep.subr.mxu0 0.0
  %892 = vmatpush1.msra.mxu0 0.0
  %893 = vmatprep.subr.mxu0 0.0
  %894 = vmatpush1.msra.mxu0 0.0
  %895 = vmatprep.subr.mxu0 0.0
  %896 = vmatpush1.msra.mxu0 0.0
  %897 = vmatprep.subr.mxu0 0.0
  %898 = vmatpush1.msra.mxu0 0.0
  %899 = vmatprep.subr.mxu0 0.0
  %900 = vmatpush1.msra.mxu0 0.0
  %901 = vmatprep.subr.mxu0 0.0
  %902 = vmatpush1.msra.mxu0 0.0
  %903 = vmatprep.subr.mxu0 0.0
  %904 = vmatpush1.msra.mxu0 0.0
  %905 = vmatprep.subr.mxu0 0.0
  %906 = vmatpush1.msra.mxu0 0.0
  %907 = vmatprep.subr.mxu0 0.0
  %908 = vmatpush1.msra.mxu0 0.0
  %909 = vmatprep.subr.mxu0 0.0
  %910 = vmatpush1.msra.mxu0 0.0
  %911 = vmatprep.subr.mxu0 0.0
  %912 = vmatpush1.msra.mxu0 0.0
  %913 = vmatprep.subr.mxu0 0.0
  %914 = vmatpush1.msra.mxu0 0.0
  %915 = vmatprep.subr.mxu0 0.0
  %916 = vmatpush1.msra.mxu0 0.0
  %917 = vmatprep.subr.mxu0 0.0
  %918 = vmatpush1.msra.mxu0 0.0
  %919 = vmatprep.subr.mxu0 0.0
  %920 = vmatpush1.msra.mxu0 0.0
  %921 = vmatprep.subr.mxu0 0.0
  %922 = vmatpush1.msra.mxu0 0.0
  %923 = vmatprep.subr.mxu0 0.0
  %924 = vmatpush1.msra.mxu0 0.0
  %925 = vmatprep.subr.mxu0 0.0
  %926 = vmatpush1.msra.mxu0 0.0
  %927 = vmatprep.subr.mxu0 0.0
  %928 = vmatpush1.msra.mxu0 0.0
  %929 = vmatprep.subr.mxu0 0.0
  %930 = vmatpush1.msra.mxu0 0.0
  %931 = vmatprep.mubr.f32.mxu0 0.0
  %932 = vmatmul.mubr.f32.gmra.mrb[0].mxu0 %v865
  %v933 = vpop.f32.mrb[0].mxu0
  %v934 = vadd.f32 0.0, %v933
  %v935 = vpop.f32.mrb[0].mxu0
  %936 = vdwg.mxu0
  %938 = vrot.lane.b32.xlu0 %v864, 32
  %v939 = vpop.permute.xlu0 %938
  %v940 = vsel %vm176, %v939, 0
  %942 = vmatprep.subr.mxu0 0.0
  %943 = vmatpush1.msra.mxu0 %v160
  %944 = vmatprep.subr.mxu0 0.0
  %945 = vmatpush1.msra.mxu0 %v161
  %946 = vmatprep.subr.mxu0 0.0
  %947 = vmatpush1.msra.mxu0 %v162
  %948 = vmatprep.subr.mxu0 0.0
  %949 = vmatpush1.msra.mxu0 %v163
  %950 = vmatprep.subr.mxu0 0.0
  %951 = vmatpush1.msra.mxu0 0.0
  %952 = vmatprep.subr.mxu0 0.0
  %953 = vmatpush1.msra.mxu0 0.0
  %954 = vmatprep.subr.mxu0 0.0
  %955 = vmatpush1.msra.mxu0 0.0
  %956 = vmatprep.subr.mxu0 0.0
  %957 = vmatpush1.msra.mxu0 0.0
  %958 = vmatprep.subr.mxu0 0.0
  %959 = vmatpush1.msra.mxu0 0.0
  %960 = vmatprep.subr.mxu0 0.0
  %961 = vmatpush1.msra.mxu0 0.0
  %962 = vmatprep.subr.mxu0 0.0
  %963 = vmatpush1.msra.mxu0 0.0
  %964 = vmatprep.subr.mxu0 0.0
  %965 = vmatpush1.msra.mxu0 0.0
  %966 = vmatprep.subr.mxu0 0.0
  %967 = vmatpush1.msra.mxu0 0.0
  %968 = vmatprep.subr.mxu0 0.0
  %969 = vmatpush1.msra.mxu0 0.0
  %970 = vmatprep.subr.mxu0 0.0
  %971 = vmatpush1.msra.mxu0 0.0
  %972 = vmatprep.subr.mxu0 0.0
  %973 = vmatpush1.msra.mxu0 0.0
  %974 = vmatprep.subr.mxu0 0.0
  %975 = vmatpush1.msra.mxu0 0.0
  %976 = vmatprep.subr.mxu0 0.0
  %977 = vmatpush1.msra.mxu0 0.0
  %978 = vmatprep.subr.mxu0 0.0
  %979 = vmatpush1.msra.mxu0 0.0
  %980 = vmatprep.subr.mxu0 0.0
  %981 = vmatpush1.msra.mxu0 0.0
  %982 = vmatprep.subr.mxu0 0.0
  %983 = vmatpush1.msra.mxu0 0.0
  %984 = vmatprep.subr.mxu0 0.0
  %985 = vmatpush1.msra.mxu0 0.0
  %986 = vmatprep.subr.mxu0 0.0
  %987 = vmatpush1.msra.mxu0 0.0
  %988 = vmatprep.subr.mxu0 0.0
  %989 = vmatpush1.msra.mxu0 0.0
  %990 = vmatprep.subr.mxu0 0.0
  %991 = vmatpush1.msra.mxu0 0.0
  %992 = vmatprep.subr.mxu0 0.0
  %993 = vmatpush1.msra.mxu0 0.0
  %994 = vmatprep.subr.mxu0 0.0
  %995 = vmatpush1.msra.mxu0 0.0
  %996 = vmatprep.subr.mxu0 0.0
  %997 = vmatpush1.msra.mxu0 0.0
  %998 = vmatprep.subr.mxu0 0.0
  %999 = vmatpush1.msra.mxu0 0.0
  %1000 = vmatprep.subr.mxu0 0.0
  %1001 = vmatpush1.msra.mxu0 0.0
  %1002 = vmatprep.subr.mxu0 0.0
  %1003 = vmatpush1.msra.mxu0 0.0
  %1004 = vmatprep.subr.mxu0 0.0
  %1005 = vmatpush1.msra.mxu0 0.0
  %1006 = vmatprep.mubr.f32.mxu0 0.0
  %1007 = vmatmul.mubr.f32.gmra.mrb[0].mxu0 %v940
  %v1008 = vpop.f32.mrb[0].mxu0
  %v1009 = vadd.f32 %v934, %v1008
  %v1010 = vpop.f32.mrb[0].mxu0
  %1011 = vdwg.mxu0
  %v1012 = vadd.f32 %v1009, %v173
  %v1013 = vxor.u32 %v1012, 2147483648
  %v1014 = vmul.f32 %v1013, 1.442695
  %v1015 = vpow.pop %v1014
  %v1016 = vadd.f32 %v1015, 1.0
  %v1017 = vrcp.pop %v1016
  %v1018 = vmul.f32 1.0, %v1017
  %v1019 = vmul.f32 %v1018, 2.0
  %v1020 = vsub.f32 %v1019, 1.0
  %v1021 = vmul.f32 %v1018, %v740
  %1023 = vrot.lane.b32.xlu0 %v1020, 64
  %v1024 = vpop.permute.xlu0 %1023
  %v1026 = vmul.f32 %v1018, %v1024
  %1028 = vrot.lane.b32.xlu0 %v1026, 32
  %v1029 = vpop.permute.xlu0 %1028
  %v1031 = vadd.f32 %v1021, %v1029
  %v1032 = vmul.f32 %v1031, 2.0
  %v1033 = vxor.u32 %v1032, 2147483648
  %v1034 = vmul.f32 %v1033, 1.442695
  %v1035 = vpow.pop %v1034
  %v1036 = vadd.f32 %v1035, 1.0
  %v1037 = vrcp.pop %v1036
  %v1038 = vmul.f32 1.0, %v1037
  %v1039 = vmul.f32 %v1038, 2.0
  %v1040 = vsub.f32 %v1039, 1.0
  %1042 = vrot.lane.b32.xlu0 %v1040, 64
  %v1043 = vpop.permute.xlu0 %1042
  %v1045 = vmul.f32 %v1018, %v1043
  %1047 = vrot.lane.b32.xlu0 %v1045, 32
  %v1048 = vpop.permute.xlu0 %1047
  %1050 = vst.msk [vmem:[#allocation3 + $0x4] sm:$0x3] %vm467, %v1048
  %v1051 = vld [vmem:[#allocation2 + $0x6] sm:$0x3]
  %1052 = vmatprep.subr.mxu0 0.0
  %1053 = vmatpush1.msra.mxu0 %v156
  %1054 = vmatprep.subr.mxu0 0.0
  %1055 = vmatpush1.msra.mxu0 %v157
  %1056 = vmatprep.subr.mxu0 0.0
  %1057 = vmatpush1.msra.mxu0 %v158
  %1058 = vmatprep.subr.mxu0 0.0
  %1059 = vmatpush1.msra.mxu0 %v159
  %1060 = vmatprep.subr.mxu0 0.0
  %1061 = vmatpush1.msra.mxu0 0.0
  %1062 = vmatprep.subr.mxu0 0.0
  %1063 = vmatpush1.msra.mxu0 0.0
  %1064 = vmatprep.subr.mxu0 0.0
  %1065 = vmatpush1.msra.mxu0 0.0
  %1066 = vmatprep.subr.mxu0 0.0
  %1067 = vmatpush1.msra.mxu0 0.0
  %1068 = vmatprep.subr.mxu0 0.0
  %1069 = vmatpush1.msra.mxu0 0.0
  %1070 = vmatprep.subr.mxu0 0.0
  %1071 = vmatpush1.msra.mxu0 0.0
  %1072 = vmatprep.subr.mxu0 0.0
  %1073 = vmatpush1.msra.mxu0 0.0
  %1074 = vmatprep.subr.mxu0 0.0
  %1075 = vmatpush1.msra.mxu0 0.0
  %1076 = vmatprep.subr.mxu0 0.0
  %1077 = vmatpush1.msra.mxu0 0.0
  %1078 = vmatprep.subr.mxu0 0.0
  %1079 = vmatpush1.msra.mxu0 0.0
  %1080 = vmatprep.subr.mxu0 0.0
  %1081 = vmatpush1.msra.mxu0 0.0
  %1082 = vmatprep.subr.mxu0 0.0
  %1083 = vmatpush1.msra.mxu0 0.0
  %1084 = vmatprep.subr.mxu0 0.0
  %1085 = vmatpush1.msra.mxu0 0.0
  %1086 = vmatprep.subr.mxu0 0.0
  %1087 = vmatpush1.msra.mxu0 0.0
  %1088 = vmatprep.subr.mxu0 0.0
  %1089 = vmatpush1.msra.mxu0 0.0
  %1090 = vmatprep.subr.mxu0 0.0
  %1091 = vmatpush1.msra.mxu0 0.0
  %1092 = vmatprep.subr.mxu0 0.0
  %1093 = vmatpush1.msra.mxu0 0.0
  %1094 = vmatprep.subr.mxu0 0.0
  %1095 = vmatpush1.msra.mxu0 0.0
  %1096 = vmatprep.subr.mxu0 0.0
  %1097 = vmatpush1.msra.mxu0 0.0
  %1098 = vmatprep.subr.mxu0 0.0
  %1099 = vmatpush1.msra.mxu0 0.0
  %1100 = vmatprep.subr.mxu0 0.0
  %1101 = vmatpush1.msra.mxu0 0.0
  %1102 = vmatprep.subr.mxu0 0.0
  %1103 = vmatpush1.msra.mxu0 0.0
  %1104 = vmatprep.subr.mxu0 0.0
  %1105 = vmatpush1.msra.mxu0 0.0
  %1106 = vmatprep.subr.mxu0 0.0
  %1107 = vmatpush1.msra.mxu0 0.0
  %1108 = vmatprep.subr.mxu0 0.0
  %1109 = vmatpush1.msra.mxu0 0.0
  %1110 = vmatprep.subr.mxu0 0.0
  %1111 = vmatpush1.msra.mxu0 0.0
  %1112 = vmatprep.subr.mxu0 0.0
  %1113 = vmatpush1.msra.mxu0 0.0
  %1114 = vmatprep.subr.mxu0 0.0
  %1115 = vmatpush1.msra.mxu0 0.0
  %1116 = vmatprep.mubr.f32.mxu0 0.0
  %1117 = vmatmul.mubr.f32.gmra.mrb[0].mxu0 %v940
  %v1118 = vpop.f32.mrb[0].mxu0
  %v1119 = vadd.f32 0.0, %v1118
  %v1120 = vpop.f32.mrb[0].mxu0
  %1121 = vdwg.mxu0
  %v1122 = vadd.f32 %v1051, %v1119
  %v1123 = vxor.u32 %v1122, 2147483648
  %v1124 = vmul.f32 %v1123, 1.442695
  %v1125 = vpow.pop %v1124
  %v1126 = vadd.f32 %v1125, 1.0
  %v1127 = vrcp.pop %v1126
  %v1128 = vmul.f32 1.0, %v1127
  %v1129 = vmul.f32 %v1128, 2.0
  %v1130 = vsub.f32 %v1129, 1.0
  %v1131 = vmul.f32 %v1128, %v850
  %1133 = vrot.lane.b32.xlu0 %v1130, 64
  %v1134 = vpop.permute.xlu0 %1133
  %v1136 = vmul.f32 %v1128, %v1134
  %1138 = vrot.lane.b32.xlu0 %v1136, 32
  %v1139 = vpop.permute.xlu0 %1138
  %v1141 = vadd.f32 %v1131, %v1139
  %v1142 = vmul.f32 %v1141, 2.0
  %v1143 = vxor.u32 %v1142, 2147483648
  %v1144 = vmul.f32 %v1143, 1.442695
  %v1145 = vpow.pop %v1144
  %v1146 = vadd.f32 %v1145, 1.0
  %v1147 = vrcp.pop %v1146
  %v1148 = vmul.f32 1.0, %v1147
  %v1149 = vmul.f32 %v1148, 2.0
  %v1150 = vsub.f32 %v1149, 1.0
  %1152 = vrot.lane.b32.xlu0 %v1150, 64
  %v1153 = vpop.permute.xlu0 %1152
  %v1155 = vmul.f32 %v1128, %v1153
  %v1156 = vsel %vm176, %v1048, 0
  %1158 = vmatprep.subr.mxu0 0.0
  %1159 = vmatpush1.msra.mxu0 %v164
  %1160 = vmatprep.subr.mxu0 0.0
  %1161 = vmatpush1.msra.mxu0 %v165
  %1162 = vmatprep.subr.mxu0 0.0
  %1163 = vmatpush1.msra.mxu0 %v166
  %1164 = vmatprep.subr.mxu0 0.0
  %1165 = vmatpush1.msra.mxu0 %v167
  %1166 = vmatprep.subr.mxu0 0.0
  %1167 = vmatpush1.msra.mxu0 0.0
  %1168 = vmatprep.subr.mxu0 0.0
  %1169 = vmatpush1.msra.mxu0 0.0
  %1170 = vmatprep.subr.mxu0 0.0
  %1171 = vmatpush1.msra.mxu0 0.0
  %1172 = vmatprep.subr.mxu0 0.0
  %1173 = vmatpush1.msra.mxu0 0.0
  %1174 = vmatprep.subr.mxu0 0.0
  %1175 = vmatpush1.msra.mxu0 0.0
  %1176 = vmatprep.subr.mxu0 0.0
  %1177 = vmatpush1.msra.mxu0 0.0
  %1178 = vmatprep.subr.mxu0 0.0
  %1179 = vmatpush1.msra.mxu0 0.0
  %1180 = vmatprep.subr.mxu0 0.0
  %1181 = vmatpush1.msra.mxu0 0.0
  %1182 = vmatprep.subr.mxu0 0.0
  %1183 = vmatpush1.msra.mxu0 0.0
  %1184 = vmatprep.subr.mxu0 0.0
  %1185 = vmatpush1.msra.mxu0 0.0
  %1186 = vmatprep.subr.mxu0 0.0
  %1187 = vmatpush1.msra.mxu0 0.0
  %1188 = vmatprep.subr.mxu0 0.0
  %1189 = vmatpush1.msra.mxu0 0.0
  %1190 = vmatprep.subr.mxu0 0.0
  %1191 = vmatpush1.msra.mxu0 0.0
  %1192 = vmatprep.subr.mxu0 0.0
  %1193 = vmatpush1.msra.mxu0 0.0
  %1194 = vmatprep.subr.mxu0 0.0
  %1195 = vmatpush1.msra.mxu0 0.0
  %1196 = vmatprep.subr.mxu0 0.0
  %1197 = vmatpush1.msra.mxu0 0.0
  %1198 = vmatprep.subr.mxu0 0.0
  %1199 = vmatpush1.msra.mxu0 0.0
  %1200 = vmatprep.subr.mxu0 0.0
  %1201 = vmatpush1.msra.mxu0 0.0
  %1202 = vmatprep.subr.mxu0 0.0
  %1203 = vmatpush1.msra.mxu0 0.0
  %1204 = vmatprep.subr.mxu0 0.0
  %1205 = vmatpush1.msra.mxu0 0.0
  %1206 = vmatprep.subr.mxu0 0.0
  %1207 = vmatpush1.msra.mxu0 0.0
  %1208 = vmatprep.subr.mxu0 0.0
  %1209 = vmatpush1.msra.mxu0 0.0
  %1210 = vmatprep.subr.mxu0 0.0
  %1211 = vmatpush1.msra.mxu0 0.0
  %1212 = vmatprep.subr.mxu0 0.0
  %1213 = vmatpush1.msra.mxu0 0.0
  %1214 = vmatprep.subr.mxu0 0.0
  %1215 = vmatpush1.msra.mxu0 0.0
  %1216 = vmatprep.subr.mxu0 0.0
  %1217 = vmatpush1.msra.mxu0 0.0
  %1218 = vmatprep.subr.mxu0 0.0
  %1219 = vmatpush1.msra.mxu0 0.0
  %1220 = vmatprep.subr.mxu0 0.0
  %1221 = vmatpush1.msra.mxu0 0.0
  %1222 = vmatprep.mubr.f32.mxu0 0.0
  %1223 = vmatmul.mubr.f32.gmra.mrb[0].mxu0 %v1156
  %v1224 = vpop.f32.mrb[0].mxu0
  %v1225 = vadd.f32 0.0, %v1224
  %v1226 = vpop.f32.mrb[0].mxu0
  %1227 = vdwg.mxu0
  %1229 = vrot.lane.b32.xlu0 %v1155, 32
  %v1230 = vpop.permute.xlu0 %1229
  %v1231 = vsel %vm176, %v1230, 0
  %1233 = vmatprep.subr.mxu0 0.0
  %1234 = vmatpush1.msra.mxu0 %v160
  %1235 = vmatprep.subr.mxu0 0.0
  %1236 = vmatpush1.msra.mxu0 %v161
  %1237 = vmatprep.subr.mxu0 0.0
  %1238 = vmatpush1.msra.mxu0 %v162
  %1239 = vmatprep.subr.mxu0 0.0
  %1240 = vmatpush1.msra.mxu0 %v163
  %1241 = vmatprep.subr.mxu0 0.0
  %1242 = vmatpush1.msra.mxu0 0.0
  %1243 = vmatprep.subr.mxu0 0.0
  %1244 = vmatpush1.msra.mxu0 0.0
  %1245 = vmatprep.subr.mxu0 0.0
  %1246 = vmatpush1.msra.mxu0 0.0
  %1247 = vmatprep.subr.mxu0 0.0
  %1248 = vmatpush1.msra.mxu0 0.0
  %1249 = vmatprep.subr.mxu0 0.0
  %1250 = vmatpush1.msra.mxu0 0.0
  %1251 = vmatprep.subr.mxu0 0.0
  %1252 = vmatpush1.msra.mxu0 0.0
  %1253 = vmatprep.subr.mxu0 0.0
  %1254 = vmatpush1.msra.mxu0 0.0
  %1255 = vmatprep.subr.mxu0 0.0
  %1256 = vmatpush1.msra.mxu0 0.0
  %1257 = vmatprep.subr.mxu0 0.0
  %1258 = vmatpush1.msra.mxu0 0.0
  %1259 = vmatprep.subr.mxu0 0.0
  %1260 = vmatpush1.msra.mxu0 0.0
  %1261 = vmatprep.subr.mxu0 0.0
  %1262 = vmatpush1.msra.mxu0 0.0
  %1263 = vmatprep.subr.mxu0 0.0
  %1264 = vmatpush1.msra.mxu0 0.0
  %1265 = vmatprep.subr.mxu0 0.0
  %1266 = vmatpush1.msra.mxu0 0.0
  %1267 = vmatprep.subr.mxu0 0.0
  %1268 = vmatpush1.msra.mxu0 0.0
  %1269 = vmatprep.subr.mxu0 0.0
  %1270 = vmatpush1.msra.mxu0 0.0
  %1271 = vmatprep.subr.mxu0 0.0
  %1272 = vmatpush1.msra.mxu0 0.0
  %1273 = vmatprep.subr.mxu0 0.0
  %1274 = vmatpush1.msra.mxu0 0.0
  %1275 = vmatprep.subr.mxu0 0.0
  %1276 = vmatpush1.msra.mxu0 0.0
  %1277 = vmatprep.subr.mxu0 0.0
  %1278 = vmatpush1.msra.mxu0 0.0
  %1279 = vmatprep.subr.mxu0 0.0
  %1280 = vmatpush1.msra.mxu0 0.0
  %1281 = vmatprep.subr.mxu0 0.0
  %1282 = vmatpush1.msra.mxu0 0.0
  %1283 = vmatprep.subr.mxu0 0.0
  %1284 = vmatpush1.msra.mxu0 0.0
  %1285 = vmatprep.subr.mxu0 0.0
  %1286 = vmatpush1.msra.mxu0 0.0
  %1287 = vmatprep.subr.mxu0 0.0
  %1288 = vmatpush1.msra.mxu0 0.0
  %1289 = vmatprep.subr.mxu0 0.0
  %1290 = vmatpush1.msra.mxu0 0.0
  %1291 = vmatprep.subr.mxu0 0.0
  %1292 = vmatpush1.msra.mxu0 0.0
  %1293 = vmatprep.subr.mxu0 0.0
  %1294 = vmatpush1.msra.mxu0 0.0
  %1295 = vmatprep.subr.mxu0 0.0
  %1296 = vmatpush1.msra.mxu0 0.0
  %1297 = vmatprep.mubr.f32.mxu0 0.0
  %1298 = vmatmul.mubr.f32.gmra.mrb[0].mxu0 %v1231
  %v1299 = vpop.f32.mrb[0].mxu0
  %v1300 = vadd.f32 %v1225, %v1299
  %v1301 = vpop.f32.mrb[0].mxu0
  %1302 = vdwg.mxu0
  %v1303 = vadd.f32 %v1300, %v173
  %v1304 = vxor.u32 %v1303, 2147483648
  %v1305 = vmul.f32 %v1304, 1.442695
  %v1306 = vpow.pop %v1305
  %v1307 = vadd.f32 %v1306, 1.0
  %v1308 = vrcp.pop %v1307
  %v1309 = vmul.f32 1.0, %v1308
  %v1310 = vmul.f32 %v1309, 2.0
  %v1311 = vsub.f32 %v1310, 1.0
  %v1312 = vmul.f32 %v1309, %v1031
  %1314 = vrot.lane.b32.xlu0 %v1311, 64
  %v1315 = vpop.permute.xlu0 %1314
  %v1317 = vmul.f32 %v1309, %v1315
  %1319 = vrot.lane.b32.xlu0 %v1317, 32
  %v1320 = vpop.permute.xlu0 %1319
  %v1322 = vadd.f32 %v1312, %v1320
  %v1323 = vmul.f32 %v1322, 2.0
  %v1324 = vxor.u32 %v1323, 2147483648
  %v1325 = vmul.f32 %v1324, 1.442695
  %v1326 = vpow.pop %v1325
  %v1327 = vadd.f32 %v1326, 1.0
  %v1328 = vrcp.pop %v1327
  %v1329 = vmul.f32 1.0, %v1328
  %v1330 = vmul.f32 %v1329, 2.0
  %v1331 = vsub.f32 %v1330, 1.0
  %1333 = vrot.lane.b32.xlu0 %v1331, 64
  %v1334 = vpop.permute.xlu0 %1333
  %v1336 = vmul.f32 %v1309, %v1334
  %1338 = vrot.lane.b32.xlu0 %v1336, 32
  %v1339 = vpop.permute.xlu0 %1338
  %1341 = vst.msk [vmem:[#allocation3 + $0x6] sm:$0x3] %vm467, %v1339
  %v1342 = vld [vmem:[#allocation2 + $0x8] sm:$0x3]
  %1343 = vmatprep.subr.mxu0 0.0
  %1344 = vmatpush1.msra.mxu0 %v156
  %1345 = vmatprep.subr.mxu0 0.0
  %1346 = vmatpush1.msra.mxu0 %v157
  %1347 = vmatprep.subr.mxu0 0.0
  %1348 = vmatpush1.msra.mxu0 %v158
  %1349 = vmatprep.subr.mxu0 0.0
  %1350 = vmatpush1.msra.mxu0 %v159
  %1351 = vmatprep.subr.mxu0 0.0
  %1352 = vmatpush1.msra.mxu0 0.0
  %1353 = vmatprep.subr.mxu0 0.0
  %1354 = vmatpush1.msra.mxu0 0.0
  %1355 = vmatprep.subr.mxu0 0.0
  %1356 = vmatpush1.msra.mxu0 0.0
  %1357 = vmatprep.subr.mxu0 0.0
  %1358 = vmatpush1.msra.mxu0 0.0
  %1359 = vmatprep.subr.mxu0 0.0
  %1360 = vmatpush1.msra.mxu0 0.0
  %1361 = vmatprep.subr.mxu0 0.0
  %1362 = vmatpush1.msra.mxu0 0.0
  %1363 = vmatprep.subr.mxu0 0.0
  %1364 = vmatpush1.msra.mxu0 0.0
  %1365 = vmatprep.subr.mxu0 0.0
  %1366 = vmatpush1.msra.mxu0 0.0
  %1367 = vmatprep.subr.mxu0 0.0
  %1368 = vmatpush1.msra.mxu0 0.0
  %1369 = vmatprep.subr.mxu0 0.0
  %1370 = vmatpush1.msra.mxu0 0.0
  %1371 = vmatprep.subr.mxu0 0.0
  %1372 = vmatpush1.msra.mxu0 0.0
  %1373 = vmatprep.subr.mxu0 0.0
  %1374 = vmatpush1.msra.mxu0 0.0
  %1375 = vmatprep.subr.mxu0 0.0
  %1376 = vmatpush1.msra.mxu0 0.0
  %1377 = vmatprep.subr.mxu0 0.0
  %1378 = vmatpush1.msra.mxu0 0.0
  %1379 = vmatprep.subr.mxu0 0.0
  %1380 = vmatpush1.msra.mxu0 0.0
  %1381 = vmatprep.subr.mxu0 0.0
  %1382 = vmatpush1.msra.mxu0 0.0
  %1383 = vmatprep.subr.mxu0 0.0
  %1384 = vmatpush1.msra.mxu0 0.0
  %1385 = vmatprep.subr.mxu0 0.0
  %1386 = vmatpush1.msra.mxu0 0.0
  %1387 = vmatprep.subr.mxu0 0.0
  %1388 = vmatpush1.msra.mxu0 0.0
  %1389 = vmatprep.subr.mxu0 0.0
  %1390 = vmatpush1.msra.mxu0 0.0
  %1391 = vmatprep.subr.mxu0 0.0
  %1392 = vmatpush1.msra.mxu0 0.0
  %1393 = vmatprep.subr.mxu0 0.0
  %1394 = vmatpush1.msra.mxu0 0.0
  %1395 = vmatprep.subr.mxu0 0.0
  %1396 = vmatpush1.msra.mxu0 0.0
  %1397 = vmatprep.subr.mxu0 0.0
  %1398 = vmatpush1.msra.mxu0 0.0
  %1399 = vmatprep.subr.mxu0 0.0
  %1400 = vmatpush1.msra.mxu0 0.0
  %1401 = vmatprep.subr.mxu0 0.0
  %1402 = vmatpush1.msra.mxu0 0.0
  %1403 = vmatprep.subr.mxu0 0.0
  %1404 = vmatpush1.msra.mxu0 0.0
  %1405 = vmatprep.subr.mxu0 0.0
  %1406 = vmatpush1.msra.mxu0 0.0
  %1407 = vmatprep.mubr.f32.mxu0 0.0
  %1408 = vmatmul.mubr.f32.gmra.mrb[0].mxu0 %v1231
  %v1409 = vpop.f32.mrb[0].mxu0
  %v1410 = vadd.f32 0.0, %v1409
  %v1411 = vpop.f32.mrb[0].mxu0
  %1412 = vdwg.mxu0
  %v1413 = vadd.f32 %v1342, %v1410
  %v1414 = vxor.u32 %v1413, 2147483648
  %v1415 = vmul.f32 %v1414, 1.442695
  %v1416 = vpow.pop %v1415
  %v1417 = vadd.f32 %v1416, 1.0
  %v1418 = vrcp.pop %v1417
  %v1419 = vmul.f32 1.0, %v1418
  %v1420 = vmul.f32 %v1419, 2.0
  %v1421 = vsub.f32 %v1420, 1.0
  %v1422 = vmul.f32 %v1419, %v1141
  %1424 = vrot.lane.b32.xlu0 %v1421, 64
  %v1425 = vpop.permute.xlu0 %1424
  %v1427 = vmul.f32 %v1419, %v1425
  %1429 = vrot.lane.b32.xlu0 %v1427, 32
  %v1430 = vpop.permute.xlu0 %1429
  %v1432 = vadd.f32 %v1422, %v1430
  %v1433 = vmul.f32 %v1432, 2.0
  %v1434 = vxor.u32 %v1433, 2147483648
  %v1435 = vmul.f32 %v1434, 1.442695
  %v1436 = vpow.pop %v1435
  %v1437 = vadd.f32 %v1436, 1.0
  %v1438 = vrcp.pop %v1437
  %v1439 = vmul.f32 1.0, %v1438
  %v1440 = vmul.f32 %v1439, 2.0
  %v1441 = vsub.f32 %v1440, 1.0
  %1443 = vrot.lane.b32.xlu0 %v1441, 64
  %v1444 = vpop.permute.xlu0 %1443
  %v1446 = vmul.f32 %v1419, %v1444
  %v1447 = vsel %vm176, %v1339, 0
  %1449 = vmatprep.subr.mxu0 0.0
  %1450 = vmatpush1.msra.mxu0 %v164
  %1451 = vmatprep.subr.mxu0 0.0
  %1452 = vmatpush1.msra.mxu0 %v165
  %1453 = vmatprep.subr.mxu0 0.0
  %1454 = vmatpush1.msra.mxu0 %v166
  %1455 = vmatprep.subr.mxu0 0.0
  %1456 = vmatpush1.msra.mxu0 %v167
  %1457 = vmatprep.subr.mxu0 0.0
  %1458 = vmatpush1.msra.mxu0 0.0
  %1459 = vmatprep.subr.mxu0 0.0
  %1460 = vmatpush1.msra.mxu0 0.0
  %1461 = vmatprep.subr.mxu0 0.0
  %1462 = vmatpush1.msra.mxu0 0.0
  %1463 = vmatprep.subr.mxu0 0.0
  %1464 = vmatpush1.msra.mxu0 0.0
  %1465 = vmatprep.subr.mxu0 0.0
  %1466 = vmatpush1.msra.mxu0 0.0
  %1467 = vmatprep.subr.mxu0 0.0
  %1468 = vmatpush1.msra.mxu0 0.0
  %1469 = vmatprep.subr.mxu0 0.0
  %1470 = vmatpush1.msra.mxu0 0.0
  %1471 = vmatprep.subr.mxu0 0.0
  %1472 = vmatpush1.msra.mxu0 0.0
  %1473 = vmatprep.subr.mxu0 0.0
  %1474 = vmatpush1.msra.mxu0 0.0
  %1475 = vmatprep.subr.mxu0 0.0
  %1476 = vmatpush1.msra.mxu0 0.0
  %1477 = vmatprep.subr.mxu0 0.0
  %1478 = vmatpush1.msra.mxu0 0.0
  %1479 = vmatprep.subr.mxu0 0.0
  %1480 = vmatpush1.msra.mxu0 0.0
  %1481 = vmatprep.subr.mxu0 0.0
  %1482 = vmatpush1.msra.mxu0 0.0
  %1483 = vmatprep.subr.mxu0 0.0
  %1484 = vmatpush1.msra.mxu0 0.0
  %1485 = vmatprep.subr.mxu0 0.0
  %1486 = vmatpush1.msra.mxu0 0.0
  %1487 = vmatprep.subr.mxu0 0.0
  %1488 = vmatpush1.msra.mxu0 0.0
  %1489 = vmatprep.subr.mxu0 0.0
  %1490 = vmatpush1.msra.mxu0 0.0
  %1491 = vmatprep.subr.mxu0 0.0
  %1492 = vmatpush1.msra.mxu0 0.0
  %1493 = vmatprep.subr.mxu0 0.0
  %1494 = vmatpush1.msra.mxu0 0.0
  %1495 = vmatprep.subr.mxu0 0.0
  %1496 = vmatpush1.msra.mxu0 0.0
  %1497 = vmatprep.subr.mxu0 0.0
  %1498 = vmatpush1.msra.mxu0 0.0
  %1499 = vmatprep.subr.mxu0 0.0
  %1500 = vmatpush1.msra.mxu0 0.0
  %1501 = vmatprep.subr.mxu0 0.0
  %1502 = vmatpush1.msra.mxu0 0.0
  %1503 = vmatprep.subr.mxu0 0.0
  %1504 = vmatpush1.msra.mxu0 0.0
  %1505 = vmatprep.subr.mxu0 0.0
  %1506 = vmatpush1.msra.mxu0 0.0
  %1507 = vmatprep.subr.mxu0 0.0
  %1508 = vmatpush1.msra.mxu0 0.0
  %1509 = vmatprep.subr.mxu0 0.0
  %1510 = vmatpush1.msra.mxu0 0.0
  %1511 = vmatprep.subr.mxu0 0.0
  %1512 = vmatpush1.msra.mxu0 0.0
  %1513 = vmatprep.mubr.f32.mxu0 0.0
  %1514 = vmatmul.mubr.f32.gmra.mrb[0].mxu0 %v1447
  %v1515 = vpop.f32.mrb[0].mxu0
  %v1516 = vadd.f32 0.0, %v1515
  %v1517 = vpop.f32.mrb[0].mxu0
  %1518 = vdwg.mxu0
  %1520 = vrot.lane.b32.xlu0 %v1446, 32
  %v1521 = vpop.permute.xlu0 %1520
  %v1522 = vsel %vm176, %v1521, 0
  %1524 = vmatprep.subr.mxu0 0.0
  %1525 = vmatpush1.msra.mxu0 %v160
  %1526 = vmatprep.subr.mxu0 0.0
  %1527 = vmatpush1.msra.mxu0 %v161
  %1528 = vmatprep.subr.mxu0 0.0
  %1529 = vmatpush1.msra.mxu0 %v162
  %1530 = vmatprep.subr.mxu0 0.0
  %1531 = vmatpush1.msra.mxu0 %v163
  %1532 = vmatprep.subr.mxu0 0.0
  %1533 = vmatpush1.msra.mxu0 0.0
  %1534 = vmatprep.subr.mxu0 0.0
  %1535 = vmatpush1.msra.mxu0 0.0
  %1536 = vmatprep.subr.mxu0 0.0
  %1537 = vmatpush1.msra.mxu0 0.0
  %1538 = vmatprep.subr.mxu0 0.0
  %1539 = vmatpush1.msra.mxu0 0.0
  %1540 = vmatprep.subr.mxu0 0.0
  %1541 = vmatpush1.msra.mxu0 0.0
  %1542 = vmatprep.subr.mxu0 0.0
  %1543 = vmatpush1.msra.mxu0 0.0
  %1544 = vmatprep.subr.mxu0 0.0
  %1545 = vmatpush1.msra.mxu0 0.0
  %1546 = vmatprep.subr.mxu0 0.0
  %1547 = vmatpush1.msra.mxu0 0.0
  %1548 = vmatprep.subr.mxu0 0.0
  %1549 = vmatpush1.msra.mxu0 0.0
  %1550 = vmatprep.subr.mxu0 0.0
  %1551 = vmatpush1.msra.mxu0 0.0
  %1552 = vmatprep.subr.mxu0 0.0
  %1553 = vmatpush1.msra.mxu0 0.0
  %1554 = vmatprep.subr.mxu0 0.0
  %1555 = vmatpush1.msra.mxu0 0.0
  %1556 = vmatprep.subr.mxu0 0.0
  %1557 = vmatpush1.msra.mxu0 0.0
  %1558 = vmatprep.subr.mxu0 0.0
  %1559 = vmatpush1.msra.mxu0 0.0
  %1560 = vmatprep.subr.mxu0 0.0
  %1561 = vmatpush1.msra.mxu0 0.0
  %1562 = vmatprep.subr.mxu0 0.0
  %1563 = vmatpush1.msra.mxu0 0.0
  %1564 = vmatprep.subr.mxu0 0.0
  %1565 = vmatpush1.msra.mxu0 0.0
  %1566 = vmatprep.subr.mxu0 0.0
  %1567 = vmatpush1.msra.mxu0 0.0
  %1568 = vmatprep.subr.mxu0 0.0
  %1569 = vmatpush1.msra.mxu0 0.0
  %1570 = vmatprep.subr.mxu0 0.0
  %1571 = vmatpush1.msra.mxu0 0.0
  %1572 = vmatprep.subr.mxu0 0.0
  %1573 = vmatpush1.msra.mxu0 0.0
  %1574 = vmatprep.subr.mxu0 0.0
  %1575 = vmatpush1.msra.mxu0 0.0
  %1576 = vmatprep.subr.mxu0 0.0
  %1577 = vmatpush1.msra.mxu0 0.0
  %1578 = vmatprep.subr.mxu0 0.0
  %1579 = vmatpush1.msra.mxu0 0.0
  %1580 = vmatprep.subr.mxu0 0.0
  %1581 = vmatpush1.msra.mxu0 0.0
  %1582 = vmatprep.subr.mxu0 0.0
  %1583 = vmatpush1.msra.mxu0 0.0
  %1584 = vmatprep.subr.mxu0 0.0
  %1585 = vmatpush1.msra.mxu0 0.0
  %1586 = vmatprep.subr.mxu0 0.0
  %1587 = vmatpush1.msra.mxu0 0.0
  %1588 = vmatprep.mubr.f32.mxu0 0.0
  %1589 = vmatmul.mubr.f32.gmra.mrb[0].mxu0 %v1522
  %v1590 = vpop.f32.mrb[0].mxu0
  %v1591 = vadd.f32 %v1516, %v1590
  %v1592 = vpop.f32.mrb[0].mxu0
  %1593 = vdwg.mxu0
  %v1594 = vadd.f32 %v1591, %v173
  %v1595 = vxor.u32 %v1594, 2147483648
  %v1596 = vmul.f32 %v1595, 1.442695
  %v1597 = vpow.pop %v1596
  %v1598 = vadd.f32 %v1597, 1.0
  %v1599 = vrcp.pop %v1598
  %v1600 = vmul.f32 1.0, %v1599
  %v1601 = vmul.f32 %v1600, 2.0
  %v1602 = vsub.f32 %v1601, 1.0
  %v1603 = vmul.f32 %v1600, %v1322
  %1605 = vrot.lane.b32.xlu0 %v1602, 64
  %v1606 = vpop.permute.xlu0 %1605
  %v1608 = vmul.f32 %v1600, %v1606
  %1610 = vrot.lane.b32.xlu0 %v1608, 32
  %v1611 = vpop.permute.xlu0 %1610
  %v1613 = vadd.f32 %v1603, %v1611
  %v1614 = vmul.f32 %v1613, 2.0
  %v1615 = vxor.u32 %v1614, 2147483648
  %v1616 = vmul.f32 %v1615, 1.442695
  %v1617 = vpow.pop %v1616
  %v1618 = vadd.f32 %v1617, 1.0
  %v1619 = vrcp.pop %v1618
  %v1620 = vmul.f32 1.0, %v1619
  %v1621 = vmul.f32 %v1620, 2.0
  %v1622 = vsub.f32 %v1621, 1.0
  %1624 = vrot.lane.b32.xlu0 %v1622, 64
  %v1625 = vpop.permute.xlu0 %1624
  %v1627 = vmul.f32 %v1600, %v1625
  %1629 = vrot.lane.b32.xlu0 %v1627, 32
  %v1630 = vpop.permute.xlu0 %1629
  %1632 = vst.msk [vmem:[#allocation3 + $0x8] sm:$0x3] %vm467, %v1630
  %v1633 = vld [vmem:[#allocation2 + $0xa] sm:$0x3]
  %1634 = vmatprep.subr.mxu0 0.0
  %1635 = vmatpush1.msra.mxu0 %v156
  %1636 = vmatprep.subr.mxu0 0.0
  %1637 = vmatpush1.msra.mxu0 %v157
  %1638 = vmatprep.subr.mxu0 0.0
  %1639 = vmatpush1.msra.mxu0 %v158
  %1640 = vmatprep.subr.mxu0 0.0
  %1641 = vmatpush1.msra.mxu0 %v159
  %1642 = vmatprep.subr.mxu0 0.0
  %1643 = vmatpush1.msra.mxu0 0.0
  %1644 = vmatprep.subr.mxu0 0.0
  %1645 = vmatpush1.msra.mxu0 0.0
  %1646 = vmatprep.subr.mxu0 0.0
  %1647 = vmatpush1.msra.mxu0 0.0
  %1648 = vmatprep.subr.mxu0 0.0
  %1649 = vmatpush1.msra.mxu0 0.0
  %1650 = vmatprep.subr.mxu0 0.0
  %1651 = vmatpush1.msra.mxu0 0.0
  %1652 = vmatprep.subr.mxu0 0.0
  %1653 = vmatpush1.msra.mxu0 0.0
  %1654 = vmatprep.subr.mxu0 0.0
  %1655 = vmatpush1.msra.mxu0 0.0
  %1656 = vmatprep.subr.mxu0 0.0
  %1657 = vmatpush1.msra.mxu0 0.0
  %1658 = vmatprep.subr.mxu0 0.0
  %1659 = vmatpush1.msra.mxu0 0.0
  %1660 = vmatprep.subr.mxu0 0.0
  %1661 = vmatpush1.msra.mxu0 0.0
  %1662 = vmatprep.subr.mxu0 0.0
  %1663 = vmatpush1.msra.mxu0 0.0
  %1664 = vmatprep.subr.mxu0 0.0
  %1665 = vmatpush1.msra.mxu0 0.0
  %1666 = vmatprep.subr.mxu0 0.0
  %1667 = vmatpush1.msra.mxu0 0.0
  %1668 = vmatprep.subr.mxu0 0.0
  %1669 = vmatpush1.msra.mxu0 0.0
  %1670 = vmatprep.subr.mxu0 0.0
  %1671 = vmatpush1.msra.mxu0 0.0
  %1672 = vmatprep.subr.mxu0 0.0
  %1673 = vmatpush1.msra.mxu0 0.0
  %1674 = vmatprep.subr.mxu0 0.0
  %1675 = vmatpush1.msra.mxu0 0.0
  %1676 = vmatprep.subr.mxu0 0.0
  %1677 = vmatpush1.msra.mxu0 0.0
  %1678 = vmatprep.subr.mxu0 0.0
  %1679 = vmatpush1.msra.mxu0 0.0
  %1680 = vmatprep.subr.mxu0 0.0
  %1681 = vmatpush1.msra.mxu0 0.0
  %1682 = vmatprep.subr.mxu0 0.0
  %1683 = vmatpush1.msra.mxu0 0.0
  %1684 = vmatprep.subr.mxu0 0.0
  %1685 = vmatpush1.msra.mxu0 0.0
  %1686 = vmatprep.subr.mxu0 0.0
  %1687 = vmatpush1.msra.mxu0 0.0
  %1688 = vmatprep.subr.mxu0 0.0
  %1689 = vmatpush1.msra.mxu0 0.0
  %1690 = vmatprep.subr.mxu0 0.0
  %1691 = vmatpush1.msra.mxu0 0.0
  %1692 = vmatprep.subr.mxu0 0.0
  %1693 = vmatpush1.msra.mxu0 0.0
  %1694 = vmatprep.subr.mxu0 0.0
  %1695 = vmatpush1.msra.mxu0 0.0
  %1696 = vmatprep.subr.mxu0 0.0
  %1697 = vmatpush1.msra.mxu0 0.0
  %1698 = vmatprep.mubr.f32.mxu0 0.0
  %1699 = vmatmul.mubr.f32.gmra.mrb[0].mxu0 %v1522
  %v1700 = vpop.f32.mrb[0].mxu0
  %v1701 = vadd.f32 0.0, %v1700
  %v1702 = vpop.f32.mrb[0].mxu0
  %1703 = vdwg.mxu0
  %v1704 = vadd.f32 %v1633, %v1701
  %v1705 = vxor.u32 %v1704, 2147483648
  %v1706 = vmul.f32 %v1705, 1.442695
  %v1707 = vpow.pop %v1706
  %v1708 = vadd.f32 %v1707, 1.0
  %v1709 = vrcp.pop %v1708
  %v1710 = vmul.f32 1.0, %v1709
  %v1711 = vmul.f32 %v1710, 2.0
  %v1712 = vsub.f32 %v1711, 1.0
  %v1713 = vmul.f32 %v1710, %v1432
  %1715 = vrot.lane.b32.xlu0 %v1712, 64
  %v1716 = vpop.permute.xlu0 %1715
  %v1718 = vmul.f32 %v1710, %v1716
  %1720 = vrot.lane.b32.xlu0 %v1718, 32
  %v1721 = vpop.permute.xlu0 %1720
  %v1723 = vadd.f32 %v1713, %v1721
  %v1724 = vmul.f32 %v1723, 2.0
  %v1725 = vxor.u32 %v1724, 2147483648
  %v1726 = vmul.f32 %v1725, 1.442695
  %v1727 = vpow.pop %v1726
  %v1728 = vadd.f32 %v1727, 1.0
  %v1729 = vrcp.pop %v1728
  %v1730 = vmul.f32 1.0, %v1729
  %v1731 = vmul.f32 %v1730, 2.0
  %v1732 = vsub.f32 %v1731, 1.0
  %1734 = vrot.lane.b32.xlu0 %v1732, 64
  %v1735 = vpop.permute.xlu0 %1734
  %v1737 = vmul.f32 %v1710, %v1735
  %v1738 = vsel %vm176, %v1630, 0
  %1740 = vmatprep.subr.mxu0 0.0
  %1741 = vmatpush1.msra.mxu0 %v164
  %1742 = vmatprep.subr.mxu0 0.0
  %1743 = vmatpush1.msra.mxu0 %v165
  %1744 = vmatprep.subr.mxu0 0.0
  %1745 = vmatpush1.msra.mxu0 %v166
  %1746 = vmatprep.subr.mxu0 0.0
  %1747 = vmatpush1.msra.mxu0 %v167
  %1748 = vmatprep.subr.mxu0 0.0
  %1749 = vmatpush1.msra.mxu0 0.0
  %1750 = vmatprep.subr.mxu0 0.0
  %1751 = vmatpush1.msra.mxu0 0.0
  %1752 = vmatprep.subr.mxu0 0.0
  %1753 = vmatpush1.msra.mxu0 0.0
  %1754 = vmatprep.subr.mxu0 0.0
  %1755 = vmatpush1.msra.mxu0 0.0
  %1756 = vmatprep.subr.mxu0 0.0
  %1757 = vmatpush1.msra.mxu0 0.0
  %1758 = vmatprep.subr.mxu0 0.0
  %1759 = vmatpush1.msra.mxu0 0.0
  %1760 = vmatprep.subr.mxu0 0.0
  %1761 = vmatpush1.msra.mxu0 0.0
  %1762 = vmatprep.subr.mxu0 0.0
  %1763 = vmatpush1.msra.mxu0 0.0
  %1764 = vmatprep.subr.mxu0 0.0
  %1765 = vmatpush1.msra.mxu0 0.0
  %1766 = vmatprep.subr.mxu0 0.0
  %1767 = vmatpush1.msra.mxu0 0.0
  %1768 = vmatprep.subr.mxu0 0.0
  %1769 = vmatpush1.msra.mxu0 0.0
  %1770 = vmatprep.subr.mxu0 0.0
  %1771 = vmatpush1.msra.mxu0 0.0
  %1772 = vmatprep.subr.mxu0 0.0
  %1773 = vmatpush1.msra.mxu0 0.0
  %1774 = vmatprep.subr.mxu0 0.0
  %1775 = vmatpush1.msra.mxu0 0.0
  %1776 = vmatprep.subr.mxu0 0.0
  %1777 = vmatpush1.msra.mxu0 0.0
  %1778 = vmatprep.subr.mxu0 0.0
  %1779 = vmatpush1.msra.mxu0 0.0
  %1780 = vmatprep.subr.mxu0 0.0
  %1781 = vmatpush1.msra.mxu0 0.0
  %1782 = vmatprep.subr.mxu0 0.0
  %1783 = vmatpush1.msra.mxu0 0.0
  %1784 = vmatprep.subr.mxu0 0.0
  %1785 = vmatpush1.msra.mxu0 0.0
  %1786 = vmatprep.subr.mxu0 0.0
  %1787 = vmatpush1.msra.mxu0 0.0
  %1788 = vmatprep.subr.mxu0 0.0
  %1789 = vmatpush1.msra.mxu0 0.0
  %1790 = vmatprep.subr.mxu0 0.0
  %1791 = vmatpush1.msra.mxu0 0.0
  %1792 = vmatprep.subr.mxu0 0.0
  %1793 = vmatpush1.msra.mxu0 0.0
  %1794 = vmatprep.subr.mxu0 0.0
  %1795 = vmatpush1.msra.mxu0 0.0
  %1796 = vmatprep.subr.mxu0 0.0
  %1797 = vmatpush1.msra.mxu0 0.0
  %1798 = vmatprep.subr.mxu0 0.0
  %1799 = vmatpush1.msra.mxu0 0.0
  %1800 = vmatprep.subr.mxu0 0.0
  %1801 = vmatpush1.msra.mxu0 0.0
  %1802 = vmatprep.subr.mxu0 0.0
  %1803 = vmatpush1.msra.mxu0 0.0
  %1804 = vmatprep.mubr.f32.mxu0 0.0
  %1805 = vmatmul.mubr.f32.gmra.mrb[0].mxu0 %v1738
  %v1806 = vpop.f32.mrb[0].mxu0
  %v1807 = vadd.f32 0.0, %v1806
  %v1808 = vpop.f32.mrb[0].mxu0
  %1809 = vdwg.mxu0
  %1811 = vrot.lane.b32.xlu0 %v1737, 32
  %v1812 = vpop.permute.xlu0 %1811
  %v1813 = vsel %vm176, %v1812, 0
  %1815 = vmatprep.subr.mxu0 0.0
  %1816 = vmatpush1.msra.mxu0 %v160
  %1817 = vmatprep.subr.mxu0 0.0
  %1818 = vmatpush1.msra.mxu0 %v161
  %1819 = vmatprep.subr.mxu0 0.0
  %1820 = vmatpush1.msra.mxu0 %v162
  %1821 = vmatprep.subr.mxu0 0.0
  %1822 = vmatpush1.msra.mxu0 %v163
  %1823 = vmatprep.subr.mxu0 0.0
  %1824 = vmatpush1.msra.mxu0 0.0
  %1825 = vmatprep.subr.mxu0 0.0
  %1826 = vmatpush1.msra.mxu0 0.0
  %1827 = vmatprep.subr.mxu0 0.0
  %1828 = vmatpush1.msra.mxu0 0.0
  %1829 = vmatprep.subr.mxu0 0.0
  %1830 = vmatpush1.msra.mxu0 0.0
  %1831 = vmatprep.subr.mxu0 0.0
  %1832 = vmatpush1.msra.mxu0 0.0
  %1833 = vmatprep.subr.mxu0 0.0
  %1834 = vmatpush1.msra.mxu0 0.0
  %1835 = vmatprep.subr.mxu0 0.0
  %1836 = vmatpush1.msra.mxu0 0.0
  %1837 = vmatprep.subr.mxu0 0.0
  %1838 = vmatpush1.msra.mxu0 0.0
  %1839 = vmatprep.subr.mxu0 0.0
  %1840 = vmatpush1.msra.mxu0 0.0
  %1841 = vmatprep.subr.mxu0 0.0
  %1842 = vmatpush1.msra.mxu0 0.0
  %1843 = vmatprep.subr.mxu0 0.0
  %1844 = vmatpush1.msra.mxu0 0.0
  %1845 = vmatprep.subr.mxu0 0.0
  %1846 = vmatpush1.msra.mxu0 0.0
  %1847 = vmatprep.subr.mxu0 0.0
  %1848 = vmatpush1.msra.mxu0 0.0
  %1849 = vmatprep.subr.mxu0 0.0
  %1850 = vmatpush1.msra.mxu0 0.0
  %1851 = vmatprep.subr.mxu0 0.0
  %1852 = vmatpush1.msra.mxu0 0.0
  %1853 = vmatprep.subr.mxu0 0.0
  %1854 = vmatpush1.msra.mxu0 0.0
  %1855 = vmatprep.subr.mxu0 0.0
  %1856 = vmatpush1.msra.mxu0 0.0
  %1857 = vmatprep.subr.mxu0 0.0
  %1858 = vmatpush1.msra.mxu0 0.0
  %1859 = vmatprep.subr.mxu0 0.0
  %1860 = vmatpush1.msra.mxu0 0.0
  %1861 = vmatprep.subr.mxu0 0.0
  %1862 = vmatpush1.msra.mxu0 0.0
  %1863 = vmatprep.subr.mxu0 0.0
  %1864 = vmatpush1.msra.mxu0 0.0
  %1865 = vmatprep.subr.mxu0 0.0
  %1866 = vmatpush1.msra.mxu0 0.0
  %1867 = vmatprep.subr.mxu0 0.0
  %1868 = vmatpush1.msra.mxu0 0.0
  %1869 = vmatprep.subr.mxu0 0.0
  %1870 = vmatpush1.msra.mxu0 0.0
  %1871 = vmatprep.subr.mxu0 0.0
  %1872 = vmatpush1.msra.mxu0 0.0
  %1873 = vmatprep.subr.mxu0 0.0
  %1874 = vmatpush1.msra.mxu0 0.0
  %1875 = vmatprep.subr.mxu0 0.0
  %1876 = vmatpush1.msra.mxu0 0.0
  %1877 = vmatprep.subr.mxu0 0.0
  %1878 = vmatpush1.msra.mxu0 0.0
  %1879 = vmatprep.mubr.f32.mxu0 0.0
  %1880 = vmatmul.mubr.f32.gmra.mrb[0].mxu0 %v1813
  %v1881 = vpop.f32.mrb[0].mxu0
  %v1882 = vadd.f32 %v1807, %v1881
  %v1883 = vpop.f32.mrb[0].mxu0
  %1884 = vdwg.mxu0
  %v1885 = vadd.f32 %v1882, %v173
  %v1886 = vxor.u32 %v1885, 2147483648
  %v1887 = vmul.f32 %v1886, 1.442695
  %v1888 = vpow.pop %v1887
  %v1889 = vadd.f32 %v1888, 1.0
  %v1890 = vrcp.pop %v1889
  %v1891 = vmul.f32 1.0, %v1890
  %v1892 = vmul.f32 %v1891, 2.0
  %v1893 = vsub.f32 %v1892, 1.0
  %v1894 = vmul.f32 %v1891, %v1613
  %1896 = vrot.lane.b32.xlu0 %v1893, 64
  %v1897 = vpop.permute.xlu0 %1896
  %v1899 = vmul.f32 %v1891, %v1897
  %1901 = vrot.lane.b32.xlu0 %v1899, 32
  %v1902 = vpop.permute.xlu0 %1901
  %v1904 = vadd.f32 %v1894, %v1902
  %v1905 = vmul.f32 %v1904, 2.0
  %v1906 = vxor.u32 %v1905, 2147483648
  %v1907 = vmul.f32 %v1906, 1.442695
  %v1908 = vpow.pop %v1907
  %v1909 = vadd.f32 %v1908, 1.0
  %v1910 = vrcp.pop %v1909
  %v1911 = vmul.f32 1.0, %v1910
  %v1912 = vmul.f32 %v1911, 2.0
  %v1913 = vsub.f32 %v1912, 1.0
  %1915 = vrot.lane.b32.xlu0 %v1913, 64
  %v1916 = vpop.permute.xlu0 %1915
  %v1918 = vmul.f32 %v1891, %v1916
  %1920 = vrot.lane.b32.xlu0 %v1918, 32
  %v1921 = vpop.permute.xlu0 %1920
  %1923 = vst.msk [vmem:[#allocation3 + $0xa] sm:$0x3] %vm467, %v1921
  %v1924 = vld [vmem:[#allocation2 + $0xc] sm:$0x3]
  %1925 = vmatprep.subr.mxu0 0.0
  %1926 = vmatpush1.msra.mxu0 %v156
  %1927 = vmatprep.subr.mxu0 0.0
  %1928 = vmatpush1.msra.mxu0 %v157
  %1929 = vmatprep.subr.mxu0 0.0
  %1930 = vmatpush1.msra.mxu0 %v158
  %1931 = vmatprep.subr.mxu0 0.0
  %1932 = vmatpush1.msra.mxu0 %v159
  %1933 = vmatprep.subr.mxu0 0.0
  %1934 = vmatpush1.msra.mxu0 0.0
  %1935 = vmatprep.subr.mxu0 0.0
  %1936 = vmatpush1.msra.mxu0 0.0
  %1937 = vmatprep.subr.mxu0 0.0
  %1938 = vmatpush1.msra.mxu0 0.0
  %1939 = vmatprep.subr.mxu0 0.0
  %1940 = vmatpush1.msra.mxu0 0.0
  %1941 = vmatprep.subr.mxu0 0.0
  %1942 = vmatpush1.msra.mxu0 0.0
  %1943 = vmatprep.subr.mxu0 0.0
  %1944 = vmatpush1.msra.mxu0 0.0
  %1945 = vmatprep.subr.mxu0 0.0
  %1946 = vmatpush1.msra.mxu0 0.0
  %1947 = vmatprep.subr.mxu0 0.0
  %1948 = vmatpush1.msra.mxu0 0.0
  %1949 = vmatprep.subr.mxu0 0.0
  %1950 = vmatpush1.msra.mxu0 0.0
  %1951 = vmatprep.subr.mxu0 0.0
  %1952 = vmatpush1.msra.mxu0 0.0
  %1953 = vmatprep.subr.mxu0 0.0
  %1954 = vmatpush1.msra.mxu0 0.0
  %1955 = vmatprep.subr.mxu0 0.0
  %1956 = vmatpush1.msra.mxu0 0.0
  %1957 = vmatprep.subr.mxu0 0.0
  %1958 = vmatpush1.msra.mxu0 0.0
  %1959 = vmatprep.subr.mxu0 0.0
  %1960 = vmatpush1.msra.mxu0 0.0
  %1961 = vmatprep.subr.mxu0 0.0
  %1962 = vmatpush1.msra.mxu0 0.0
  %1963 = vmatprep.subr.mxu0 0.0
  %1964 = vmatpush1.msra.mxu0 0.0
  %1965 = vmatprep.subr.mxu0 0.0
  %1966 = vmatpush1.msra.mxu0 0.0
  %1967 = vmatprep.subr.mxu0 0.0
  %1968 = vmatpush1.msra.mxu0 0.0
  %1969 = vmatprep.subr.mxu0 0.0
  %1970 = vmatpush1.msra.mxu0 0.0
  %1971 = vmatprep.subr.mxu0 0.0
  %1972 = vmatpush1.msra.mxu0 0.0
  %1973 = vmatprep.subr.mxu0 0.0
  %1974 = vmatpush1.msra.mxu0 0.0
  %1975 = vmatprep.subr.mxu0 0.0
  %1976 = vmatpush1.msra.mxu0 0.0
  %1977 = vmatprep.subr.mxu0 0.0
  %1978 = vmatpush1.msra.mxu0 0.0
  %1979 = vmatprep.subr.mxu0 0.0
  %1980 = vmatpush1.msra.mxu0 0.0
  %1981 = vmatprep.subr.mxu0 0.0
  %1982 = vmatpush1.msra.mxu0 0.0
  %1983 = vmatprep.subr.mxu0 0.0
  %1984 = vmatpush1.msra.mxu0 0.0
  %1985 = vmatprep.subr.mxu0 0.0
  %1986 = vmatpush1.msra.mxu0 0.0
  %1987 = vmatprep.subr.mxu0 0.0
  %1988 = vmatpush1.msra.mxu0 0.0
  %1989 = vmatprep.mubr.f32.mxu0 0.0
  %1990 = vmatmul.mubr.f32.gmra.mrb[0].mxu0 %v1813
  %v1991 = vpop.f32.mrb[0].mxu0
  %v1992 = vadd.f32 0.0, %v1991
  %v1993 = vpop.f32.mrb[0].mxu0
  %1994 = vdwg.mxu0
  %v1995 = vadd.f32 %v1924, %v1992
  %v1996 = vxor.u32 %v1995, 2147483648
  %v1997 = vmul.f32 %v1996, 1.442695
  %v1998 = vpow.pop %v1997
  %v1999 = vadd.f32 %v1998, 1.0
  %v2000 = vrcp.pop %v1999
  %v2001 = vmul.f32 1.0, %v2000
  %v2002 = vmul.f32 %v2001, 2.0
  %v2003 = vsub.f32 %v2002, 1.0
  %v2004 = vmul.f32 %v2001, %v1723
  %2006 = vrot.lane.b32.xlu0 %v2003, 64
  %v2007 = vpop.permute.xlu0 %2006
  %v2009 = vmul.f32 %v2001, %v2007
  %2011 = vrot.lane.b32.xlu0 %v2009, 32
  %v2012 = vpop.permute.xlu0 %2011
  %v2014 = vadd.f32 %v2004, %v2012
  %v2015 = vmul.f32 %v2014, 2.0
  %v2016 = vxor.u32 %v2015, 2147483648
  %v2017 = vmul.f32 %v2016, 1.442695
  %v2018 = vpow.pop %v2017
  %v2019 = vadd.f32 %v2018, 1.0
  %v2020 = vrcp.pop %v2019
  %v2021 = vmul.f32 1.0, %v2020
  %v2022 = vmul.f32 %v2021, 2.0
  %v2023 = vsub.f32 %v2022, 1.0
  %2025 = vrot.lane.b32.xlu0 %v2023, 64
  %v2026 = vpop.permute.xlu0 %2025
  %v2028 = vmul.f32 %v2001, %v2026
  %v2029 = vsel %vm176, %v1921, 0
  %2031 = vmatprep.subr.mxu0 0.0
  %2032 = vmatpush1.msra.mxu0 %v164
  %2033 = vmatprep.subr.mxu0 0.0
  %2034 = vmatpush1.msra.mxu0 %v165
  %2035 = vmatprep.subr.mxu0 0.0
  %2036 = vmatpush1.msra.mxu0 %v166
  %2037 = vmatprep.subr.mxu0 0.0
  %2038 = vmatpush1.msra.mxu0 %v167
  %2039 = vmatprep.subr.mxu0 0.0
  %2040 = vmatpush1.msra.mxu0 0.0
  %2041 = vmatprep.subr.mxu0 0.0
  %2042 = vmatpush1.msra.mxu0 0.0
  %2043 = vmatprep.subr.mxu0 0.0
  %2044 = vmatpush1.msra.mxu0 0.0
  %2045 = vmatprep.subr.mxu0 0.0
  %2046 = vmatpush1.msra.mxu0 0.0
  %2047 = vmatprep.subr.mxu0 0.0
  %2048 = vmatpush1.msra.mxu0 0.0
  %2049 = vmatprep.subr.mxu0 0.0
  %2050 = vmatpush1.msra.mxu0 0.0
  %2051 = vmatprep.subr.mxu0 0.0
  %2052 = vmatpush1.msra.mxu0 0.0
  %2053 = vmatprep.subr.mxu0 0.0
  %2054 = vmatpush1.msra.mxu0 0.0
  %2055 = vmatprep.subr.mxu0 0.0
  %2056 = vmatpush1.msra.mxu0 0.0
  %2057 = vmatprep.subr.mxu0 0.0
  %2058 = vmatpush1.msra.mxu0 0.0
  %2059 = vmatprep.subr.mxu0 0.0
  %2060 = vmatpush1.msra.mxu0 0.0
  %2061 = vmatprep.subr.mxu0 0.0
  %2062 = vmatpush1.msra.mxu0 0.0
  %2063 = vmatprep.subr.mxu0 0.0
  %2064 = vmatpush1.msra.mxu0 0.0
  %2065 = vmatprep.subr.mxu0 0.0
  %2066 = vmatpush1.msra.mxu0 0.0
  %2067 = vmatprep.subr.mxu0 0.0
  %2068 = vmatpush1.msra.mxu0 0.0
  %2069 = vmatprep.subr.mxu0 0.0
  %2070 = vmatpush1.msra.mxu0 0.0
  %2071 = vmatprep.subr.mxu0 0.0
  %2072 = vmatpush1.msra.mxu0 0.0
  %2073 = vmatprep.subr.mxu0 0.0
  %2074 = vmatpush1.msra.mxu0 0.0
  %2075 = vmatprep.subr.mxu0 0.0
  %2076 = vmatpush1.msra.mxu0 0.0
  %2077 = vmatprep.subr.mxu0 0.0
  %2078 = vmatpush1.msra.mxu0 0.0
  %2079 = vmatprep.subr.mxu0 0.0
  %2080 = vmatpush1.msra.mxu0 0.0
  %2081 = vmatprep.subr.mxu0 0.0
  %2082 = vmatpush1.msra.mxu0 0.0
  %2083 = vmatprep.subr.mxu0 0.0
  %2084 = vmatpush1.msra.mxu0 0.0
  %2085 = vmatprep.subr.mxu0 0.0
  %2086 = vmatpush1.msra.mxu0 0.0
  %2087 = vmatprep.subr.mxu0 0.0
  %2088 = vmatpush1.msra.mxu0 0.0
  %2089 = vmatprep.subr.mxu0 0.0
  %2090 = vmatpush1.msra.mxu0 0.0
  %2091 = vmatprep.subr.mxu0 0.0
  %2092 = vmatpush1.msra.mxu0 0.0
  %2093 = vmatprep.subr.mxu0 0.0
  %2094 = vmatpush1.msra.mxu0 0.0
  %2095 = vmatprep.mubr.f32.mxu0 0.0
  %2096 = vmatmul.mubr.f32.gmra.mrb[0].mxu0 %v2029
  %v2097 = vpop.f32.mrb[0].mxu0
  %v2098 = vadd.f32 0.0, %v2097
  %v2099 = vpop.f32.mrb[0].mxu0
  %2100 = vdwg.mxu0
  %2102 = vrot.lane.b32.xlu0 %v2028, 32
  %v2103 = vpop.permute.xlu0 %2102
  %v2104 = vsel %vm176, %v2103, 0
  %2106 = vmatprep.subr.mxu0 0.0
  %2107 = vmatpush1.msra.mxu0 %v160
  %2108 = vmatprep.subr.mxu0 0.0
  %2109 = vmatpush1.msra.mxu0 %v161
  %2110 = vmatprep.subr.mxu0 0.0
  %2111 = vmatpush1.msra.mxu0 %v162
  %2112 = vmatprep.subr.mxu0 0.0
  %2113 = vmatpush1.msra.mxu0 %v163
  %2114 = vmatprep.subr.mxu0 0.0
  %2115 = vmatpush1.msra.mxu0 0.0
  %2116 = vmatprep.subr.mxu0 0.0
  %2117 = vmatpush1.msra.mxu0 0.0
  %2118 = vmatprep.subr.mxu0 0.0
  %2119 = vmatpush1.msra.mxu0 0.0
  %2120 = vmatprep.subr.mxu0 0.0
  %2121 = vmatpush1.msra.mxu0 0.0
  %2122 = vmatprep.subr.mxu0 0.0
  %2123 = vmatpush1.msra.mxu0 0.0
  %2124 = vmatprep.subr.mxu0 0.0
  %2125 = vmatpush1.msra.mxu0 0.0
  %2126 = vmatprep.subr.mxu0 0.0
  %2127 = vmatpush1.msra.mxu0 0.0
  %2128 = vmatprep.subr.mxu0 0.0
  %2129 = vmatpush1.msra.mxu0 0.0
  %2130 = vmatprep.subr.mxu0 0.0
  %2131 = vmatpush1.msra.mxu0 0.0
  %2132 = vmatprep.subr.mxu0 0.0
  %2133 = vmatpush1.msra.mxu0 0.0
  %2134 = vmatprep.subr.mxu0 0.0
  %2135 = vmatpush1.msra.mxu0 0.0
  %2136 = vmatprep.subr.mxu0 0.0
  %2137 = vmatpush1.msra.mxu0 0.0
  %2138 = vmatprep.subr.mxu0 0.0
  %2139 = vmatpush1.msra.mxu0 0.0
  %2140 = vmatprep.subr.mxu0 0.0
  %2141 = vmatpush1.msra.mxu0 0.0
  %2142 = vmatprep.subr.mxu0 0.0
  %2143 = vmatpush1.msra.mxu0 0.0
  %2144 = vmatprep.subr.mxu0 0.0
  %2145 = vmatpush1.msra.mxu0 0.0
  %2146 = vmatprep.subr.mxu0 0.0
  %2147 = vmatpush1.msra.mxu0 0.0
  %2148 = vmatprep.subr.mxu0 0.0
  %2149 = vmatpush1.msra.mxu0 0.0
  %2150 = vmatprep.subr.mxu0 0.0
  %2151 = vmatpush1.msra.mxu0 0.0
  %2152 = vmatprep.subr.mxu0 0.0
  %2153 = vmatpush1.msra.mxu0 0.0
  %2154 = vmatprep.subr.mxu0 0.0
  %2155 = vmatpush1.msra.mxu0 0.0
  %2156 = vmatprep.subr.mxu0 0.0
  %2157 = vmatpush1.msra.mxu0 0.0
  %2158 = vmatprep.subr.mxu0 0.0
  %2159 = vmatpush1.msra.mxu0 0.0
  %2160 = vmatprep.subr.mxu0 0.0
  %2161 = vmatpush1.msra.mxu0 0.0
  %2162 = vmatprep.subr.mxu0 0.0
  %2163 = vmatpush1.msra.mxu0 0.0
  %2164 = vmatprep.subr.mxu0 0.0
  %2165 = vmatpush1.msra.mxu0 0.0
  %2166 = vmatprep.subr.mxu0 0.0
  %2167 = vmatpush1.msra.mxu0 0.0
  %2168 = vmatprep.subr.mxu0 0.0
  %2169 = vmatpush1.msra.mxu0 0.0
  %2170 = vmatprep.mubr.f32.mxu0 0.0
  %2171 = vmatmul.mubr.f32.gmra.mrb[0].mxu0 %v2104
  %v2172 = vpop.f32.mrb[0].mxu0
  %v2173 = vadd.f32 %v2098, %v2172
  %v2174 = vpop.f32.mrb[0].mxu0
  %2175 = vdwg.mxu0
  %v2176 = vadd.f32 %v2173, %v173
  %v2177 = vxor.u32 %v2176, 2147483648
  %v2178 = vmul.f32 %v2177, 1.442695
  %v2179 = vpow.pop %v2178
  %v2180 = vadd.f32 %v2179, 1.0
  %v2181 = vrcp.pop %v2180
  %v2182 = vmul.f32 1.0, %v2181
  %v2183 = vmul.f32 %v2182, 2.0
  %v2184 = vsub.f32 %v2183, 1.0
  %v2185 = vmul.f32 %v2182, %v1904
  %2187 = vrot.lane.b32.xlu0 %v2184, 64
  %v2188 = vpop.permute.xlu0 %2187
  %v2190 = vmul.f32 %v2182, %v2188
  %2192 = vrot.lane.b32.xlu0 %v2190, 32
  %v2193 = vpop.permute.xlu0 %2192
  %v2195 = vadd.f32 %v2185, %v2193
  %v2196 = vmul.f32 %v2195, 2.0
  %v2197 = vxor.u32 %v2196, 2147483648
  %v2198 = vmul.f32 %v2197, 1.442695
  %v2199 = vpow.pop %v2198
  %v2200 = vadd.f32 %v2199, 1.0
  %v2201 = vrcp.pop %v2200
  %v2202 = vmul.f32 1.0, %v2201
  %v2203 = vmul.f32 %v2202, 2.0
  %v2204 = vsub.f32 %v2203, 1.0
  %2206 = vrot.lane.b32.xlu0 %v2204, 64
  %v2207 = vpop.permute.xlu0 %2206
  %v2209 = vmul.f32 %v2182, %v2207
  %2211 = vrot.lane.b32.xlu0 %v2209, 32
  %v2212 = vpop.permute.xlu0 %2211
  %2214 = vst.msk [vmem:[#allocation3 + $0xc] sm:$0x3] %vm467, %v2212
  %v2215 = vld [vmem:[#allocation2 + $0xe] sm:$0x3]
  %2216 = vmatprep.subr.mxu0 0.0
  %2217 = vmatpush1.msra.mxu0 %v156
  %2218 = vmatprep.subr.mxu0 0.0
  %2219 = vmatpush1.msra.mxu0 %v157
  %2220 = vmatprep.subr.mxu0 0.0
  %2221 = vmatpush1.msra.mxu0 %v158
  %2222 = vmatprep.subr.mxu0 0.0
  %2223 = vmatpush1.msra.mxu0 %v159
  %2224 = vmatprep.subr.mxu0 0.0
  %2225 = vmatpush1.msra.mxu0 0.0
  %2226 = vmatprep.subr.mxu0 0.0
  %2227 = vmatpush1.msra.mxu0 0.0
  %2228 = vmatprep.subr.mxu0 0.0
  %2229 = vmatpush1.msra.mxu0 0.0
  %2230 = vmatprep.subr.mxu0 0.0
  %2231 = vmatpush1.msra.mxu0 0.0
  %2232 = vmatprep.subr.mxu0 0.0
  %2233 = vmatpush1.msra.mxu0 0.0
  %2234 = vmatprep.subr.mxu0 0.0
  %2235 = vmatpush1.msra.mxu0 0.0
  %2236 = vmatprep.subr.mxu0 0.0
  %2237 = vmatpush1.msra.mxu0 0.0
  %2238 = vmatprep.subr.mxu0 0.0
  %2239 = vmatpush1.msra.mxu0 0.0
  %2240 = vmatprep.subr.mxu0 0.0
  %2241 = vmatpush1.msra.mxu0 0.0
  %2242 = vmatprep.subr.mxu0 0.0
  %2243 = vmatpush1.msra.mxu0 0.0
  %2244 = vmatprep.subr.mxu0 0.0
  %2245 = vmatpush1.msra.mxu0 0.0
  %2246 = vmatprep.subr.mxu0 0.0
  %2247 = vmatpush1.msra.mxu0 0.0
  %2248 = vmatprep.subr.mxu0 0.0
  %2249 = vmatpush1.msra.mxu0 0.0
  %2250 = vmatprep.subr.mxu0 0.0
  %2251 = vmatpush1.msra.mxu0 0.0
  %2252 = vmatprep.subr.mxu0 0.0
  %2253 = vmatpush1.msra.mxu0 0.0
  %2254 = vmatprep.subr.mxu0 0.0
  %2255 = vmatpush1.msra.mxu0 0.0
  %2256 = vmatprep.subr.mxu0 0.0
  %2257 = vmatpush1.msra.mxu0 0.0
  %2258 = vmatprep.subr.mxu0 0.0
  %2259 = vmatpush1.msra.mxu0 0.0
  %2260 = vmatprep.subr.mxu0 0.0
  %2261 = vmatpush1.msra.mxu0 0.0
  %2262 = vmatprep.subr.mxu0 0.0
  %2263 = vmatpush1.msra.mxu0 0.0
  %2264 = vmatprep.subr.mxu0 0.0
  %2265 = vmatpush1.msra.mxu0 0.0
  %2266 = vmatprep.subr.mxu0 0.0
  %2267 = vmatpush1.msra.mxu0 0.0
  %2268 = vmatprep.subr.mxu0 0.0
  %2269 = vmatpush1.msra.mxu0 0.0
  %2270 = vmatprep.subr.mxu0 0.0
  %2271 = vmatpush1.msra.mxu0 0.0
  %2272 = vmatprep.subr.mxu0 0.0
  %2273 = vmatpush1.msra.mxu0 0.0
  %2274 = vmatprep.subr.mxu0 0.0
  %2275 = vmatpush1.msra.mxu0 0.0
  %2276 = vmatprep.subr.mxu0 0.0
  %2277 = vmatpush1.msra.mxu0 0.0
  %2278 = vmatprep.subr.mxu0 0.0
  %2279 = vmatpush1.msra.mxu0 0.0
  %2280 = vmatprep.mubr.f32.mxu0 0.0
  %2281 = vmatmul.mubr.f32.gmra.mrb[0].mxu0 %v2104
  %v2282 = vpop.f32.mrb[0].mxu0
  %v2283 = vadd.f32 0.0, %v2282
  %v2284 = vpop.f32.mrb[0].mxu0
  %2285 = vdwg.mxu0
  %v2286 = vadd.f32 %v2215, %v2283
  %v2287 = vxor.u32 %v2286, 2147483648
  %v2288 = vmul.f32 %v2287, 1.442695
  %v2289 = vpow.pop %v2288
  %v2290 = vadd.f32 %v2289, 1.0
  %v2291 = vrcp.pop %v2290
  %v2292 = vmul.f32 1.0, %v2291
  %v2293 = vmul.f32 %v2292, 2.0
  %v2294 = vsub.f32 %v2293, 1.0
  %v2295 = vmul.f32 %v2292, %v2014
  %2297 = vrot.lane.b32.xlu0 %v2294, 64
  %v2298 = vpop.permute.xlu0 %2297
  %v2300 = vmul.f32 %v2292, %v2298
  %2302 = vrot.lane.b32.xlu0 %v2300, 32
  %v2303 = vpop.permute.xlu0 %2302
  %v2305 = vadd.f32 %v2295, %v2303
  %v2306 = vmul.f32 %v2305, 2.0
  %v2307 = vxor.u32 %v2306, 2147483648
  %v2308 = vmul.f32 %v2307, 1.442695
  %v2309 = vpow.pop %v2308
  %v2310 = vadd.f32 %v2309, 1.0
  %v2311 = vrcp.pop %v2310
  %v2312 = vmul.f32 1.0, %v2311
  %v2313 = vmul.f32 %v2312, 2.0
  %v2314 = vsub.f32 %v2313, 1.0
  %2316 = vrot.lane.b32.xlu0 %v2314, 64
  %v2317 = vpop.permute.xlu0 %2316
  %v2319 = vmul.f32 %v2292, %v2317
  %v2320 = vsel %vm176, %v2212, 0
  %2322 = vmatprep.subr.mxu0 0.0
  %2323 = vmatpush1.msra.mxu0 %v164
  %2324 = vmatprep.subr.mxu0 0.0
  %2325 = vmatpush1.msra.mxu0 %v165
  %2326 = vmatprep.subr.mxu0 0.0
  %2327 = vmatpush1.msra.mxu0 %v166
  %2328 = vmatprep.subr.mxu0 0.0
  %2329 = vmatpush1.msra.mxu0 %v167
  %2330 = vmatprep.subr.mxu0 0.0
  %2331 = vmatpush1.msra.mxu0 0.0
  %2332 = vmatprep.subr.mxu0 0.0
  %2333 = vmatpush1.msra.mxu0 0.0
  %2334 = vmatprep.subr.mxu0 0.0
  %2335 = vmatpush1.msra.mxu0 0.0
  %2336 = vmatprep.subr.mxu0 0.0
  %2337 = vmatpush1.msra.mxu0 0.0
  %2338 = vmatprep.subr.mxu0 0.0
  %2339 = vmatpush1.msra.mxu0 0.0
  %2340 = vmatprep.subr.mxu0 0.0
  %2341 = vmatpush1.msra.mxu0 0.0
  %2342 = vmatprep.subr.mxu0 0.0
  %2343 = vmatpush1.msra.mxu0 0.0
  %2344 = vmatprep.subr.mxu0 0.0
  %2345 = vmatpush1.msra.mxu0 0.0
  %2346 = vmatprep.subr.mxu0 0.0
  %2347 = vmatpush1.msra.mxu0 0.0
  %2348 = vmatprep.subr.mxu0 0.0
  %2349 = vmatpush1.msra.mxu0 0.0
  %2350 = vmatprep.subr.mxu0 0.0
  %2351 = vmatpush1.msra.mxu0 0.0
  %2352 = vmatprep.subr.mxu0 0.0
  %2353 = vmatpush1.msra.mxu0 0.0
  %2354 = vmatprep.subr.mxu0 0.0
  %2355 = vmatpush1.msra.mxu0 0.0
  %2356 = vmatprep.subr.mxu0 0.0
  %2357 = vmatpush1.msra.mxu0 0.0
  %2358 = vmatprep.subr.mxu0 0.0
  %2359 = vmatpush1.msra.mxu0 0.0
  %2360 = vmatprep.subr.mxu0 0.0
  %2361 = vmatpush1.msra.mxu0 0.0
  %2362 = vmatprep.subr.mxu0 0.0
  %2363 = vmatpush1.msra.mxu0 0.0
  %2364 = vmatprep.subr.mxu0 0.0
  %2365 = vmatpush1.msra.mxu0 0.0
  %2366 = vmatprep.subr.mxu0 0.0
  %2367 = vmatpush1.msra.mxu0 0.0
  %2368 = vmatprep.subr.mxu0 0.0
  %2369 = vmatpush1.msra.mxu0 0.0
  %2370 = vmatprep.subr.mxu0 0.0
  %2371 = vmatpush1.msra.mxu0 0.0
  %2372 = vmatprep.subr.mxu0 0.0
  %2373 = vmatpush1.msra.mxu0 0.0
  %2374 = vmatprep.subr.mxu0 0.0
  %2375 = vmatpush1.msra.mxu0 0.0
  %2376 = vmatprep.subr.mxu0 0.0
  %2377 = vmatpush1.msra.mxu0 0.0
  %2378 = vmatprep.subr.mxu0 0.0
  %2379 = vmatpush1.msra.mxu0 0.0
  %2380 = vmatprep.subr.mxu0 0.0
  %2381 = vmatpush1.msra.mxu0 0.0
  %2382 = vmatprep.subr.mxu0 0.0
  %2383 = vmatpush1.msra.mxu0 0.0
  %2384 = vmatprep.subr.mxu0 0.0
  %2385 = vmatpush1.msra.mxu0 0.0
  %2386 = vmatprep.mubr.f32.mxu0 0.0
  %2387 = vmatmul.mubr.f32.gmra.mrb[0].mxu0 %v2320
  %v2388 = vpop.f32.mrb[0].mxu0
  %v2389 = vadd.f32 0.0, %v2388
  %v2390 = vpop.f32.mrb[0].mxu0
  %2391 = vdwg.mxu0
  %2393 = vrot.lane.b32.xlu0 %v2319, 32
  %v2394 = vpop.permute.xlu0 %2393
  %v2395 = vsel %vm176, %v2394, 0
  %2397 = vmatprep.subr.mxu0 0.0
  %2398 = vmatpush1.msra.mxu0 %v160
  %2399 = vmatprep.subr.mxu0 0.0
  %2400 = vmatpush1.msra.mxu0 %v161
  %2401 = vmatprep.subr.mxu0 0.0
  %2402 = vmatpush1.msra.mxu0 %v162
  %2403 = vmatprep.subr.mxu0 0.0
  %2404 = vmatpush1.msra.mxu0 %v163
  %2405 = vmatprep.subr.mxu0 0.0
  %2406 = vmatpush1.msra.mxu0 0.0
  %2407 = vmatprep.subr.mxu0 0.0
  %2408 = vmatpush1.msra.mxu0 0.0
  %2409 = vmatprep.subr.mxu0 0.0
  %2410 = vmatpush1.msra.mxu0 0.0
  %2411 = vmatprep.subr.mxu0 0.0
  %2412 = vmatpush1.msra.mxu0 0.0
  %2413 = vmatprep.subr.mxu0 0.0
  %2414 = vmatpush1.msra.mxu0 0.0
  %2415 = vmatprep.subr.mxu0 0.0
  %2416 = vmatpush1.msra.mxu0 0.0
  %2417 = vmatprep.subr.mxu0 0.0
  %2418 = vmatpush1.msra.mxu0 0.0
  %2419 = vmatprep.subr.mxu0 0.0
  %2420 = vmatpush1.msra.mxu0 0.0
  %2421 = vmatprep.subr.mxu0 0.0
  %2422 = vmatpush1.msra.mxu0 0.0
  %2423 = vmatprep.subr.mxu0 0.0
  %2424 = vmatpush1.msra.mxu0 0.0
  %2425 = vmatprep.subr.mxu0 0.0
  %2426 = vmatpush1.msra.mxu0 0.0
  %2427 = vmatprep.subr.mxu0 0.0
  %2428 = vmatpush1.msra.mxu0 0.0
  %2429 = vmatprep.subr.mxu0 0.0
  %2430 = vmatpush1.msra.mxu0 0.0
  %2431 = vmatprep.subr.mxu0 0.0
  %2432 = vmatpush1.msra.mxu0 0.0
  %2433 = vmatprep.subr.mxu0 0.0
  %2434 = vmatpush1.msra.mxu0 0.0
  %2435 = vmatprep.subr.mxu0 0.0
  %2436 = vmatpush1.msra.mxu0 0.0
  %2437 = vmatprep.subr.mxu0 0.0
  %2438 = vmatpush1.msra.mxu0 0.0
  %2439 = vmatprep.subr.mxu0 0.0
  %2440 = vmatpush1.msra.mxu0 0.0
  %2441 = vmatprep.subr.mxu0 0.0
  %2442 = vmatpush1.msra.mxu0 0.0
  %2443 = vmatprep.subr.mxu0 0.0
  %2444 = vmatpush1.msra.mxu0 0.0
  %2445 = vmatprep.subr.mxu0 0.0
  %2446 = vmatpush1.msra.mxu0 0.0
  %2447 = vmatprep.subr.mxu0 0.0
  %2448 = vmatpush1.msra.mxu0 0.0
  %2449 = vmatprep.subr.mxu0 0.0
  %2450 = vmatpush1.msra.mxu0 0.0
  %2451 = vmatprep.subr.mxu0 0.0
  %2452 = vmatpush1.msra.mxu0 0.0
  %2453 = vmatprep.subr.mxu0 0.0
  %2454 = vmatpush1.msra.mxu0 0.0
  %2455 = vmatprep.subr.mxu0 0.0
  %2456 = vmatpush1.msra.mxu0 0.0
  %2457 = vmatprep.subr.mxu0 0.0
  %2458 = vmatpush1.msra.mxu0 0.0
  %2459 = vmatprep.subr.mxu0 0.0
  %2460 = vmatpush1.msra.mxu0 0.0
  %2461 = vmatprep.mubr.f32.mxu0 0.0
  %2462 = vmatmul.mubr.f32.gmra.mrb[0].mxu0 %v2395
  %v2463 = vpop.f32.mrb[0].mxu0
  %v2464 = vadd.f32 %v2389, %v2463
  %v2465 = vpop.f32.mrb[0].mxu0
  %2466 = vdwg.mxu0
  %v2467 = vadd.f32 %v2464, %v173
  %v2468 = vxor.u32 %v2467, 2147483648
  %v2469 = vmul.f32 %v2468, 1.442695
  %v2470 = vpow.pop %v2469
  %v2471 = vadd.f32 %v2470, 1.0
  %v2472 = vrcp.pop %v2471
  %v2473 = vmul.f32 1.0, %v2472
  %v2474 = vmul.f32 %v2473, 2.0
  %v2475 = vsub.f32 %v2474, 1.0
  %v2476 = vmul.f32 %v2473, %v2195
  %2478 = vrot.lane.b32.xlu0 %v2475, 64
  %v2479 = vpop.permute.xlu0 %2478
  %v2481 = vmul.f32 %v2473, %v2479
  %2483 = vrot.lane.b32.xlu0 %v2481, 32
  %v2484 = vpop.permute.xlu0 %2483
  %v2486 = vadd.f32 %v2476, %v2484
  %v2487 = vmul.f32 %v2486, 2.0
  %v2488 = vxor.u32 %v2487, 2147483648
  %v2489 = vmul.f32 %v2488, 1.442695
  %v2490 = vpow.pop %v2489
  %v2491 = vadd.f32 %v2490, 1.0
  %v2492 = vrcp.pop %v2491
  %v2493 = vmul.f32 1.0, %v2492
  %v2494 = vmul.f32 %v2493, 2.0
  %v2495 = vsub.f32 %v2494, 1.0
  %2497 = vrot.lane.b32.xlu0 %v2495, 64
  %v2498 = vpop.permute.xlu0 %2497
  %v2500 = vmul.f32 %v2473, %v2498
  %2502 = vrot.lane.b32.xlu0 %v2500, 32
  %v2503 = vpop.permute.xlu0 %2502
  %2505 = vst.msk [vmem:[#allocation3 + $0xe] sm:$0x3] %vm467, %v2503
  %v2506 = vld [vmem:[#allocation2 + $0x10] sm:$0x3]
  %2507 = vmatprep.subr.mxu0 0.0
  %2508 = vmatpush1.msra.mxu0 %v156
  %2509 = vmatprep.subr.mxu0 0.0
  %2510 = vmatpush1.msra.mxu0 %v157
  %2511 = vmatprep.subr.mxu0 0.0
  %2512 = vmatpush1.msra.mxu0 %v158
  %2513 = vmatprep.subr.mxu0 0.0
  %2514 = vmatpush1.msra.mxu0 %v159
  %2515 = vmatprep.subr.mxu0 0.0
  %2516 = vmatpush1.msra.mxu0 0.0
  %2517 = vmatprep.subr.mxu0 0.0
  %2518 = vmatpush1.msra.mxu0 0.0
  %2519 = vmatprep.subr.mxu0 0.0
  %2520 = vmatpush1.msra.mxu0 0.0
  %2521 = vmatprep.subr.mxu0 0.0
  %2522 = vmatpush1.msra.mxu0 0.0
  %2523 = vmatprep.subr.mxu0 0.0
  %2524 = vmatpush1.msra.mxu0 0.0
  %2525 = vmatprep.subr.mxu0 0.0
  %2526 = vmatpush1.msra.mxu0 0.0
  %2527 = vmatprep.subr.mxu0 0.0
  %2528 = vmatpush1.msra.mxu0 0.0
  %2529 = vmatprep.subr.mxu0 0.0
  %2530 = vmatpush1.msra.mxu0 0.0
  %2531 = vmatprep.subr.mxu0 0.0
  %2532 = vmatpush1.msra.mxu0 0.0
  %2533 = vmatprep.subr.mxu0 0.0
  %2534 = vmatpush1.msra.mxu0 0.0
  %2535 = vmatprep.subr.mxu0 0.0
  %2536 = vmatpush1.msra.mxu0 0.0
  %2537 = vmatprep.subr.mxu0 0.0
  %2538 = vmatpush1.msra.mxu0 0.0
  %2539 = vmatprep.subr.mxu0 0.0
  %2540 = vmatpush1.msra.mxu0 0.0
  %2541 = vmatprep.subr.mxu0 0.0
  %2542 = vmatpush1.msra.mxu0 0.0
  %2543 = vmatprep.subr.mxu0 0.0
  %2544 = vmatpush1.msra.mxu0 0.0
  %2545 = vmatprep.subr.mxu0 0.0
  %2546 = vmatpush1.msra.mxu0 0.0
  %2547 = vmatprep.subr.mxu0 0.0
  %2548 = vmatpush1.msra.mxu0 0.0
  %2549 = vmatprep.subr.mxu0 0.0
  %2550 = vmatpush1.msra.mxu0 0.0
  %2551 = vmatprep.subr.mxu0 0.0
  %2552 = vmatpush1.msra.mxu0 0.0
  %2553 = vmatprep.subr.mxu0 0.0
  %2554 = vmatpush1.msra.mxu0 0.0
  %2555 = vmatprep.subr.mxu0 0.0
  %2556 = vmatpush1.msra.mxu0 0.0
  %2557 = vmatprep.subr.mxu0 0.0
  %2558 = vmatpush1.msra.mxu0 0.0
  %2559 = vmatprep.subr.mxu0 0.0
  %2560 = vmatpush1.msra.mxu0 0.0
  %2561 = vmatprep.subr.mxu0 0.0
  %2562 = vmatpush1.msra.mxu0 0.0
  %2563 = vmatprep.subr.mxu0 0.0
  %2564 = vmatpush1.msra.mxu0 0.0
  %2565 = vmatprep.subr.mxu0 0.0
  %2566 = vmatpush1.msra.mxu0 0.0
  %2567 = vmatprep.subr.mxu0 0.0
  %2568 = vmatpush1.msra.mxu0 0.0
  %2569 = vmatprep.subr.mxu0 0.0
  %2570 = vmatpush1.msra.mxu0 0.0
  %2571 = vmatprep.mubr.f32.mxu0 0.0
  %2572 = vmatmul.mubr.f32.gmra.mrb[0].mxu0 %v2395
  %v2573 = vpop.f32.mrb[0].mxu0
  %v2574 = vadd.f32 0.0, %v2573
  %v2575 = vpop.f32.mrb[0].mxu0
  %2576 = vdwg.mxu0
  %v2577 = vadd.f32 %v2506, %v2574
  %v2578 = vxor.u32 %v2577, 2147483648
  %v2579 = vmul.f32 %v2578, 1.442695
  %v2580 = vpow.pop %v2579
  %v2581 = vadd.f32 %v2580, 1.0
  %v2582 = vrcp.pop %v2581
  %v2583 = vmul.f32 1.0, %v2582
  %v2584 = vmul.f32 %v2583, 2.0
  %v2585 = vsub.f32 %v2584, 1.0
  %v2586 = vmul.f32 %v2583, %v2305
  %2588 = vrot.lane.b32.xlu0 %v2585, 64
  %v2589 = vpop.permute.xlu0 %2588
  %v2591 = vmul.f32 %v2583, %v2589
  %2593 = vrot.lane.b32.xlu0 %v2591, 32
  %v2594 = vpop.permute.xlu0 %2593
  %v2596 = vadd.f32 %v2586, %v2594
  %v2597 = vmul.f32 %v2596, 2.0
  %v2598 = vxor.u32 %v2597, 2147483648
  %v2599 = vmul.f32 %v2598, 1.442695
  %v2600 = vpow.pop %v2599
  %v2601 = vadd.f32 %v2600, 1.0
  %v2602 = vrcp.pop %v2601
  %v2603 = vmul.f32 1.0, %v2602
  %v2604 = vmul.f32 %v2603, 2.0
  %v2605 = vsub.f32 %v2604, 1.0
  %2607 = vrot.lane.b32.xlu0 %v2605, 64
  %v2608 = vpop.permute.xlu0 %2607
  %v2610 = vmul.f32 %v2583, %v2608
  %v2611 = vsel %vm176, %v2503, 0
  %2613 = vmatprep.subr.mxu0 0.0
  %2614 = vmatpush1.msra.mxu0 %v164
  %2615 = vmatprep.subr.mxu0 0.0
  %2616 = vmatpush1.msra.mxu0 %v165
  %2617 = vmatprep.subr.mxu0 0.0
  %2618 = vmatpush1.msra.mxu0 %v166
  %2619 = vmatprep.subr.mxu0 0.0
  %2620 = vmatpush1.msra.mxu0 %v167
  %2621 = vmatprep.subr.mxu0 0.0
  %2622 = vmatpush1.msra.mxu0 0.0
  %2623 = vmatprep.subr.mxu0 0.0
  %2624 = vmatpush1.msra.mxu0 0.0
  %2625 = vmatprep.subr.mxu0 0.0
  %2626 = vmatpush1.msra.mxu0 0.0
  %2627 = vmatprep.subr.mxu0 0.0
  %2628 = vmatpush1.msra.mxu0 0.0
  %2629 = vmatprep.subr.mxu0 0.0
  %2630 = vmatpush1.msra.mxu0 0.0
  %2631 = vmatprep.subr.mxu0 0.0
  %2632 = vmatpush1.msra.mxu0 0.0
  %2633 = vmatprep.subr.mxu0 0.0
  %2634 = vmatpush1.msra.mxu0 0.0
  %2635 = vmatprep.subr.mxu0 0.0
  %2636 = vmatpush1.msra.mxu0 0.0
  %2637 = vmatprep.subr.mxu0 0.0
  %2638 = vmatpush1.msra.mxu0 0.0
  %2639 = vmatprep.subr.mxu0 0.0
  %2640 = vmatpush1.msra.mxu0 0.0
  %2641 = vmatprep.subr.mxu0 0.0
  %2642 = vmatpush1.msra.mxu0 0.0
  %2643 = vmatprep.subr.mxu0 0.0
  %2644 = vmatpush1.msra.mxu0 0.0
  %2645 = vmatprep.subr.mxu0 0.0
  %2646 = vmatpush1.msra.mxu0 0.0
  %2647 = vmatprep.subr.mxu0 0.0
  %2648 = vmatpush1.msra.mxu0 0.0
  %2649 = vmatprep.subr.mxu0 0.0
  %2650 = vmatpush1.msra.mxu0 0.0
  %2651 = vmatprep.subr.mxu0 0.0
  %2652 = vmatpush1.msra.mxu0 0.0
  %2653 = vmatprep.subr.mxu0 0.0
  %2654 = vmatpush1.msra.mxu0 0.0
  %2655 = vmatprep.subr.mxu0 0.0
  %2656 = vmatpush1.msra.mxu0 0.0
  %2657 = vmatprep.subr.mxu0 0.0
  %2658 = vmatpush1.msra.mxu0 0.0
  %2659 = vmatprep.subr.mxu0 0.0
  %2660 = vmatpush1.msra.mxu0 0.0
  %2661 = vmatprep.subr.mxu0 0.0
  %2662 = vmatpush1.msra.mxu0 0.0
  %2663 = vmatprep.subr.mxu0 0.0
  %2664 = vmatpush1.msra.mxu0 0.0
  %2665 = vmatprep.subr.mxu0 0.0
  %2666 = vmatpush1.msra.mxu0 0.0
  %2667 = vmatprep.subr.mxu0 0.0
  %2668 = vmatpush1.msra.mxu0 0.0
  %2669 = vmatprep.subr.mxu0 0.0
  %2670 = vmatpush1.msra.mxu0 0.0
  %2671 = vmatprep.subr.mxu0 0.0
  %2672 = vmatpush1.msra.mxu0 0.0
  %2673 = vmatprep.subr.mxu0 0.0
  %2674 = vmatpush1.msra.mxu0 0.0
  %2675 = vmatprep.subr.mxu0 0.0
  %2676 = vmatpush1.msra.mxu0 0.0
  %2677 = vmatprep.mubr.f32.mxu0 0.0
  %2678 = vmatmul.mubr.f32.gmra.mrb[0].mxu0 %v2611
  %v2679 = vpop.f32.mrb[0].mxu0
  %v2680 = vadd.f32 0.0, %v2679
  %v2681 = vpop.f32.mrb[0].mxu0
  %2682 = vdwg.mxu0
  %2684 = vrot.lane.b32.xlu0 %v2610, 32
  %v2685 = vpop.permute.xlu0 %2684
  %v2686 = vsel %vm176, %v2685, 0
  %2688 = vmatprep.subr.mxu0 0.0
  %2689 = vmatpush1.msra.mxu0 %v160
  %2690 = vmatprep.subr.mxu0 0.0
  %2691 = vmatpush1.msra.mxu0 %v161
  %2692 = vmatprep.subr.mxu0 0.0
  %2693 = vmatpush1.msra.mxu0 %v162
  %2694 = vmatprep.subr.mxu0 0.0
  %2695 = vmatpush1.msra.mxu0 %v163
  %2696 = vmatprep.subr.mxu0 0.0
  %2697 = vmatpush1.msra.mxu0 0.0
  %2698 = vmatprep.subr.mxu0 0.0
  %2699 = vmatpush1.msra.mxu0 0.0
  %2700 = vmatprep.subr.mxu0 0.0
  %2701 = vmatpush1.msra.mxu0 0.0
  %2702 = vmatprep.subr.mxu0 0.0
  %2703 = vmatpush1.msra.mxu0 0.0
  %2704 = vmatprep.subr.mxu0 0.0
  %2705 = vmatpush1.msra.mxu0 0.0
  %2706 = vmatprep.subr.mxu0 0.0
  %2707 = vmatpush1.msra.mxu0 0.0
  %2708 = vmatprep.subr.mxu0 0.0
  %2709 = vmatpush1.msra.mxu0 0.0
  %2710 = vmatprep.subr.mxu0 0.0
  %2711 = vmatpush1.msra.mxu0 0.0
  %2712 = vmatprep.subr.mxu0 0.0
  %2713 = vmatpush1.msra.mxu0 0.0
  %2714 = vmatprep.subr.mxu0 0.0
  %2715 = vmatpush1.msra.mxu0 0.0
  %2716 = vmatprep.subr.mxu0 0.0
  %2717 = vmatpush1.msra.mxu0 0.0
  %2718 = vmatprep.subr.mxu0 0.0
  %2719 = vmatpush1.msra.mxu0 0.0
  %2720 = vmatprep.subr.mxu0 0.0
  %2721 = vmatpush1.msra.mxu0 0.0
  %2722 = vmatprep.subr.mxu0 0.0
  %2723 = vmatpush1.msra.mxu0 0.0
  %2724 = vmatprep.subr.mxu0 0.0
  %2725 = vmatpush1.msra.mxu0 0.0
  %2726 = vmatprep.subr.mxu0 0.0
  %2727 = vmatpush1.msra.mxu0 0.0
  %2728 = vmatprep.subr.mxu0 0.0
  %2729 = vmatpush1.msra.mxu0 0.0
  %2730 = vmatprep.subr.mxu0 0.0
  %2731 = vmatpush1.msra.mxu0 0.0
  %2732 = vmatprep.subr.mxu0 0.0
  %2733 = vmatpush1.msra.mxu0 0.0
  %2734 = vmatprep.subr.mxu0 0.0
  %2735 = vmatpush1.msra.mxu0 0.0
  %2736 = vmatprep.subr.mxu0 0.0
  %2737 = vmatpush1.msra.mxu0 0.0
  %2738 = vmatprep.subr.mxu0 0.0
  %2739 = vmatpush1.msra.mxu0 0.0
  %2740 = vmatprep.subr.mxu0 0.0
  %2741 = vmatpush1.msra.mxu0 0.0
  %2742 = vmatprep.subr.mxu0 0.0
  %2743 = vmatpush1.msra.mxu0 0.0
  %2744 = vmatprep.subr.mxu0 0.0
  %2745 = vmatpush1.msra.mxu0 0.0
  %2746 = vmatprep.subr.mxu0 0.0
  %2747 = vmatpush1.msra.mxu0 0.0
  %2748 = vmatprep.subr.mxu0 0.0
  %2749 = vmatpush1.msra.mxu0 0.0
  %2750 = vmatprep.subr.mxu0 0.0
  %2751 = vmatpush1.msra.mxu0 0.0
  %2752 = vmatprep.mubr.f32.mxu0 0.0
  %2753 = vmatmul.mubr.f32.gmra.mrb[0].mxu0 %v2686
  %v2754 = vpop.f32.mrb[0].mxu0
  %v2755 = vadd.f32 %v2680, %v2754
  %v2756 = vpop.f32.mrb[0].mxu0
  %2757 = vdwg.mxu0
  %v2758 = vadd.f32 %v2755, %v173
  %v2759 = vxor.u32 %v2758, 2147483648
  %v2760 = vmul.f32 %v2759, 1.442695
  %v2761 = vpow.pop %v2760
  %v2762 = vadd.f32 %v2761, 1.0
  %v2763 = vrcp.pop %v2762
  %v2764 = vmul.f32 1.0, %v2763
  %v2765 = vmul.f32 %v2764, 2.0
  %v2766 = vsub.f32 %v2765, 1.0
  %v2767 = vmul.f32 %v2764, %v2486
  %2769 = vrot.lane.b32.xlu0 %v2766, 64
  %v2770 = vpop.permute.xlu0 %2769
  %v2772 = vmul.f32 %v2764, %v2770
  %2774 = vrot.lane.b32.xlu0 %v2772, 32
  %v2775 = vpop.permute.xlu0 %2774
  %v2777 = vadd.f32 %v2767, %v2775
  %v2778 = vmul.f32 %v2777, 2.0
  %v2779 = vxor.u32 %v2778, 2147483648
  %v2780 = vmul.f32 %v2779, 1.442695
  %v2781 = vpow.pop %v2780
  %v2782 = vadd.f32 %v2781, 1.0
  %v2783 = vrcp.pop %v2782
  %v2784 = vmul.f32 1.0, %v2783
  %v2785 = vmul.f32 %v2784, 2.0
  %v2786 = vsub.f32 %v2785, 1.0
  %2788 = vrot.lane.b32.xlu0 %v2786, 64
  %v2789 = vpop.permute.xlu0 %2788
  %v2791 = vmul.f32 %v2764, %v2789
  %2793 = vrot.lane.b32.xlu0 %v2791, 32
  %v2794 = vpop.permute.xlu0 %2793
  %2796 = vst.msk [vmem:[#allocation3 + $0x10] sm:$0x3] %vm467, %v2794
  %v2797 = vld [vmem:[#allocation2 + $0x12] sm:$0x3]
  %2798 = vmatprep.subr.mxu0 0.0
  %2799 = vmatpush1.msra.mxu0 %v156
  %2800 = vmatprep.subr.mxu0 0.0
  %2801 = vmatpush1.msra.mxu0 %v157
  %2802 = vmatprep.subr.mxu0 0.0
  %2803 = vmatpush1.msra.mxu0 %v158
  %2804 = vmatprep.subr.mxu0 0.0
  %2805 = vmatpush1.msra.mxu0 %v159
  %2806 = vmatprep.subr.mxu0 0.0
  %2807 = vmatpush1.msra.mxu0 0.0
  %2808 = vmatprep.subr.mxu0 0.0
  %2809 = vmatpush1.msra.mxu0 0.0
  %2810 = vmatprep.subr.mxu0 0.0
  %2811 = vmatpush1.msra.mxu0 0.0
  %2812 = vmatprep.subr.mxu0 0.0
  %2813 = vmatpush1.msra.mxu0 0.0
  %2814 = vmatprep.subr.mxu0 0.0
  %2815 = vmatpush1.msra.mxu0 0.0
  %2816 = vmatprep.subr.mxu0 0.0
  %2817 = vmatpush1.msra.mxu0 0.0
  %2818 = vmatprep.subr.mxu0 0.0
  %2819 = vmatpush1.msra.mxu0 0.0
  %2820 = vmatprep.subr.mxu0 0.0
  %2821 = vmatpush1.msra.mxu0 0.0
  %2822 = vmatprep.subr.mxu0 0.0
  %2823 = vmatpush1.msra.mxu0 0.0
  %2824 = vmatprep.subr.mxu0 0.0
  %2825 = vmatpush1.msra.mxu0 0.0
  %2826 = vmatprep.subr.mxu0 0.0
  %2827 = vmatpush1.msra.mxu0 0.0
  %2828 = vmatprep.subr.mxu0 0.0
  %2829 = vmatpush1.msra.mxu0 0.0
  %2830 = vmatprep.subr.mxu0 0.0
  %2831 = vmatpush1.msra.mxu0 0.0
  %2832 = vmatprep.subr.mxu0 0.0
  %2833 = vmatpush1.msra.mxu0 0.0
  %2834 = vmatprep.subr.mxu0 0.0
  %2835 = vmatpush1.msra.mxu0 0.0
  %2836 = vmatprep.subr.mxu0 0.0
  %2837 = vmatpush1.msra.mxu0 0.0
  %2838 = vmatprep.subr.mxu0 0.0
  %2839 = vmatpush1.msra.mxu0 0.0
  %2840 = vmatprep.subr.mxu0 0.0
  %2841 = vmatpush1.msra.mxu0 0.0
  %2842 = vmatprep.subr.mxu0 0.0
  %2843 = vmatpush1.msra.mxu0 0.0
  %2844 = vmatprep.subr.mxu0 0.0
  %2845 = vmatpush1.msra.mxu0 0.0
  %2846 = vmatprep.subr.mxu0 0.0
  %2847 = vmatpush1.msra.mxu0 0.0
  %2848 = vmatprep.subr.mxu0 0.0
  %2849 = vmatpush1.msra.mxu0 0.0
  %2850 = vmatprep.subr.mxu0 0.0
  %2851 = vmatpush1.msra.mxu0 0.0
  %2852 = vmatprep.subr.mxu0 0.0
  %2853 = vmatpush1.msra.mxu0 0.0
  %2854 = vmatprep.subr.mxu0 0.0
  %2855 = vmatpush1.msra.mxu0 0.0
  %2856 = vmatprep.subr.mxu0 0.0
  %2857 = vmatpush1.msra.mxu0 0.0
  %2858 = vmatprep.subr.mxu0 0.0
  %2859 = vmatpush1.msra.mxu0 0.0
  %2860 = vmatprep.subr.mxu0 0.0
  %2861 = vmatpush1.msra.mxu0 0.0
  %2862 = vmatprep.mubr.f32.mxu0 0.0
  %2863 = vmatmul.mubr.f32.gmra.mrb[0].mxu0 %v2686
  %v2864 = vpop.f32.mrb[0].mxu0
  %v2865 = vadd.f32 0.0, %v2864
  %v2866 = vpop.f32.mrb[0].mxu0
  %2867 = vdwg.mxu0
  %v2868 = vadd.f32 %v2797, %v2865
  %v2869 = vxor.u32 %v2868, 2147483648
  %v2870 = vmul.f32 %v2869, 1.442695
  %v2871 = vpow.pop %v2870
  %v2872 = vadd.f32 %v2871, 1.0
  %v2873 = vrcp.pop %v2872
  %v2874 = vmul.f32 1.0, %v2873
  %v2875 = vmul.f32 %v2874, 2.0
  %v2876 = vsub.f32 %v2875, 1.0
  %v2877 = vmul.f32 %v2874, %v2596
  %2879 = vrot.lane.b32.xlu0 %v2876, 64
  %v2880 = vpop.permute.xlu0 %2879
  %v2882 = vmul.f32 %v2874, %v2880
  %2884 = vrot.lane.b32.xlu0 %v2882, 32
  %v2885 = vpop.permute.xlu0 %2884
  %v2887 = vadd.f32 %v2877, %v2885
  %v2888 = vmul.f32 %v2887, 2.0
  %v2889 = vxor.u32 %v2888, 2147483648
  %v2890 = vmul.f32 %v2889, 1.442695
  %v2891 = vpow.pop %v2890
  %v2892 = vadd.f32 %v2891, 1.0
  %v2893 = vrcp.pop %v2892
  %v2894 = vmul.f32 1.0, %v2893
  %v2895 = vmul.f32 %v2894, 2.0
  %v2896 = vsub.f32 %v2895, 1.0
  %2898 = vrot.lane.b32.xlu0 %v2896, 64
  %v2899 = vpop.permute.xlu0 %2898
  %v2901 = vmul.f32 %v2874, %v2899
  %v2902 = vsel %vm176, %v2794, 0
  %2904 = vmatprep.subr.mxu0 0.0
  %2905 = vmatpush1.msra.mxu0 %v164
  %2906 = vmatprep.subr.mxu0 0.0
  %2907 = vmatpush1.msra.mxu0 %v165
  %2908 = vmatprep.subr.mxu0 0.0
  %2909 = vmatpush1.msra.mxu0 %v166
  %2910 = vmatprep.subr.mxu0 0.0
  %2911 = vmatpush1.msra.mxu0 %v167
  %2912 = vmatprep.subr.mxu0 0.0
  %2913 = vmatpush1.msra.mxu0 0.0
  %2914 = vmatprep.subr.mxu0 0.0
  %2915 = vmatpush1.msra.mxu0 0.0
  %2916 = vmatprep.subr.mxu0 0.0
  %2917 = vmatpush1.msra.mxu0 0.0
  %2918 = vmatprep.subr.mxu0 0.0
  %2919 = vmatpush1.msra.mxu0 0.0
  %2920 = vmatprep.subr.mxu0 0.0
  %2921 = vmatpush1.msra.mxu0 0.0
  %2922 = vmatprep.subr.mxu0 0.0
  %2923 = vmatpush1.msra.mxu0 0.0
  %2924 = vmatprep.subr.mxu0 0.0
  %2925 = vmatpush1.msra.mxu0 0.0
  %2926 = vmatprep.subr.mxu0 0.0
  %2927 = vmatpush1.msra.mxu0 0.0
  %2928 = vmatprep.subr.mxu0 0.0
  %2929 = vmatpush1.msra.mxu0 0.0
  %2930 = vmatprep.subr.mxu0 0.0
  %2931 = vmatpush1.msra.mxu0 0.0
  %2932 = vmatprep.subr.mxu0 0.0
  %2933 = vmatpush1.msra.mxu0 0.0
  %2934 = vmatprep.subr.mxu0 0.0
  %2935 = vmatpush1.msra.mxu0 0.0
  %2936 = vmatprep.subr.mxu0 0.0
  %2937 = vmatpush1.msra.mxu0 0.0
  %2938 = vmatprep.subr.mxu0 0.0
  %2939 = vmatpush1.msra.mxu0 0.0
  %2940 = vmatprep.subr.mxu0 0.0
  %2941 = vmatpush1.msra.mxu0 0.0
  %2942 = vmatprep.subr.mxu0 0.0
  %2943 = vmatpush1.msra.mxu0 0.0
  %2944 = vmatprep.subr.mxu0 0.0
  %2945 = vmatpush1.msra.mxu0 0.0
  %2946 = vmatprep.subr.mxu0 0.0
  %2947 = vmatpush1.msra.mxu0 0.0
  %2948 = vmatprep.subr.mxu0 0.0
  %2949 = vmatpush1.msra.mxu0 0.0
  %2950 = vmatprep.subr.mxu0 0.0
  %2951 = vmatpush1.msra.mxu0 0.0
  %2952 = vmatprep.subr.mxu0 0.0
  %2953 = vmatpush1.msra.mxu0 0.0
  %2954 = vmatprep.subr.mxu0 0.0
  %2955 = vmatpush1.msra.mxu0 0.0
  %2956 = vmatprep.subr.mxu0 0.0
  %2957 = vmatpush1.msra.mxu0 0.0
  %2958 = vmatprep.subr.mxu0 0.0
  %2959 = vmatpush1.msra.mxu0 0.0
  %2960 = vmatprep.subr.mxu0 0.0
  %2961 = vmatpush1.msra.mxu0 0.0
  %2962 = vmatprep.subr.mxu0 0.0
  %2963 = vmatpush1.msra.mxu0 0.0
  %2964 = vmatprep.subr.mxu0 0.0
  %2965 = vmatpush1.msra.mxu0 0.0
  %2966 = vmatprep.subr.mxu0 0.0
  %2967 = vmatpush1.msra.mxu0 0.0
  %2968 = vmatprep.mubr.f32.mxu0 0.0
  %2969 = vmatmul.mubr.f32.gmra.mrb[0].mxu0 %v2902
  %v2970 = vpop.f32.mrb[0].mxu0
  %v2971 = vadd.f32 0.0, %v2970
  %v2972 = vpop.f32.mrb[0].mxu0
  %2973 = vdwg.mxu0
  %2975 = vrot.lane.b32.xlu0 %v2901, 32
  %v2976 = vpop.permute.xlu0 %2975
  %v2977 = vsel %vm176, %v2976, 0
  %2979 = vmatprep.subr.mxu0 0.0
  %2980 = vmatpush1.msra.mxu0 %v160
  %2981 = vmatprep.subr.mxu0 0.0
  %2982 = vmatpush1.msra.mxu0 %v161
  %2983 = vmatprep.subr.mxu0 0.0
  %2984 = vmatpush1.msra.mxu0 %v162
  %2985 = vmatprep.subr.mxu0 0.0
  %2986 = vmatpush1.msra.mxu0 %v163
  %2987 = vmatprep.subr.mxu0 0.0
  %2988 = vmatpush1.msra.mxu0 0.0
  %2989 = vmatprep.subr.mxu0 0.0
  %2990 = vmatpush1.msra.mxu0 0.0
  %2991 = vmatprep.subr.mxu0 0.0
  %2992 = vmatpush1.msra.mxu0 0.0
  %2993 = vmatprep.subr.mxu0 0.0
  %2994 = vmatpush1.msra.mxu0 0.0
  %2995 = vmatprep.subr.mxu0 0.0
  %2996 = vmatpush1.msra.mxu0 0.0
  %2997 = vmatprep.subr.mxu0 0.0
  %2998 = vmatpush1.msra.mxu0 0.0
  %2999 = vmatprep.subr.mxu0 0.0
  %3000 = vmatpush1.msra.mxu0 0.0
  %3001 = vmatprep.subr.mxu0 0.0
  %3002 = vmatpush1.msra.mxu0 0.0
  %3003 = vmatprep.subr.mxu0 0.0
  %3004 = vmatpush1.msra.mxu0 0.0
  %3005 = vmatprep.subr.mxu0 0.0
  %3006 = vmatpush1.msra.mxu0 0.0
  %3007 = vmatprep.subr.mxu0 0.0
  %3008 = vmatpush1.msra.mxu0 0.0
  %3009 = vmatprep.subr.mxu0 0.0
  %3010 = vmatpush1.msra.mxu0 0.0
  %3011 = vmatprep.subr.mxu0 0.0
  %3012 = vmatpush1.msra.mxu0 0.0
  %3013 = vmatprep.subr.mxu0 0.0
  %3014 = vmatpush1.msra.mxu0 0.0
  %3015 = vmatprep.subr.mxu0 0.0
  %3016 = vmatpush1.msra.mxu0 0.0
  %3017 = vmatprep.subr.mxu0 0.0
  %3018 = vmatpush1.msra.mxu0 0.0
  %3019 = vmatprep.subr.mxu0 0.0
  %3020 = vmatpush1.msra.mxu0 0.0
  %3021 = vmatprep.subr.mxu0 0.0
  %3022 = vmatpush1.msra.mxu0 0.0
  %3023 = vmatprep.subr.mxu0 0.0
  %3024 = vmatpush1.msra.mxu0 0.0
  %3025 = vmatprep.subr.mxu0 0.0
  %3026 = vmatpush1.msra.mxu0 0.0
  %3027 = vmatprep.subr.mxu0 0.0
  %3028 = vmatpush1.msra.mxu0 0.0
  %3029 = vmatprep.subr.mxu0 0.0
  %3030 = vmatpush1.msra.mxu0 0.0
  %3031 = vmatprep.subr.mxu0 0.0
  %3032 = vmatpush1.msra.mxu0 0.0
  %3033 = vmatprep.subr.mxu0 0.0
  %3034 = vmatpush1.msra.mxu0 0.0
  %3035 = vmatprep.subr.mxu0 0.0
  %3036 = vmatpush1.msra.mxu0 0.0
  %3037 = vmatprep.subr.mxu0 0.0
  %3038 = vmatpush1.msra.mxu0 0.0
  %3039 = vmatprep.subr.mxu0 0.0
  %3040 = vmatpush1.msra.mxu0 0.0
  %3041 = vmatprep.subr.mxu0 0.0
  %3042 = vmatpush1.msra.mxu0 0.0
  %3043 = vmatprep.mubr.f32.mxu0 0.0
  %3044 = vmatmul.mubr.f32.gmra.mrb[0].mxu0 %v2977
  %v3045 = vpop.f32.mrb[0].mxu0
  %v3046 = vadd.f32 %v2971, %v3045
  %v3047 = vpop.f32.mrb[0].mxu0
  %3048 = vdwg.mxu0
  %v3049 = vadd.f32 %v3046, %v173
  %v3050 = vxor.u32 %v3049, 2147483648
  %v3051 = vmul.f32 %v3050, 1.442695
  %v3052 = vpow.pop %v3051
  %v3053 = vadd.f32 %v3052, 1.0
  %v3054 = vrcp.pop %v3053
  %v3055 = vmul.f32 1.0, %v3054
  %v3056 = vmul.f32 %v3055, 2.0
  %v3057 = vsub.f32 %v3056, 1.0
  %v3058 = vmul.f32 %v3055, %v2777
  %3060 = vrot.lane.b32.xlu0 %v3057, 64
  %v3061 = vpop.permute.xlu0 %3060
  %v3063 = vmul.f32 %v3055, %v3061
  %3065 = vrot.lane.b32.xlu0 %v3063, 32
  %v3066 = vpop.permute.xlu0 %3065
  %v3068 = vadd.f32 %v3058, %v3066
  %v3069 = vmul.f32 %v3068, 2.0
  %v3070 = vxor.u32 %v3069, 2147483648
  %v3071 = vmul.f32 %v3070, 1.442695
  %v3072 = vpow.pop %v3071
  %v3073 = vadd.f32 %v3072, 1.0
  %v3074 = vrcp.pop %v3073
  %v3075 = vmul.f32 1.0, %v3074
  %v3076 = vmul.f32 %v3075, 2.0
  %v3077 = vsub.f32 %v3076, 1.0
  %3079 = vrot.lane.b32.xlu0 %v3077, 64
  %v3080 = vpop.permute.xlu0 %3079
  %v3082 = vmul.f32 %v3055, %v3080
  %3084 = vrot.lane.b32.xlu0 %v3082, 32
  %v3085 = vpop.permute.xlu0 %3084
  %3087 = vst.msk [vmem:[#allocation3 + $0x12] sm:$0x3] %vm467, %v3085
  %v3088 = vld [vmem:[#allocation2 + $0x14] sm:$0x3]
  %3089 = vmatprep.subr.mxu0 0.0
  %3090 = vmatpush1.msra.mxu0 %v156
  %3091 = vmatprep.subr.mxu0 0.0
  %3092 = vmatpush1.msra.mxu0 %v157
  %3093 = vmatprep.subr.mxu0 0.0
  %3094 = vmatpush1.msra.mxu0 %v158
  %3095 = vmatprep.subr.mxu0 0.0
  %3096 = vmatpush1.msra.mxu0 %v159
  %3097 = vmatprep.subr.mxu0 0.0
  %3098 = vmatpush1.msra.mxu0 0.0
  %3099 = vmatprep.subr.mxu0 0.0
  %3100 = vmatpush1.msra.mxu0 0.0
  %3101 = vmatprep.subr.mxu0 0.0
  %3102 = vmatpush1.msra.mxu0 0.0
  %3103 = vmatprep.subr.mxu0 0.0
  %3104 = vmatpush1.msra.mxu0 0.0
  %3105 = vmatprep.subr.mxu0 0.0
  %3106 = vmatpush1.msra.mxu0 0.0
  %3107 = vmatprep.subr.mxu0 0.0
  %3108 = vmatpush1.msra.mxu0 0.0
  %3109 = vmatprep.subr.mxu0 0.0
  %3110 = vmatpush1.msra.mxu0 0.0
  %3111 = vmatprep.subr.mxu0 0.0
  %3112 = vmatpush1.msra.mxu0 0.0
  %3113 = vmatprep.subr.mxu0 0.0
  %3114 = vmatpush1.msra.mxu0 0.0
  %3115 = vmatprep.subr.mxu0 0.0
  %3116 = vmatpush1.msra.mxu0 0.0
  %3117 = vmatprep.subr.mxu0 0.0
  %3118 = vmatpush1.msra.mxu0 0.0
  %3119 = vmatprep.subr.mxu0 0.0
  %3120 = vmatpush1.msra.mxu0 0.0
  %3121 = vmatprep.subr.mxu0 0.0
  %3122 = vmatpush1.msra.mxu0 0.0
  %3123 = vmatprep.subr.mxu0 0.0
  %3124 = vmatpush1.msra.mxu0 0.0
  %3125 = vmatprep.subr.mxu0 0.0
  %3126 = vmatpush1.msra.mxu0 0.0
  %3127 = vmatprep.subr.mxu0 0.0
  %3128 = vmatpush1.msra.mxu0 0.0
  %3129 = vmatprep.subr.mxu0 0.0
  %3130 = vmatpush1.msra.mxu0 0.0
  %3131 = vmatprep.subr.mxu0 0.0
  %3132 = vmatpush1.msra.mxu0 0.0
  %3133 = vmatprep.subr.mxu0 0.0
  %3134 = vmatpush1.msra.mxu0 0.0
  %3135 = vmatprep.subr.mxu0 0.0
  %3136 = vmatpush1.msra.mxu0 0.0
  %3137 = vmatprep.subr.mxu0 0.0
  %3138 = vmatpush1.msra.mxu0 0.0
  %3139 = vmatprep.subr.mxu0 0.0
  %3140 = vmatpush1.msra.mxu0 0.0
  %3141 = vmatprep.subr.mxu0 0.0
  %3142 = vmatpush1.msra.mxu0 0.0
  %3143 = vmatprep.subr.mxu0 0.0
  %3144 = vmatpush1.msra.mxu0 0.0
  %3145 = vmatprep.subr.mxu0 0.0
  %3146 = vmatpush1.msra.mxu0 0.0
  %3147 = vmatprep.subr.mxu0 0.0
  %3148 = vmatpush1.msra.mxu0 0.0
  %3149 = vmatprep.subr.mxu0 0.0
  %3150 = vmatpush1.msra.mxu0 0.0
  %3151 = vmatprep.subr.mxu0 0.0
  %3152 = vmatpush1.msra.mxu0 0.0
  %3153 = vmatprep.mubr.f32.mxu0 0.0
  %3154 = vmatmul.mubr.f32.gmra.mrb[0].mxu0 %v2977
  %v3155 = vpop.f32.mrb[0].mxu0
  %v3156 = vadd.f32 0.0, %v3155
  %v3157 = vpop.f32.mrb[0].mxu0
  %3158 = vdwg.mxu0
  %v3159 = vadd.f32 %v3088, %v3156
  %v3160 = vxor.u32 %v3159, 2147483648
  %v3161 = vmul.f32 %v3160, 1.442695
  %v3162 = vpow.pop %v3161
  %v3163 = vadd.f32 %v3162, 1.0
  %v3164 = vrcp.pop %v3163
  %v3165 = vmul.f32 1.0, %v3164
  %v3166 = vmul.f32 %v3165, 2.0
  %v3167 = vsub.f32 %v3166, 1.0
  %v3168 = vmul.f32 %v3165, %v2887
  %3170 = vrot.lane.b32.xlu0 %v3167, 64
  %v3171 = vpop.permute.xlu0 %3170
  %v3173 = vmul.f32 %v3165, %v3171
  %3175 = vrot.lane.b32.xlu0 %v3173, 32
  %v3176 = vpop.permute.xlu0 %3175
  %v3178 = vadd.f32 %v3168, %v3176
  %v3179 = vmul.f32 %v3178, 2.0
  %v3180 = vxor.u32 %v3179, 2147483648
  %v3181 = vmul.f32 %v3180, 1.442695
  %v3182 = vpow.pop %v3181
  %v3183 = vadd.f32 %v3182, 1.0
  %v3184 = vrcp.pop %v3183
  %v3185 = vmul.f32 1.0, %v3184
  %v3186 = vmul.f32 %v3185, 2.0
  %v3187 = vsub.f32 %v3186, 1.0
  %3189 = vrot.lane.b32.xlu0 %v3187, 64
  %v3190 = vpop.permute.xlu0 %3189
  %v3192 = vmul.f32 %v3165, %v3190
  %v3193 = vsel %vm176, %v3085, 0
  %3195 = vmatprep.subr.mxu0 0.0
  %3196 = vmatpush1.msra.mxu0 %v164
  %3197 = vmatprep.subr.mxu0 0.0
  %3198 = vmatpush1.msra.mxu0 %v165
  %3199 = vmatprep.subr.mxu0 0.0
  %3200 = vmatpush1.msra.mxu0 %v166
  %3201 = vmatprep.subr.mxu0 0.0
  %3202 = vmatpush1.msra.mxu0 %v167
  %3203 = vmatprep.subr.mxu0 0.0
  %3204 = vmatpush1.msra.mxu0 0.0
  %3205 = vmatprep.subr.mxu0 0.0
  %3206 = vmatpush1.msra.mxu0 0.0
  %3207 = vmatprep.subr.mxu0 0.0
  %3208 = vmatpush1.msra.mxu0 0.0
  %3209 = vmatprep.subr.mxu0 0.0
  %3210 = vmatpush1.msra.mxu0 0.0
  %3211 = vmatprep.subr.mxu0 0.0
  %3212 = vmatpush1.msra.mxu0 0.0
  %3213 = vmatprep.subr.mxu0 0.0
  %3214 = vmatpush1.msra.mxu0 0.0
  %3215 = vmatprep.subr.mxu0 0.0
  %3216 = vmatpush1.msra.mxu0 0.0
  %3217 = vmatprep.subr.mxu0 0.0
  %3218 = vmatpush1.msra.mxu0 0.0
  %3219 = vmatprep.subr.mxu0 0.0
  %3220 = vmatpush1.msra.mxu0 0.0
  %3221 = vmatprep.subr.mxu0 0.0
  %3222 = vmatpush1.msra.mxu0 0.0
  %3223 = vmatprep.subr.mxu0 0.0
  %3224 = vmatpush1.msra.mxu0 0.0
  %3225 = vmatprep.subr.mxu0 0.0
  %3226 = vmatpush1.msra.mxu0 0.0
  %3227 = vmatprep.subr.mxu0 0.0
  %3228 = vmatpush1.msra.mxu0 0.0
  %3229 = vmatprep.subr.mxu0 0.0
  %3230 = vmatpush1.msra.mxu0 0.0
  %3231 = vmatprep.subr.mxu0 0.0
  %3232 = vmatpush1.msra.mxu0 0.0
  %3233 = vmatprep.subr.mxu0 0.0
  %3234 = vmatpush1.msra.mxu0 0.0
  %3235 = vmatprep.subr.mxu0 0.0
  %3236 = vmatpush1.msra.mxu0 0.0
  %3237 = vmatprep.subr.mxu0 0.0
  %3238 = vmatpush1.msra.mxu0 0.0
  %3239 = vmatprep.subr.mxu0 0.0
  %3240 = vmatpush1.msra.mxu0 0.0
  %3241 = vmatprep.subr.mxu0 0.0
  %3242 = vmatpush1.msra.mxu0 0.0
  %3243 = vmatprep.subr.mxu0 0.0
  %3244 = vmatpush1.msra.mxu0 0.0
  %3245 = vmatprep.subr.mxu0 0.0
  %3246 = vmatpush1.msra.mxu0 0.0
  %3247 = vmatprep.subr.mxu0 0.0
  %3248 = vmatpush1.msra.mxu0 0.0
  %3249 = vmatprep.subr.mxu0 0.0
  %3250 = vmatpush1.msra.mxu0 0.0
  %3251 = vmatprep.subr.mxu0 0.0
  %3252 = vmatpush1.msra.mxu0 0.0
  %3253 = vmatprep.subr.mxu0 0.0
  %3254 = vmatpush1.msra.mxu0 0.0
  %3255 = vmatprep.subr.mxu0 0.0
  %3256 = vmatpush1.msra.mxu0 0.0
  %3257 = vmatprep.subr.mxu0 0.0
  %3258 = vmatpush1.msra.mxu0 0.0
  %3259 = vmatprep.mubr.f32.mxu0 0.0
  %3260 = vmatmul.mubr.f32.gmra.mrb[0].mxu0 %v3193
  %v3261 = vpop.f32.mrb[0].mxu0
  %v3262 = vadd.f32 0.0, %v3261
  %v3263 = vpop.f32.mrb[0].mxu0
  %3264 = vdwg.mxu0
  %3266 = vrot.lane.b32.xlu0 %v3192, 32
  %v3267 = vpop.permute.xlu0 %3266
  %v3268 = vsel %vm176, %v3267, 0
  %3270 = vmatprep.subr.mxu0 0.0
  %3271 = vmatpush1.msra.mxu0 %v160
  %3272 = vmatprep.subr.mxu0 0.0
  %3273 = vmatpush1.msra.mxu0 %v161
  %3274 = vmatprep.subr.mxu0 0.0
  %3275 = vmatpush1.msra.mxu0 %v162
  %3276 = vmatprep.subr.mxu0 0.0
  %3277 = vmatpush1.msra.mxu0 %v163
  %3278 = vmatprep.subr.mxu0 0.0
  %3279 = vmatpush1.msra.mxu0 0.0
  %3280 = vmatprep.subr.mxu0 0.0
  %3281 = vmatpush1.msra.mxu0 0.0
  %3282 = vmatprep.subr.mxu0 0.0
  %3283 = vmatpush1.msra.mxu0 0.0
  %3284 = vmatprep.subr.mxu0 0.0
  %3285 = vmatpush1.msra.mxu0 0.0
  %3286 = vmatprep.subr.mxu0 0.0
  %3287 = vmatpush1.msra.mxu0 0.0
  %3288 = vmatprep.subr.mxu0 0.0
  %3289 = vmatpush1.msra.mxu0 0.0
  %3290 = vmatprep.subr.mxu0 0.0
  %3291 = vmatpush1.msra.mxu0 0.0
  %3292 = vmatprep.subr.mxu0 0.0
  %3293 = vmatpush1.msra.mxu0 0.0
  %3294 = vmatprep.subr.mxu0 0.0
  %3295 = vmatpush1.msra.mxu0 0.0
  %3296 = vmatprep.subr.mxu0 0.0
  %3297 = vmatpush1.msra.mxu0 0.0
  %3298 = vmatprep.subr.mxu0 0.0
  %3299 = vmatpush1.msra.mxu0 0.0
  %3300 = vmatprep.subr.mxu0 0.0
  %3301 = vmatpush1.msra.mxu0 0.0
  %3302 = vmatprep.subr.mxu0 0.0
  %3303 = vmatpush1.msra.mxu0 0.0
  %3304 = vmatprep.subr.mxu0 0.0
  %3305 = vmatpush1.msra.mxu0 0.0
  %3306 = vmatprep.subr.mxu0 0.0
  %3307 = vmatpush1.msra.mxu0 0.0
  %3308 = vmatprep.subr.mxu0 0.0
  %3309 = vmatpush1.msra.mxu0 0.0
  %3310 = vmatprep.subr.mxu0 0.0
  %3311 = vmatpush1.msra.mxu0 0.0
  %3312 = vmatprep.subr.mxu0 0.0
  %3313 = vmatpush1.msra.mxu0 0.0
  %3314 = vmatprep.subr.mxu0 0.0
  %3315 = vmatpush1.msra.mxu0 0.0
  %3316 = vmatprep.subr.mxu0 0.0
  %3317 = vmatpush1.msra.mxu0 0.0
  %3318 = vmatprep.subr.mxu0 0.0
  %3319 = vmatpush1.msra.mxu0 0.0
  %3320 = vmatprep.subr.mxu0 0.0
  %3321 = vmatpush1.msra.mxu0 0.0
  %3322 = vmatprep.subr.mxu0 0.0
  %3323 = vmatpush1.msra.mxu0 0.0
  %3324 = vmatprep.subr.mxu0 0.0
  %3325 = vmatpush1.msra.mxu0 0.0
  %3326 = vmatprep.subr.mxu0 0.0
  %3327 = vmatpush1.msra.mxu0 0.0
  %3328 = vmatprep.subr.mxu0 0.0
  %3329 = vmatpush1.msra.mxu0 0.0
  %3330 = vmatprep.subr.mxu0 0.0
  %3331 = vmatpush1.msra.mxu0 0.0
  %3332 = vmatprep.subr.mxu0 0.0
  %3333 = vmatpush1.msra.mxu0 0.0
  %3334 = vmatprep.mubr.f32.mxu0 0.0
  %3335 = vmatmul.mubr.f32.gmra.mrb[0].mxu0 %v3268
  %v3336 = vpop.f32.mrb[0].mxu0
  %v3337 = vadd.f32 %v3262, %v3336
  %v3338 = vpop.f32.mrb[0].mxu0
  %3339 = vdwg.mxu0
  %v3340 = vadd.f32 %v3337, %v173
  %v3341 = vxor.u32 %v3340, 2147483648
  %v3342 = vmul.f32 %v3341, 1.442695
  %v3343 = vpow.pop %v3342
  %v3344 = vadd.f32 %v3343, 1.0
  %v3345 = vrcp.pop %v3344
  %v3346 = vmul.f32 1.0, %v3345
  %v3347 = vmul.f32 %v3346, 2.0
  %v3348 = vsub.f32 %v3347, 1.0
  %v3349 = vmul.f32 %v3346, %v3068
  %3351 = vrot.lane.b32.xlu0 %v3348, 64
  %v3352 = vpop.permute.xlu0 %3351
  %v3354 = vmul.f32 %v3346, %v3352
  %3356 = vrot.lane.b32.xlu0 %v3354, 32
  %v3357 = vpop.permute.xlu0 %3356
  %v3359 = vadd.f32 %v3349, %v3357
  %v3360 = vmul.f32 %v3359, 2.0
  %v3361 = vxor.u32 %v3360, 2147483648
  %v3362 = vmul.f32 %v3361, 1.442695
  %v3363 = vpow.pop %v3362
  %v3364 = vadd.f32 %v3363, 1.0
  %v3365 = vrcp.pop %v3364
  %v3366 = vmul.f32 1.0, %v3365
  %v3367 = vmul.f32 %v3366, 2.0
  %v3368 = vsub.f32 %v3367, 1.0
  %3370 = vrot.lane.b32.xlu0 %v3368, 64
  %v3371 = vpop.permute.xlu0 %3370
  %v3373 = vmul.f32 %v3346, %v3371
  %3375 = vrot.lane.b32.xlu0 %v3373, 32
  %v3376 = vpop.permute.xlu0 %3375
  %3378 = vst.msk [vmem:[#allocation3 + $0x14] sm:$0x3] %vm467, %v3376
  %v3379 = vld [vmem:[#allocation2 + $0x16] sm:$0x3]
  %3380 = vmatprep.subr.mxu0 0.0
  %3381 = vmatpush1.msra.mxu0 %v156
  %3382 = vmatprep.subr.mxu0 0.0
  %3383 = vmatpush1.msra.mxu0 %v157
  %3384 = vmatprep.subr.mxu0 0.0
  %3385 = vmatpush1.msra.mxu0 %v158
  %3386 = vmatprep.subr.mxu0 0.0
  %3387 = vmatpush1.msra.mxu0 %v159
  %3388 = vmatprep.subr.mxu0 0.0
  %3389 = vmatpush1.msra.mxu0 0.0
  %3390 = vmatprep.subr.mxu0 0.0
  %3391 = vmatpush1.msra.mxu0 0.0
  %3392 = vmatprep.subr.mxu0 0.0
  %3393 = vmatpush1.msra.mxu0 0.0
  %3394 = vmatprep.subr.mxu0 0.0
  %3395 = vmatpush1.msra.mxu0 0.0
  %3396 = vmatprep.subr.mxu0 0.0
  %3397 = vmatpush1.msra.mxu0 0.0
  %3398 = vmatprep.subr.mxu0 0.0
  %3399 = vmatpush1.msra.mxu0 0.0
  %3400 = vmatprep.subr.mxu0 0.0
  %3401 = vmatpush1.msra.mxu0 0.0
  %3402 = vmatprep.subr.mxu0 0.0
  %3403 = vmatpush1.msra.mxu0 0.0
  %3404 = vmatprep.subr.mxu0 0.0
  %3405 = vmatpush1.msra.mxu0 0.0
  %3406 = vmatprep.subr.mxu0 0.0
  %3407 = vmatpush1.msra.mxu0 0.0
  %3408 = vmatprep.subr.mxu0 0.0
  %3409 = vmatpush1.msra.mxu0 0.0
  %3410 = vmatprep.subr.mxu0 0.0
  %3411 = vmatpush1.msra.mxu0 0.0
  %3412 = vmatprep.subr.mxu0 0.0
  %3413 = vmatpush1.msra.mxu0 0.0
  %3414 = vmatprep.subr.mxu0 0.0
  %3415 = vmatpush1.msra.mxu0 0.0
  %3416 = vmatprep.subr.mxu0 0.0
  %3417 = vmatpush1.msra.mxu0 0.0
  %3418 = vmatprep.subr.mxu0 0.0
  %3419 = vmatpush1.msra.mxu0 0.0
  %3420 = vmatprep.subr.mxu0 0.0
  %3421 = vmatpush1.msra.mxu0 0.0
  %3422 = vmatprep.subr.mxu0 0.0
  %3423 = vmatpush1.msra.mxu0 0.0
  %3424 = vmatprep.subr.mxu0 0.0
  %3425 = vmatpush1.msra.mxu0 0.0
  %3426 = vmatprep.subr.mxu0 0.0
  %3427 = vmatpush1.msra.mxu0 0.0
  %3428 = vmatprep.subr.mxu0 0.0
  %3429 = vmatpush1.msra.mxu0 0.0
  %3430 = vmatprep.subr.mxu0 0.0
  %3431 = vmatpush1.msra.mxu0 0.0
  %3432 = vmatprep.subr.mxu0 0.0
  %3433 = vmatpush1.msra.mxu0 0.0
  %3434 = vmatprep.subr.mxu0 0.0
  %3435 = vmatpush1.msra.mxu0 0.0
  %3436 = vmatprep.subr.mxu0 0.0
  %3437 = vmatpush1.msra.mxu0 0.0
  %3438 = vmatprep.subr.mxu0 0.0
  %3439 = vmatpush1.msra.mxu0 0.0
  %3440 = vmatprep.subr.mxu0 0.0
  %3441 = vmatpush1.msra.mxu0 0.0
  %3442 = vmatprep.subr.mxu0 0.0
  %3443 = vmatpush1.msra.mxu0 0.0
  %3444 = vmatprep.mubr.f32.mxu0 0.0
  %3445 = vmatmul.mubr.f32.gmra.mrb[0].mxu0 %v3268
  %v3446 = vpop.f32.mrb[0].mxu0
  %v3447 = vadd.f32 0.0, %v3446
  %v3448 = vpop.f32.mrb[0].mxu0
  %3449 = vdwg.mxu0
  %v3450 = vadd.f32 %v3379, %v3447
  %v3451 = vxor.u32 %v3450, 2147483648
  %v3452 = vmul.f32 %v3451, 1.442695
  %v3453 = vpow.pop %v3452
  %v3454 = vadd.f32 %v3453, 1.0
  %v3455 = vrcp.pop %v3454
  %v3456 = vmul.f32 1.0, %v3455
  %v3457 = vmul.f32 %v3456, 2.0
  %v3458 = vsub.f32 %v3457, 1.0
  %v3459 = vmul.f32 %v3456, %v3178
  %3461 = vrot.lane.b32.xlu0 %v3458, 64
  %v3462 = vpop.permute.xlu0 %3461
  %v3464 = vmul.f32 %v3456, %v3462
  %3466 = vrot.lane.b32.xlu0 %v3464, 32
  %v3467 = vpop.permute.xlu0 %3466
  %v3469 = vadd.f32 %v3459, %v3467
  %v3470 = vmul.f32 %v3469, 2.0
  %v3471 = vxor.u32 %v3470, 2147483648
  %v3472 = vmul.f32 %v3471, 1.442695
  %v3473 = vpow.pop %v3472
  %v3474 = vadd.f32 %v3473, 1.0
  %v3475 = vrcp.pop %v3474
  %v3476 = vmul.f32 1.0, %v3475
  %v3477 = vmul.f32 %v3476, 2.0
  %v3478 = vsub.f32 %v3477, 1.0
  %3480 = vrot.lane.b32.xlu0 %v3478, 64
  %v3481 = vpop.permute.xlu0 %3480
  %v3483 = vmul.f32 %v3456, %v3481
  %v3484 = vsel %vm176, %v3376, 0
  %3486 = vmatprep.subr.mxu0 0.0
  %3487 = vmatpush1.msra.mxu0 %v164
  %3488 = vmatprep.subr.mxu0 0.0
  %3489 = vmatpush1.msra.mxu0 %v165
  %3490 = vmatprep.subr.mxu0 0.0
  %3491 = vmatpush1.msra.mxu0 %v166
  %3492 = vmatprep.subr.mxu0 0.0
  %3493 = vmatpush1.msra.mxu0 %v167
  %3494 = vmatprep.subr.mxu0 0.0
  %3495 = vmatpush1.msra.mxu0 0.0
  %3496 = vmatprep.subr.mxu0 0.0
  %3497 = vmatpush1.msra.mxu0 0.0
  %3498 = vmatprep.subr.mxu0 0.0
  %3499 = vmatpush1.msra.mxu0 0.0
  %3500 = vmatprep.subr.mxu0 0.0
  %3501 = vmatpush1.msra.mxu0 0.0
  %3502 = vmatprep.subr.mxu0 0.0
  %3503 = vmatpush1.msra.mxu0 0.0
  %3504 = vmatprep.subr.mxu0 0.0
  %3505 = vmatpush1.msra.mxu0 0.0
  %3506 = vmatprep.subr.mxu0 0.0
  %3507 = vmatpush1.msra.mxu0 0.0
  %3508 = vmatprep.subr.mxu0 0.0
  %3509 = vmatpush1.msra.mxu0 0.0
  %3510 = vmatprep.subr.mxu0 0.0
  %3511 = vmatpush1.msra.mxu0 0.0
  %3512 = vmatprep.subr.mxu0 0.0
  %3513 = vmatpush1.msra.mxu0 0.0
  %3514 = vmatprep.subr.mxu0 0.0
  %3515 = vmatpush1.msra.mxu0 0.0
  %3516 = vmatprep.subr.mxu0 0.0
  %3517 = vmatpush1.msra.mxu0 0.0
  %3518 = vmatprep.subr.mxu0 0.0
  %3519 = vmatpush1.msra.mxu0 0.0
  %3520 = vmatprep.subr.mxu0 0.0
  %3521 = vmatpush1.msra.mxu0 0.0
  %3522 = vmatprep.subr.mxu0 0.0
  %3523 = vmatpush1.msra.mxu0 0.0
  %3524 = vmatprep.subr.mxu0 0.0
  %3525 = vmatpush1.msra.mxu0 0.0
  %3526 = vmatprep.subr.mxu0 0.0
  %3527 = vmatpush1.msra.mxu0 0.0
  %3528 = vmatprep.subr.mxu0 0.0
  %3529 = vmatpush1.msra.mxu0 0.0
  %3530 = vmatprep.subr.mxu0 0.0
  %3531 = vmatpush1.msra.mxu0 0.0
  %3532 = vmatprep.subr.mxu0 0.0
  %3533 = vmatpush1.msra.mxu0 0.0
  %3534 = vmatprep.subr.mxu0 0.0
  %3535 = vmatpush1.msra.mxu0 0.0
  %3536 = vmatprep.subr.mxu0 0.0
  %3537 = vmatpush1.msra.mxu0 0.0
  %3538 = vmatprep.subr.mxu0 0.0
  %3539 = vmatpush1.msra.mxu0 0.0
  %3540 = vmatprep.subr.mxu0 0.0
  %3541 = vmatpush1.msra.mxu0 0.0
  %3542 = vmatprep.subr.mxu0 0.0
  %3543 = vmatpush1.msra.mxu0 0.0
  %3544 = vmatprep.subr.mxu0 0.0
  %3545 = vmatpush1.msra.mxu0 0.0
  %3546 = vmatprep.subr.mxu0 0.0
  %3547 = vmatpush1.msra.mxu0 0.0
  %3548 = vmatprep.subr.mxu0 0.0
  %3549 = vmatpush1.msra.mxu0 0.0
  %3550 = vmatprep.mubr.f32.mxu0 0.0
  %3551 = vmatmul.mubr.f32.gmra.mrb[0].mxu0 %v3484
  %v3552 = vpop.f32.mrb[0].mxu0
  %v3553 = vadd.f32 0.0, %v3552
  %v3554 = vpop.f32.mrb[0].mxu0
  %3555 = vdwg.mxu0
  %3557 = vrot.lane.b32.xlu0 %v3483, 32
  %v3558 = vpop.permute.xlu0 %3557
  %v3559 = vsel %vm176, %v3558, 0
  %3561 = vmatprep.subr.mxu0 0.0
  %3562 = vmatpush1.msra.mxu0 %v160
  %3563 = vmatprep.subr.mxu0 0.0
  %3564 = vmatpush1.msra.mxu0 %v161
  %3565 = vmatprep.subr.mxu0 0.0
  %3566 = vmatpush1.msra.mxu0 %v162
  %3567 = vmatprep.subr.mxu0 0.0
  %3568 = vmatpush1.msra.mxu0 %v163
  %3569 = vmatprep.subr.mxu0 0.0
  %3570 = vmatpush1.msra.mxu0 0.0
  %3571 = vmatprep.subr.mxu0 0.0
  %3572 = vmatpush1.msra.mxu0 0.0
  %3573 = vmatprep.subr.mxu0 0.0
  %3574 = vmatpush1.msra.mxu0 0.0
  %3575 = vmatprep.subr.mxu0 0.0
  %3576 = vmatpush1.msra.mxu0 0.0
  %3577 = vmatprep.subr.mxu0 0.0
  %3578 = vmatpush1.msra.mxu0 0.0
  %3579 = vmatprep.subr.mxu0 0.0
  %3580 = vmatpush1.msra.mxu0 0.0
  %3581 = vmatprep.subr.mxu0 0.0
  %3582 = vmatpush1.msra.mxu0 0.0
  %3583 = vmatprep.subr.mxu0 0.0
  %3584 = vmatpush1.msra.mxu0 0.0
  %3585 = vmatprep.subr.mxu0 0.0
  %3586 = vmatpush1.msra.mxu0 0.0
  %3587 = vmatprep.subr.mxu0 0.0
  %3588 = vmatpush1.msra.mxu0 0.0
  %3589 = vmatprep.subr.mxu0 0.0
  %3590 = vmatpush1.msra.mxu0 0.0
  %3591 = vmatprep.subr.mxu0 0.0
  %3592 = vmatpush1.msra.mxu0 0.0
  %3593 = vmatprep.subr.mxu0 0.0
  %3594 = vmatpush1.msra.mxu0 0.0
  %3595 = vmatprep.subr.mxu0 0.0
  %3596 = vmatpush1.msra.mxu0 0.0
  %3597 = vmatprep.subr.mxu0 0.0
  %3598 = vmatpush1.msra.mxu0 0.0
  %3599 = vmatprep.subr.mxu0 0.0
  %3600 = vmatpush1.msra.mxu0 0.0
  %3601 = vmatprep.subr.mxu0 0.0
  %3602 = vmatpush1.msra.mxu0 0.0
  %3603 = vmatprep.subr.mxu0 0.0
  %3604 = vmatpush1.msra.mxu0 0.0
  %3605 = vmatprep.subr.mxu0 0.0
  %3606 = vmatpush1.msra.mxu0 0.0
  %3607 = vmatprep.subr.mxu0 0.0
  %3608 = vmatpush1.msra.mxu0 0.0
  %3609 = vmatprep.subr.mxu0 0.0
  %3610 = vmatpush1.msra.mxu0 0.0
  %3611 = vmatprep.subr.mxu0 0.0
  %3612 = vmatpush1.msra.mxu0 0.0
  %3613 = vmatprep.subr.mxu0 0.0
  %3614 = vmatpush1.msra.mxu0 0.0
  %3615 = vmatprep.subr.mxu0 0.0
  %3616 = vmatpush1.msra.mxu0 0.0
  %3617 = vmatprep.subr.mxu0 0.0
  %3618 = vmatpush1.msra.mxu0 0.0
  %3619 = vmatprep.subr.mxu0 0.0
  %3620 = vmatpush1.msra.mxu0 0.0
  %3621 = vmatprep.subr.mxu0 0.0
  %3622 = vmatpush1.msra.mxu0 0.0
  %3623 = vmatprep.subr.mxu0 0.0
  %3624 = vmatpush1.msra.mxu0 0.0
  %3625 = vmatprep.mubr.f32.mxu0 0.0
  %3626 = vmatmul.mubr.f32.gmra.mrb[0].mxu0 %v3559
  %v3627 = vpop.f32.mrb[0].mxu0
  %v3628 = vadd.f32 %v3553, %v3627
  %v3629 = vpop.f32.mrb[0].mxu0
  %3630 = vdwg.mxu0
  %v3631 = vadd.f32 %v3628, %v173
  %v3632 = vxor.u32 %v3631, 2147483648
  %v3633 = vmul.f32 %v3632, 1.442695
  %v3634 = vpow.pop %v3633
  %v3635 = vadd.f32 %v3634, 1.0
  %v3636 = vrcp.pop %v3635
  %v3637 = vmul.f32 1.0, %v3636
  %v3638 = vmul.f32 %v3637, 2.0
  %v3639 = vsub.f32 %v3638, 1.0
  %v3640 = vmul.f32 %v3637, %v3359
  %3642 = vrot.lane.b32.xlu0 %v3639, 64
  %v3643 = vpop.permute.xlu0 %3642
  %v3645 = vmul.f32 %v3637, %v3643
  %3647 = vrot.lane.b32.xlu0 %v3645, 32
  %v3648 = vpop.permute.xlu0 %3647
  %v3650 = vadd.f32 %v3640, %v3648
  %v3651 = vmul.f32 %v3650, 2.0
  %v3652 = vxor.u32 %v3651, 2147483648
  %v3653 = vmul.f32 %v3652, 1.442695
  %v3654 = vpow.pop %v3653
  %v3655 = vadd.f32 %v3654, 1.0
  %v3656 = vrcp.pop %v3655
  %v3657 = vmul.f32 1.0, %v3656
  %v3658 = vmul.f32 %v3657, 2.0
  %v3659 = vsub.f32 %v3658, 1.0
  %3661 = vrot.lane.b32.xlu0 %v3659, 64
  %v3662 = vpop.permute.xlu0 %3661
  %v3664 = vmul.f32 %v3637, %v3662
  %3666 = vrot.lane.b32.xlu0 %v3664, 32
  %v3667 = vpop.permute.xlu0 %3666
  %3669 = vst.msk [vmem:[#allocation3 + $0x16] sm:$0x3] %vm467, %v3667
  %v3670 = vld [vmem:[#allocation3] sm:$0xff]
  %v3671 = vld [vmem:[#allocation3 + $0x8] sm:$0xff]
  %v3672 = vld [vmem:[#allocation3 + $0x10] sm:$0xff]
  %v3673 = vld [vmem:[%s11] sm:$0xff]
  %v3674 = vld [vmem:[%s11 + $0x8] sm:$0xff]
  %v3675 = vld [vmem:[%s11 + $0x10] sm:$0xff]
  %v3676 = vld [vmem:[%s11 + $0x18] sm:$0xff]
  %v3677 = vld [vmem:[%s12] sm:$0x1]
  %v3679 = vlaneseq
  %v3680 = vshrl.u32 %v3679, 7
  %v3681 = vsub.s32 0, %v3680
  %v3682 = vrot.slane %v3677, %v3681
  %v3685 = vsel %vm176, %v3670, 0
  %v3688 = vsel %vm176, %v3671, 0
  %v3691 = vsel %vm176, %v3672, 0
  %3693 = vmatprep.subr.mxu0 0.0
  %3694 = vmatpush1.msra.mxu0 %v3673
  %3695 = vmatprep.subr.mxu0 0.0
  %3696 = vmatpush1.msra.mxu0 %v3674
  %3697 = vmatprep.subr.mxu0 0.0
  %3698 = vmatpush1.msra.mxu0 %v3675
  %3699 = vmatprep.subr.mxu0 0.0
  %3700 = vmatpush1.msra.mxu0 %v3676
  %3701 = vmatprep.subr.mxu0 0.0
  %3702 = vmatpush1.msra.mxu0 0.0
  %3703 = vmatprep.subr.mxu0 0.0
  %3704 = vmatpush1.msra.mxu0 0.0
  %3705 = vmatprep.subr.mxu0 0.0
  %3706 = vmatpush1.msra.mxu0 0.0
  %3707 = vmatprep.subr.mxu0 0.0
  %3708 = vmatpush1.msra.mxu0 0.0
  %3709 = vmatprep.subr.mxu0 0.0
  %3710 = vmatpush1.msra.mxu0 0.0
  %3711 = vmatprep.subr.mxu0 0.0
  %3712 = vmatpush1.msra.mxu0 0.0
  %3713 = vmatprep.subr.mxu0 0.0
  %3714 = vmatpush1.msra.mxu0 0.0
  %3715 = vmatprep.subr.mxu0 0.0
  %3716 = vmatpush1.msra.mxu0 0.0
  %3717 = vmatprep.subr.mxu0 0.0
  %3718 = vmatpush1.msra.mxu0 0.0
  %3719 = vmatprep.subr.mxu0 0.0
  %3720 = vmatpush1.msra.mxu0 0.0
  %3721 = vmatprep.subr.mxu0 0.0
  %3722 = vmatpush1.msra.mxu0 0.0
  %3723 = vmatprep.subr.mxu0 0.0
  %3724 = vmatpush1.msra.mxu0 0.0
  %3725 = vmatprep.subr.mxu0 0.0
  %3726 = vmatpush1.msra.mxu0 0.0
  %3727 = vmatprep.subr.mxu0 0.0
  %3728 = vmatpush1.msra.mxu0 0.0
  %3729 = vmatprep.subr.mxu0 0.0
  %3730 = vmatpush1.msra.mxu0 0.0
  %3731 = vmatprep.subr.mxu0 0.0
  %3732 = vmatpush1.msra.mxu0 0.0
  %3733 = vmatprep.subr.mxu0 0.0
  %3734 = vmatpush1.msra.mxu0 0.0
  %3735 = vmatprep.subr.mxu0 0.0
  %3736 = vmatpush1.msra.mxu0 0.0
  %3737 = vmatprep.subr.mxu0 0.0
  %3738 = vmatpush1.msra.mxu0 0.0
  %3739 = vmatprep.subr.mxu0 0.0
  %3740 = vmatpush1.msra.mxu0 0.0
  %3741 = vmatprep.subr.mxu0 0.0
  %3742 = vmatpush1.msra.mxu0 0.0
  %3743 = vmatprep.subr.mxu0 0.0
  %3744 = vmatpush1.msra.mxu0 0.0
  %3745 = vmatprep.subr.mxu0 0.0
  %3746 = vmatpush1.msra.mxu0 0.0
  %3747 = vmatprep.subr.mxu0 0.0
  %3748 = vmatpush1.msra.mxu0 0.0
  %3749 = vmatprep.subr.mxu0 0.0
  %3750 = vmatpush1.msra.mxu0 0.0
  %3751 = vmatprep.subr.mxu0 0.0
  %3752 = vmatpush1.msra.mxu0 0.0
  %3753 = vmatprep.subr.mxu0 0.0
  %3754 = vmatpush1.msra.mxu0 0.0
  %3755 = vmatprep.subr.mxu0 0.0
  %3756 = vmatpush1.msra.mxu0 0.0
  %3757 = vmatprep.mubr.f32.mxu0 0.0
  %3758 = vmatmul.mubr.f32.gmra.mrb[0].mxu0 %v3685
  %v3759 = vpop.f32.mrb[0].mxu0
  %v3760 = vadd.f32 %v3682, %v3759
  %v3761 = vpop.f32.mrb[0].mxu0
  %3762 = vmatprep.mubr.f32.mxu0 0.0
  %3763 = vmatmul.mubr.f32.gmra.mrb[0].mxu0 %v3688
  %v3764 = vpop.f32.mrb[0].mxu0
  %v3765 = vadd.f32 %v3682, %v3764
  %v3766 = vpop.f32.mrb[0].mxu0
  %3767 = vmatprep.mubr.f32.mxu0 0.0
  %3768 = vmatmul.mubr.f32.gmra.mrb[0].mxu0 %v3691
  %v3769 = vpop.f32.mrb[0].mxu0
  %v3770 = vadd.f32 %v3682, %v3769
  %v3771 = vpop.f32.mrb[0].mxu0
  %3772 = vdwg.mxu0
  %v3773 = vadd.f32 %v3760, 0.54132485
  %v3774 = vadd.f32 %v3765, 0.54132485
  %v3775 = vadd.f32 %v3770, 0.54132485
  %v3776 = vmax.f32 %v3773, 0.0
  %v3777 = vmax.f32 %v3774, 0.0
  %v3778 = vmax.f32 %v3775, 0.0
  %vm3779 = vcmp.ne.f32.partialorder %v3773, %v3773
  %vm3780 = vcmp.ne.f32.partialorder %v3774, %v3774
  %vm3781 = vcmp.ne.f32.partialorder %v3775, %v3775
  %v3782 = vadd.f32 %v3773, 0.0
  %v3783 = vadd.f32 %v3774, 0.0
  %v3784 = vadd.f32 %v3775, 0.0
  %v3785 = vand.u32 2147483647, %v3773
  %v3786 = vand.u32 2147483647, %v3774
  %v3787 = vand.u32 2147483647, %v3775
  %v3788 = vsub.f32 0.0, %v3785
  %v3789 = vsub.f32 0.0, %v3786
  %v3790 = vsub.f32 0.0, %v3787
  %v3791 = vmul.f32 %v3788, 1.442695
  %v3792 = vpow.pop %v3791
  %v3793 = vmul.f32 %v3789, 1.442695
  %v3794 = vpow.pop %v3793
  %v3795 = vmul.f32 %v3790, 1.442695
  %v3796 = vpow.pop %v3795
  %v3797 = vadd.f32 %v3792, 1.0
  %v3798 = vlog2.pop %v3797
  %v3799 = vmul.f32 %v3798, 0.6931472
  %v3800 = vmul.f32 -0.5, %v3792
  %v3801 = vadd.f32 %v3800, 1.0
  %v3802 = vmul.f32 %v3801, %v3792
  %v3803 = vand.u32 2147483647, %v3792
  %vm3804 = vcmp.lt.f32.partialorder %v3803, 0.0004427343
  %v3805 = vsel %vm3804, %v3802, %v3799
  %v3806 = vadd.f32 %v3794, 1.0
  %v3807 = vlog2.pop %v3806
  %v3808 = vmul.f32 %v3807, 0.6931472
  %v3809 = vmul.f32 -0.5, %v3794
  %v3810 = vadd.f32 %v3809, 1.0
  %v3811 = vmul.f32 %v3810, %v3794
  %v3812 = vand.u32 2147483647, %v3794
  %vm3813 = vcmp.lt.f32.partialorder %v3812, 0.0004427343
  %v3814 = vsel %vm3813, %v3811, %v3808
  %v3815 = vadd.f32 %v3796, 1.0
  %v3816 = vlog2.pop %v3815
  %v3817 = vmul.f32 %v3816, 0.6931472
  %v3818 = vmul.f32 -0.5, %v3796
  %v3819 = vadd.f32 %v3818, 1.0
  %v3820 = vmul.f32 %v3819, %v3796
  %v3821 = vand.u32 2147483647, %v3796
  %vm3822 = vcmp.lt.f32.partialorder %v3821, 0.0004427343
  %v3823 = vsel %vm3822, %v3820, %v3817
  %v3824 = vadd.f32 %v3776, %v3805
  %v3825 = vadd.f32 %v3777, %v3814
  %v3826 = vadd.f32 %v3778, %v3823
  %v3827 = vsel %vm3779, %v3782, %v3824
  %v3828 = vsel %vm3780, %v3783, %v3825
  %v3829 = vsel %vm3781, %v3784, %v3826
  %v3830 = vadd.f32 %v3827, 1e-06
  %v3831 = vadd.f32 %v3828, 1e-06
  %v3832 = vadd.f32 %v3829, 1e-06
  %v3833 = vld [vmem:[%s2] sm:$0xff]
  %v3834 = vld [vmem:[%s2 + $0x8] sm:$0xff]
  %v3835 = vld [vmem:[%s2 + $0x10] sm:$0xff]
  %v3836 = vld [vmem:[%s1] sm:$0xff]
  %v3837 = vld [vmem:[%s1 + $0x8] sm:$0xff]
  %v3838 = vld [vmem:[%s1 + $0x10] sm:$0xff]
  %v3839 = vrcp.pop %v3833
  %v3840 = vmul.f32 %v3836, %v3839
  %v3841 = vrcp.pop %v3834
  %v3842 = vmul.f32 %v3837, %v3841
  %v3843 = vrcp.pop %v3835
  %v3844 = vmul.f32 %v3838, %v3843
  %v3845 = vsub.f32 %v3840, %v3760
  %v3846 = vsub.f32 %v3842, %v3765
  %v3847 = vsub.f32 %v3844, %v3770
  %v3848 = vrcp.pop %v3830
  %v3849 = vmul.f32 1.0, %v3848
  %v3850 = vrcp.pop %v3831
  %v3851 = vmul.f32 1.0, %v3850
  %v3852 = vrcp.pop %v3832
  %v3853 = vmul.f32 1.0, %v3852
  %v3854 = vmul.f32 %v3845, %v3845
  %v3855 = vmul.f32 %v3846, %v3846
  %v3856 = vmul.f32 %v3847, %v3847
  %3860 = vrot.lane.b32.xlu0 %v3849, 116
  %v3861 = vpop.permute.xlu0 %3860
  %3862 = vrot.lane.b32.xlu0 %v3851, 116
  %v3863 = vpop.permute.xlu0 %3862
  %3864 = vrot.lane.b32.xlu0 %v3853, 116
  %v3865 = vpop.permute.xlu0 %3864
  %v3869 = vmul.f32 %v3854, %v3861
  %v3870 = vmul.f32 %v3855, %v3863
  %v3871 = vmul.f32 %v3856, %v3865
  %vm3872 = vcmask 31744
  %v3873 = vsel %vm3872, %v3869, 0.0
  %3874 = vadd.xlane.f32.xlu0 %v3873
  %v3875 = vpop.xlane.xlu0 %3874
  %v3876 = vsel %vm3872, %v3870, 0.0
  %3877 = vadd.xlane.f32.xlu0 %v3876
  %v3878 = vpop.xlane.xlu0 %3877
  %v3879 = vsel %vm3872, %v3871, 0.0
  %3880 = vadd.xlane.f32.xlu0 %v3879
  %v3881 = vpop.xlane.xlu0 %3880
  %3885 = vrot.lane.b32.xlu0 %v3845, 4
  %v3886 = vpop.permute.xlu0 %3885
  %3887 = vrot.lane.b32.xlu0 %v3846, 4
  %v3888 = vpop.permute.xlu0 %3887
  %3889 = vrot.lane.b32.xlu0 %v3847, 4
  %v3890 = vpop.permute.xlu0 %3889
  %v3894 = vmul.f32 %v3760, %v3886
  %v3895 = vmul.f32 %v3765, %v3888
  %v3896 = vmul.f32 %v3770, %v3890
  %3897 = vrot.lane.b32.xlu0 %v3849, 120
  %v3898 = vpop.permute.xlu0 %3897
  %3899 = vrot.lane.b32.xlu0 %v3851, 120
  %v3900 = vpop.permute.xlu0 %3899
  %3901 = vrot.lane.b32.xlu0 %v3853, 120
  %v3902 = vpop.permute.xlu0 %3901
  %v3906 = vmul.f32 %v3894, %v3898
  %v3907 = vmul.f32 %v3895, %v3900
  %v3908 = vmul.f32 %v3896, %v3902
  %3912 = vrot.lane.b32.xlu0 %v3906, 124
  %v3913 = vpop.permute.xlu0 %3912
  %3914 = vrot.lane.b32.xlu0 %v3907, 124
  %v3915 = vpop.permute.xlu0 %3914
  %3916 = vrot.lane.b32.xlu0 %v3908, 124
  %v3917 = vpop.permute.xlu0 %3916
  %v3921 = vsel %vm3872, %v3913, 0.0
  %3922 = vadd.xlane.f32.xlu0 %v3921
  %v3923 = vpop.xlane.xlu0 %3922
  %v3924 = vsel %vm3872, %v3915, 0.0
  %3925 = vadd.xlane.f32.xlu0 %v3924
  %v3926 = vpop.xlane.xlu0 %3925
  %v3927 = vsel %vm3872, %v3917, 0.0
  %3928 = vadd.xlane.f32.xlu0 %v3927
  %v3929 = vpop.xlane.xlu0 %3928
  %3930 = vrot.lane.b32.xlu0 %v3845, 8
  %v3931 = vpop.permute.xlu0 %3930
  %3932 = vrot.lane.b32.xlu0 %v3846, 8
  %v3933 = vpop.permute.xlu0 %3932
  %3934 = vrot.lane.b32.xlu0 %v3847, 8
  %v3935 = vpop.permute.xlu0 %3934
  %v3939 = vmul.f32 %v3760, %v3931
  %v3940 = vmul.f32 %v3765, %v3933
  %v3941 = vmul.f32 %v3770, %v3935
  %3942 = vrot.lane.b32.xlu0 %v3849, 124
  %v3943 = vpop.permute.xlu0 %3942
  %3944 = vrot.lane.b32.xlu0 %v3851, 124
  %v3945 = vpop.permute.xlu0 %3944
  %3946 = vrot.lane.b32.xlu0 %v3853, 124
  %v3947 = vpop.permute.xlu0 %3946
  %v3951 = vmul.f32 %v3939, %v3943
  %v3952 = vmul.f32 %v3940, %v3945
  %v3953 = vmul.f32 %v3941, %v3947
  %3957 = vrot.lane.b32.xlu0 %v3951, 120
  %v3958 = vpop.permute.xlu0 %3957
  %3959 = vrot.lane.b32.xlu0 %v3952, 120
  %v3960 = vpop.permute.xlu0 %3959
  %3961 = vrot.lane.b32.xlu0 %v3953, 120
  %v3962 = vpop.permute.xlu0 %3961
  %v3966 = vsel %vm3872, %v3958, 0.0
  %3967 = vadd.xlane.f32.xlu0 %v3966
  %v3968 = vpop.xlane.xlu0 %3967
  %v3969 = vsel %vm3872, %v3960, 0.0
  %3970 = vadd.xlane.f32.xlu0 %v3969
  %v3971 = vpop.xlane.xlu0 %3970
  %v3972 = vsel %vm3872, %v3962, 0.0
  %3973 = vadd.xlane.f32.xlu0 %v3972
  %v3974 = vpop.xlane.xlu0 %3973
  %v3975 = vmul.f32 %v3760, %v3760
  %v3976 = vmul.f32 %v3765, %v3765
  %v3977 = vmul.f32 %v3770, %v3770
  %v3978 = vmul.f32 %v3975, %v3898
  %v3979 = vmul.f32 %v3976, %v3900
  %v3980 = vmul.f32 %v3977, %v3902
  %3984 = vrot.lane.b32.xlu0 %v3978, 124
  %v3985 = vpop.permute.xlu0 %3984
  %3986 = vrot.lane.b32.xlu0 %v3979, 124
  %v3987 = vpop.permute.xlu0 %3986
  %3988 = vrot.lane.b32.xlu0 %v3980, 124
  %v3989 = vpop.permute.xlu0 %3988
  %v3993 = vsel %vm3872, %v3985, 0.0
  %3994 = vadd.xlane.f32.xlu0 %v3993
  %v3995 = vpop.xlane.xlu0 %3994
  %v3996 = vsel %vm3872, %v3987, 0.0
  %3997 = vadd.xlane.f32.xlu0 %v3996
  %v3998 = vpop.xlane.xlu0 %3997
  %v3999 = vsel %vm3872, %v3989, 0.0
  %4000 = vadd.xlane.f32.xlu0 %v3999
  %v4001 = vpop.xlane.xlu0 %4000
  %v4002 = vadd.f32 %v3995, 1.0
  %v4003 = vadd.f32 %v3998, 1.0
  %v4004 = vadd.f32 %v4001, 1.0
  %4008 = vrot.lane.b32.xlu0 %v3760, 124
  %v4009 = vpop.permute.xlu0 %4008
  %4010 = vrot.lane.b32.xlu0 %v3765, 124
  %v4011 = vpop.permute.xlu0 %4010
  %4012 = vrot.lane.b32.xlu0 %v3770, 124
  %v4013 = vpop.permute.xlu0 %4012
  %v4017 = vmul.f32 %v3760, %v4009
  %v4018 = vmul.f32 %v3765, %v4011
  %v4019 = vmul.f32 %v3770, %v4013
  %v4020 = vmul.f32 %v4017, %v3898
  %v4021 = vmul.f32 %v4018, %v3900
  %v4022 = vmul.f32 %v4019, %v3902
  %4026 = vrot.lane.b32.xlu0 %v4020, 124
  %v4027 = vpop.permute.xlu0 %4026
  %4028 = vrot.lane.b32.xlu0 %v4021, 124
  %v4029 = vpop.permute.xlu0 %4028
  %4030 = vrot.lane.b32.xlu0 %v4022, 124
  %v4031 = vpop.permute.xlu0 %4030
  %v4035 = vsel %vm3872, %v4027, 0.0
  %4036 = vadd.xlane.f32.xlu0 %v4035
  %v4037 = vpop.xlane.xlu0 %4036
  %v4038 = vsel %vm3872, %v4029, 0.0
  %4039 = vadd.xlane.f32.xlu0 %v4038
  %v4040 = vpop.xlane.xlu0 %4039
  %v4041 = vsel %vm3872, %v4031, 0.0
  %4042 = vadd.xlane.f32.xlu0 %v4041
  %v4043 = vpop.xlane.xlu0 %4042
  %v4044 = vmul.f32 %v3975, %v3943
  %v4045 = vmul.f32 %v3976, %v3945
  %v4046 = vmul.f32 %v3977, %v3947
  %4050 = vrot.lane.b32.xlu0 %v4044, 120
  %v4051 = vpop.permute.xlu0 %4050
  %4052 = vrot.lane.b32.xlu0 %v4045, 120
  %v4053 = vpop.permute.xlu0 %4052
  %4054 = vrot.lane.b32.xlu0 %v4046, 120
  %v4055 = vpop.permute.xlu0 %4054
  %v4059 = vsel %vm3872, %v4051, 0.0
  %4060 = vadd.xlane.f32.xlu0 %v4059
  %v4061 = vpop.xlane.xlu0 %4060
  %v4062 = vsel %vm3872, %v4053, 0.0
  %4063 = vadd.xlane.f32.xlu0 %v4062
  %v4064 = vpop.xlane.xlu0 %4063
  %v4065 = vsel %vm3872, %v4055, 0.0
  %4066 = vadd.xlane.f32.xlu0 %v4065
  %v4067 = vpop.xlane.xlu0 %4066
  %v4068 = vadd.f32 %v4061, 1.0
  %v4069 = vadd.f32 %v4064, 1.0
  %v4070 = vadd.f32 %v4067, 1.0
  %v4071 = vmul.f32 %v4002, %v4068
  %v4072 = vmul.f32 %v4003, %v4069
  %v4073 = vmul.f32 %v4004, %v4070
  %v4074 = vmul.f32 %v4037, %v4037
  %v4075 = vmul.f32 %v4040, %v4040
  %v4076 = vmul.f32 %v4043, %v4043
  %v4077 = vsub.f32 %v4071, %v4074
  %v4078 = vsub.f32 %v4072, %v4075
  %v4079 = vsub.f32 %v4073, %v4076
  %v4080 = vmul.f32 %v4068, %v3923
  %v4081 = vmul.f32 %v4069, %v3926
  %v4082 = vmul.f32 %v4070, %v3929
  %v4083 = vmul.f32 %v4080, %v3923
  %v4084 = vmul.f32 %v4081, %v3926
  %v4085 = vmul.f32 %v4082, %v3929
  %v4086 = vmul.f32 %v4037, 2.0
  %v4087 = vmul.f32 %v4040, 2.0
  %v4088 = vmul.f32 %v4043, 2.0
  %v4089 = vmul.f32 %v4086, %v3923
  %v4090 = vmul.f32 %v4087, %v3926
  %v4091 = vmul.f32 %v4088, %v3929
  %v4092 = vmul.f32 %v4089, %v3968
  %v4093 = vmul.f32 %v4090, %v3971
  %v4094 = vmul.f32 %v4091, %v3974
  %v4095 = vsub.f32 %v4083, %v4092
  %v4096 = vsub.f32 %v4084, %v4093
  %v4097 = vsub.f32 %v4085, %v4094
  %v4098 = vmul.f32 %v4002, %v3968
  %v4099 = vmul.f32 %v4003, %v3971
  %v4100 = vmul.f32 %v4004, %v3974
  %v4101 = vmul.f32 %v4098, %v3968
  %v4102 = vmul.f32 %v4099, %v3971
  %v4103 = vmul.f32 %v4100, %v3974
  %v4104 = vadd.f32 %v4095, %v4101
  %v4105 = vadd.f32 %v4096, %v4102
  %v4106 = vadd.f32 %v4097, %v4103
  %v4107 = vrcp.pop %v4077
  %v4108 = vmul.f32 %v4104, %v4107
  %v4109 = vrcp.pop %v4078
  %v4110 = vmul.f32 %v4105, %v4109
  %v4111 = vrcp.pop %v4079
  %v4112 = vmul.f32 %v4106, %v4111
  %v4113 = vsub.f32 %v3875, %v4108
  %v4114 = vsub.f32 %v3878, %v4110
  %v4115 = vsub.f32 %v3881, %v4112
  %v4116 = vlog2.pop %v3830
  %v4117 = vmul.f32 %v4116, 0.6931472
  %v4118 = vlog2.pop %v3831
  %v4119 = vmul.f32 %v4118, 0.6931472
  %v4120 = vlog2.pop %v3832
  %v4121 = vmul.f32 %v4120, 0.6931472
  %4125 = vrot.lane.b32.xlu0 %v4117, 116
  %v4126 = vpop.permute.xlu0 %4125
  %4127 = vrot.lane.b32.xlu0 %v4119, 116
  %v4128 = vpop.permute.xlu0 %4127
  %4129 = vrot.lane.b32.xlu0 %v4121, 116
  %v4130 = vpop.permute.xlu0 %4129
  %v4134 = vsel %vm3872, %v4126, 0.0
  %4135 = vadd.xlane.f32.xlu0 %v4134
  %v4136 = vpop.xlane.xlu0 %4135
  %v4137 = vsel %vm3872, %v4128, 0.0
  %4138 = vadd.xlane.f32.xlu0 %v4137
  %v4139 = vpop.xlane.xlu0 %4138
  %v4140 = vsel %vm3872, %v4130, 0.0
  %4141 = vadd.xlane.f32.xlu0 %v4140
  %v4142 = vpop.xlane.xlu0 %4141
  %v4143 = vlog2.pop %v4077
  %v4144 = vmul.f32 %v4143, 0.6931472
  %v4145 = vlog2.pop %v4078
  %v4146 = vmul.f32 %v4145, 0.6931472
  %v4147 = vlog2.pop %v4079
  %v4148 = vmul.f32 %v4147, 0.6931472
  %v4149 = vadd.f32 %v4136, %v4144
  %v4150 = vadd.f32 %v4139, %v4146
  %v4151 = vadd.f32 %v4142, %v4148
  %v4152 = vadd.f32 %v4149, 7.351508
  %v4153 = vadd.f32 %v4150, 7.351508
  %v4154 = vadd.f32 %v4151, 7.351508
  %v4155 = vadd.f32 %v4152, %v4113
  %v4156 = vadd.f32 %v4153, %v4114
  %v4157 = vadd.f32 %v4154, %v4115
  %v4158 = vmul.f32 %v4155, -0.5
  %v4159 = vmul.f32 %v4156, -0.5
  %v4160 = vmul.f32 %v4157, -0.5
  %v4161 = vlog2.pop %v3833
  %v4162 = vmul.f32 %v4161, 0.6931472
  %v4163 = vlog2.pop %v3834
  %v4164 = vmul.f32 %v4163, 0.6931472
  %v4165 = vlog2.pop %v3835
  %v4166 = vmul.f32 %v4165, 0.6931472
  %v4167 = vsel %vm3872, %v4162, 0.0
  %4168 = vadd.xlane.f32.xlu0 %v4167
  %v4169 = vpop.xlane.xlu0 %4168
  %v4170 = vsel %vm3872, %v4164, 0.0
  %4171 = vadd.xlane.f32.xlu0 %v4170
  %v4172 = vpop.xlane.xlu0 %4171
  %v4173 = vsel %vm3872, %v4166, 0.0
  %4174 = vadd.xlane.f32.xlu0 %v4173
  %v4175 = vpop.xlane.xlu0 %4174
  %v4176 = vsub.f32 %v4169, %v4158
  %v4177 = vsub.f32 %v4172, %v4159
  %v4178 = vsub.f32 %v4175, %v4160
  %v4179 = vlaneseq
  %v4180 = vand.u32 %v4179, 127
  %vm4181 = vcmp.eq.s32.totalorder %v4180, 16
  %v4182 = vsel %vm4181, %v4176, %v3760
  %v4183 = vsel %vm4181, %v4177, %v3765
  %v4184 = vsel %vm4181, %v4178, %v3770
  %4185 = vst [vmem:[%s13] sm:$0xff] %v4182
  %4186 = vst [vmem:[%s13 + $0x8] sm:$0xff] %v4183
  %4187 = vst [vmem:[%s13 + $0x10] sm:$0xff] %v4184
  %v4188 = vld [vmem:[%s3] sm:$0xff]
  %v4189 = vld [vmem:[%s3 + $0x8] sm:$0xff]
  %v4190 = vld [vmem:[%s3 + $0x10] sm:$0xff]
  %vm4191 = vcmp.ne.f32.partialorder %v4188, 0.0
  %vm4192 = vcmp.ne.f32.partialorder %v4189, 0.0
  %vm4193 = vcmp.ne.f32.partialorder %v4190, 0.0
  %v4194 = vmul.f32 %v4176, %v4188
  %v4195 = vmul.f32 %v4177, %v4189
  %v4196 = vmul.f32 %v4178, %v4190
  %v4197 = vsel %vm4191, %v4194, 0.0
  %v4198 = vsel %vm4192, %v4195, 0.0
  %v4199 = vsel %vm4193, %v4196, 0.0
  %v4200 = vld [vmem:[%s4] sm:$0x3]
  %vm4201 = vcmask 195584
  %v4203 = vsel %vm4201, %v4200, 0
  %4205 = vmatprep.subr.mxu0 0.0
  %4206 = vmatpush1.msra.mxu0 %v4188
  %4207 = vmatprep.subr.mxu0 0.0
  %4208 = vmatpush1.msra.mxu0 %v4189
  %4209 = vmatprep.subr.mxu0 0.0
  %4210 = vmatpush1.msra.mxu0 %v4190
  %4211 = vmatprep.subr.mxu0 0.0
  %4212 = vmatpush1.msra.mxu0 0.0
  %4213 = vmatprep.subr.mxu0 0.0
  %4214 = vmatpush1.msra.mxu0 0.0
  %4215 = vmatprep.subr.mxu0 0.0
  %4216 = vmatpush1.msra.mxu0 0.0
  %4217 = vmatprep.subr.mxu0 0.0
  %4218 = vmatpush1.msra.mxu0 0.0
  %4219 = vmatprep.subr.mxu0 0.0
  %4220 = vmatpush1.msra.mxu0 0.0
  %4221 = vmatprep.subr.mxu0 0.0
  %4222 = vmatpush1.msra.mxu0 0.0
  %4223 = vmatprep.subr.mxu0 0.0
  %4224 = vmatpush1.msra.mxu0 0.0
  %4225 = vmatprep.subr.mxu0 0.0
  %4226 = vmatpush1.msra.mxu0 0.0
  %4227 = vmatprep.subr.mxu0 0.0
  %4228 = vmatpush1.msra.mxu0 0.0
  %4229 = vmatprep.subr.mxu0 0.0
  %4230 = vmatpush1.msra.mxu0 0.0
  %4231 = vmatprep.subr.mxu0 0.0
  %4232 = vmatpush1.msra.mxu0 0.0
  %4233 = vmatprep.subr.mxu0 0.0
  %4234 = vmatpush1.msra.mxu0 0.0
  %4235 = vmatprep.subr.mxu0 0.0
  %4236 = vmatpush1.msra.mxu0 0.0
  %4237 = vmatprep.subr.mxu0 0.0
  %4238 = vmatpush1.msra.mxu0 0.0
  %4239 = vmatprep.subr.mxu0 0.0
  %4240 = vmatpush1.msra.mxu0 0.0
  %4241 = vmatprep.subr.mxu0 0.0
  %4242 = vmatpush1.msra.mxu0 0.0
  %4243 = vmatprep.subr.mxu0 0.0
  %4244 = vmatpush1.msra.mxu0 0.0
  %4245 = vmatprep.subr.mxu0 0.0
  %4246 = vmatpush1.msra.mxu0 0.0
  %4247 = vmatprep.subr.mxu0 0.0
  %4248 = vmatpush1.msra.mxu0 0.0
  %4249 = vmatprep.subr.mxu0 0.0
  %4250 = vmatpush1.msra.mxu0 0.0
  %4251 = vmatprep.subr.mxu0 0.0
  %4252 = vmatpush1.msra.mxu0 0.0
  %4253 = vmatprep.subr.mxu0 0.0
  %4254 = vmatpush1.msra.mxu0 0.0
  %4255 = vmatprep.subr.mxu0 0.0
  %4256 = vmatpush1.msra.mxu0 0.0
  %4257 = vmatprep.subr.mxu0 0.0
  %4258 = vmatpush1.msra.mxu0 0.0
  %4259 = vmatprep.subr.mxu0 0.0
  %4260 = vmatpush1.msra.mxu0 0.0
  %4261 = vmatprep.subr.mxu0 0.0
  %4262 = vmatpush1.msra.mxu0 0.0
  %4263 = vmatprep.subr.mxu0 0.0
  %4264 = vmatpush1.msra.mxu0 0.0
  %4265 = vmatprep.subr.mxu0 0.0
  %4266 = vmatpush1.msra.mxu0 0.0
  %4267 = vmatprep.subr.mxu0 0.0
  %4268 = vmatpush1.msra.mxu0 0.0
  %4269 = vmatprep.mubr.f32.mxu0 0.0
  %4270 = vmatmul.mubr.f32.gmra.mrb[0].mxu0 %v4203
  %v4271 = vpop.f32.mrb[0].mxu0
  %v4272 = vadd.f32 0.0, %v4271
  %v4273 = vpop.f32.mrb[0].mxu0
  %4274 = vdwg.mxu0
  %4275 = vmatprep.subr.mxu0 0.0
  %4276 = vmatpush1.msra.mxu0 %v4197
  %4277 = vmatprep.subr.mxu0 0.0
  %4278 = vmatpush1.msra.mxu0 %v4198
  %4279 = vmatprep.subr.mxu0 0.0
  %4280 = vmatpush1.msra.mxu0 %v4199
  %4281 = vmatprep.subr.mxu0 0.0
  %4282 = vmatpush1.msra.mxu0 0.0
  %4283 = vmatprep.subr.mxu0 0.0
  %4284 = vmatpush1.msra.mxu0 0.0
  %4285 = vmatprep.subr.mxu0 0.0
  %4286 = vmatpush1.msra.mxu0 0.0
  %4287 = vmatprep.subr.mxu0 0.0
  %4288 = vmatpush1.msra.mxu0 0.0
  %4289 = vmatprep.subr.mxu0 0.0
  %4290 = vmatpush1.msra.mxu0 0.0
  %4291 = vmatprep.subr.mxu0 0.0
  %4292 = vmatpush1.msra.mxu0 0.0
  %4293 = vmatprep.subr.mxu0 0.0
  %4294 = vmatpush1.msra.mxu0 0.0
  %4295 = vmatprep.subr.mxu0 0.0
  %4296 = vmatpush1.msra.mxu0 0.0
  %4297 = vmatprep.subr.mxu0 0.0
  %4298 = vmatpush1.msra.mxu0 0.0
  %4299 = vmatprep.subr.mxu0 0.0
  %4300 = vmatpush1.msra.mxu0 0.0
  %4301 = vmatprep.subr.mxu0 0.0
  %4302 = vmatpush1.msra.mxu0 0.0
  %4303 = vmatprep.subr.mxu0 0.0
  %4304 = vmatpush1.msra.mxu0 0.0
  %4305 = vmatprep.subr.mxu0 0.0
  %4306 = vmatpush1.msra.mxu0 0.0
  %4307 = vmatprep.subr.mxu0 0.0
  %4308 = vmatpush1.msra.mxu0 0.0
  %4309 = vmatprep.subr.mxu0 0.0
  %4310 = vmatpush1.msra.mxu0 0.0
  %4311 = vmatprep.subr.mxu0 0.0
  %4312 = vmatpush1.msra.mxu0 0.0
  %4313 = vmatprep.subr.mxu0 0.0
  %4314 = vmatpush1.msra.mxu0 0.0
  %4315 = vmatprep.subr.mxu0 0.0
  %4316 = vmatpush1.msra.mxu0 0.0
  %4317 = vmatprep.subr.mxu0 0.0
  %4318 = vmatpush1.msra.mxu0 0.0
  %4319 = vmatprep.subr.mxu0 0.0
  %4320 = vmatpush1.msra.mxu0 0.0
  %4321 = vmatprep.subr.mxu0 0.0
  %4322 = vmatpush1.msra.mxu0 0.0
  %4323 = vmatprep.subr.mxu0 0.0
  %4324 = vmatpush1.msra.mxu0 0.0
  %4325 = vmatprep.subr.mxu0 0.0
  %4326 = vmatpush1.msra.mxu0 0.0
  %4327 = vmatprep.subr.mxu0 0.0
  %4328 = vmatpush1.msra.mxu0 0.0
  %4329 = vmatprep.subr.mxu0 0.0
  %4330 = vmatpush1.msra.mxu0 0.0
  %4331 = vmatprep.subr.mxu0 0.0
  %4332 = vmatpush1.msra.mxu0 0.0
  %4333 = vmatprep.subr.mxu0 0.0
  %4334 = vmatpush1.msra.mxu0 0.0
  %4335 = vmatprep.subr.mxu0 0.0
  %4336 = vmatpush1.msra.mxu0 0.0
  %4337 = vmatprep.subr.mxu0 0.0
  %4338 = vmatpush1.msra.mxu0 0.0
  %4339 = vmatprep.mubr.f32.mxu0 0.0
  %4340 = vmatmul.mubr.f32.gmra.mrb[0].mxu0 %v4203
  %v4341 = vpop.f32.mrb[0].mxu0
  %v4342 = vadd.f32 0.0, %v4341
  %v4343 = vpop.f32.mrb[0].mxu0
  %4344 = vdwg.mxu0
  %v4345 = vmax.f32 %v4272, 1.0
  %v4346 = vrcp.pop %v4345
  %v4347 = vmul.f32 %v4342, %v4346
  %vm4348 = vcmask 1024
  %4349 = vst.msk [vmem:[%s14] sm:$0x3] %vm4348, %v4347
  // Predicated region
  $region54: #{deepvar_forward.1} parent=0 // pred_check
    _
  $region55: #{deepvar_forward.1} parent=0 // pred_check_branch
    %4351 = sbr.rel (0) target = $region57
  $region56: #{deepvar_forward.1} parent=0 // pred_region
    _
  $region57: #{deepvar_forward.1} parent=0 // pred_fallthru
    _
  // Predicated region
  $region58: #{deepvar_forward.1} parent=0 // pred_check
    _
  $region59: #{deepvar_forward.1} parent=0 // pred_check_branch
    %4353 = sbr.rel (0) target = $region61
  $region60: #{deepvar_forward.1} parent=0 // pred_region
    _
  $region61: #{deepvar_forward.1} parent=0 // pred_fallthru
    _
  // Predicated region
  $region62: #{deepvar_forward.1} parent=0 // pred_check
    _
  $region63: #{deepvar_forward.1} parent=0 // pred_check_branch
    %4355 = sbr.rel (0) target = $region65
  $region64: #{deepvar_forward.1} parent=0 // pred_region
    _
  $region65: #{deepvar_forward.1} parent=0 // pred_fallthru
    _
  // Predicated region
  $region66: #{deepvar_forward.1} parent=0 // pred_check
    _
  $region67: #{deepvar_forward.1} parent=0 // pred_check_branch
    %4357 = sbr.rel (0) target = $region69
  $region68: #{deepvar_forward.1} parent=0 // pred_region
    _
  $region69: #{deepvar_forward.1} parent=0 // pred_fallthru
    _

</llo_original>
